<compile_context>
chip_gen: v7x
topology: tpu7x:2x2x1
jax: 0.10.0
libtpu: 0.0.40
codegen_flags: <defaults>
</compile_context>

<pallas_src>
import functools

import jax
import jax.numpy as jnp
from jax import lax
from jax.experimental import pallas as pl
from jax.experimental.pallas import tpu as pltpu


# ------------------------------ Pallas kernel -------------------------------

def _bottleneck_kernel(H, W,
                       x_ref, t_ref,
                       w1_ref, b1_ref, w2_ref, b2_ref, w3_ref, b3_ref,
                       o_ref,
                       pad_ref, patch_ref):
    """Fused Bottleneck forward for one image (pixels-major (H*W, C) layout).

    x_ref, t_ref : (1, H*W, Cin)   input / temporal stream
    w1_ref       : (Cin, Cmid)     1x1 conv, BN1 scale folded in
    w2_ref       : (9*Cmid, Cmid)  3x3 conv taps stacked on rows, BN2 scale folded in
    w3_ref       : (Cmid, Cout)    1x1 conv, BN3 scale folded in
    b*_ref       : (1, C)          folded BN biases
    o_ref        : (1, H*W, Cout)
    pad_ref      : VMEM (H+2, W+2, Cmid)  zero-halo intermediate (never written to HBM)
    patch_ref    : VMEM (H*W, 9*Cmid)     im2col patch matrix
    """
    HW = H * W
    Cmid = w1_ref.shape[1]

    x = x_ref[0]                                      # (HW, Cin), residual source
    z = x * jnp.maximum(t_ref[0], 0.0)                # gating: x * relu(temporal)

    # ---- conv1 (1x1) + bn1 (folded) + relu: one MXU matmul, K = Cin ----
    y1 = jnp.dot(z, w1_ref[...], preferred_element_type=jnp.float32)
    y1 = jnp.maximum(y1 + b1_ref[0], 0.0)             # (HW, Cmid)

    # ---- conv2 (3x3, pad 1) + bn2 (folded) + relu as ONE im2col matmul (K = 9*Cmid) ----
    pad_ref[...] = jnp.zeros_like(pad_ref)            # zero halo (re-done per grid step: safe
    pad_ref[1:H + 1, 1:W + 1, :] = y1.reshape(H, W, Cmid)  # under megacore grid splitting)
    for kh in range(3):
        for kw in range(3):
            j = kh * 3 + kw
            win = pad_ref[kh:kh + H, kw:kw + W, :]    # (H, W, Cmid) shifted window
            patch_ref[:, j * Cmid:(j + 1) * Cmid] = win.reshape(HW, Cmid)
    y2 = jnp.dot(patch_ref[...], w2_ref[...], preferred_element_type=jnp.float32)
    y2 = jnp.maximum(y2 + b2_ref[0], 0.0)             # (HW, Cmid)

    # ---- conv3 (1x1) + bn3 (folded) + residual + relu ----
    y3 = jnp.dot(y2, w3_ref[...], preferred_element_type=jnp.float32)
    out = jnp.maximum(y3 + b3_ref[0] + x, 0.0)        # Cout == Cin (downsample is None)
    o_ref[0] = out.astype(o_ref.dtype)


# ------------------------------ JAX wrapper ----------------------------------

def _fold_bn(gamma, beta, mean, var, eps=1e-5):
    scale = gamma / jnp.sqrt(var + eps)
    bias = beta - mean * scale
    return scale, bias


@jax.jit
def bottleneck_forward(x_nchw, t_nchw, params):
    N, Cin, H, W = x_nchw.shape
    HW = H * W

    # Layout glue: NCHW -> pixels-major (N, H*W, C).
    x = jnp.transpose(x_nchw, (0, 2, 3, 1)).reshape(N, HW, Cin)
    t = jnp.transpose(t_nchw, (0, 2, 3, 1)).reshape(N, HW, Cin)

    w1 = params["w1"][0, 0]            # (Cin, Cmid)     from HWIO (1,1,Cin,Cmid)
    w2 = params["w2"]                  # (3, 3, Cmid, Cmid) HWIO
    w3 = params["w3"][0, 0]            # (Cmid, Cout)    from HWIO (1,1,Cmid,Cout)
    Cmid, Cout = w1.shape[1], w3.shape[1]

    s1, c1 = _fold_bn(params["g1"], params["be1"], params["m1"], params["v1"])
    s2, c2 = _fold_bn(params["g2"], params["be2"], params["m2"], params["v2"])
    s3, c3 = _fold_bn(params["g3"], params["be3"], params["m3"], params["v3"])

    # Fold BN scale into the conv weights; kernel epilogue is bias-add only.
    w1f = w1 * s1[None, :]
    w2f = (w2 * s2[None, None, None, :]).reshape(9 * Cmid, Cmid)
    w3f = w3 * s3[None, :]
    b1, b2, b3 = c1[None, :], c2[None, :], c3[None, :]

    kernel = functools.partial(_bottleneck_kernel, H, W)
    out = pl.pallas_call(
        kernel,
        out_shape=jax.ShapeDtypeStruct((N, HW, Cout), jnp.float32),
        grid_spec=pltpu.PrefetchScalarGridSpec(
            num_scalar_prefetch=0,
            grid=(N,),
            in_specs=[
                pl.BlockSpec((1, HW, Cin), lambda n: (n, 0, 0)),     # x
                pl.BlockSpec((1, HW, Cin), lambda n: (n, 0, 0)),     # temporal
                pl.BlockSpec((Cin, Cmid), lambda n: (0, 0)),         # w1 folded
                pl.BlockSpec((1, Cmid), lambda n: (0, 0)),           # b1
                pl.BlockSpec((9 * Cmid, Cmid), lambda n: (0, 0)),    # w2 folded (im2col)
                pl.BlockSpec((1, Cmid), lambda n: (0, 0)),           # b2
                pl.BlockSpec((Cmid, Cout), lambda n: (0, 0)),        # w3 folded
                pl.BlockSpec((1, Cout), lambda n: (0, 0)),           # b3
            ],
            out_specs=pl.BlockSpec((1, HW, Cout), lambda n: (n, 0, 0)),
            scratch_shapes=[
                pltpu.VMEM((H + 2, W + 2, Cmid), jnp.float32),   # zero-halo intermediate
                pltpu.VMEM((HW, 9 * Cmid), jnp.float32),         # im2col patch matrix
            ],
        ),
        compiler_params=pltpu.CompilerParams(
            dimension_semantics=("parallel",)),
    )(x, t, w1f, b1, w2f, b2, w3f, b3)

    # Back to NCHW to match the PyTorch module's convention.
    return jnp.transpose(out.reshape(N, H, W, Cout), (0, 3, 1, 2))


# ------------------------- Pure-JAX reference (check) ------------------------

def _reference(x_nchw, t_nchw, params):
    x = jnp.transpose(x_nchw, (0, 2, 3, 1))
    t = jnp.transpose(t_nchw, (0, 2, 3, 1))
    dn = ("NHWC", "HWIO", "NHWC")
    hp = lax.Precision.HIGHEST
    s1, c1 = _fold_bn(params["g1"], params["be1"], params["m1"], params["v1"])
    s2, c2 = _fold_bn(params["g2"], params["be2"], params["m2"], params["v2"])
    s3, c3 = _fold_bn(params["g3"], params["be3"], params["m3"], params["v3"])

    z = x * jax.nn.relu(t)
    o = lax.conv_general_dilated(z, params["w1"], (1, 1), "SAME",
                                 dimension_numbers=dn, precision=hp)
    o = jax.nn.relu(o * s1 + c1)
    o = lax.conv_general_dilated(o, params["w2"], (1, 1), "SAME",
                                 dimension_numbers=dn, precision=hp)
    o = jax.nn.relu(o * s2 + c2)
    o = lax.conv_general_dilated(o, params["w3"], (1, 1), "SAME",
                                 dimension_numbers=dn, precision=hp)
    o = o * s3 + c3
    o = jax.nn.relu(o + x)
    return jnp.transpose(o, (0, 3, 1, 2))


# ----------------------------------- main ------------------------------------

if __name__ == "__main__":
    key = jax.random.PRNGKey(0)
    planes = 8
    inplanes = planes * 4            # expansion=4; downsample=None => inplanes == planes*4
    N, H, W = 2, 16, 16
    ks = jax.random.split(key, 17)

    x = jax.random.normal(ks[0], (N, inplanes, H, W), jnp.float32)
    temporal = jax.random.normal(ks[1], (N, inplanes, H, W), jnp.float32)

    params = {
        "w1": 0.1 * jax.random.normal(ks[2], (1, 1, inplanes, planes), jnp.float32),
        "w2": 0.1 * jax.random.normal(ks[3], (3, 3, planes, planes), jnp.float32),
        "w3": 0.1 * jax.random.normal(ks[4], (1, 1, planes, inplanes), jnp.float32),
        "g1": 1.0 + 0.1 * jax.random.normal(ks[5], (planes,), jnp.float32),
        "be1": 0.05 * jax.random.normal(ks[6], (planes,), jnp.float32),
        "m1": 0.1 * jax.random.normal(ks[7], (planes,), jnp.float32),
        "v1": 1.0 + 0.1 * jax.random.uniform(ks[8], (planes,), jnp.float32),
        "g2": 1.0 + 0.1 * jax.random.normal(ks[9], (planes,), jnp.float32),
        "be2": 0.05 * jax.random.normal(ks[10], (planes,), jnp.float32),
        "m2": 0.1 * jax.random.normal(ks[11], (planes,), jnp.float32),
        "v2": 1.0 + 0.1 * jax.random.uniform(ks[12], (planes,), jnp.float32),
        "g3": 1.0 + 0.1 * jax.random.normal(ks[13], (inplanes,), jnp.float32),
        "be3": 0.05 * jax.random.normal(ks[14], (inplanes,), jnp.float32),
        "m3": 0.1 * jax.random.normal(ks[15], (inplanes,), jnp.float32),
        "v3": 1.0 + 0.1 * jax.random.uniform(ks[16], (inplanes,), jnp.float32),
    }

    out = bottleneck_forward(x, temporal, params)
    out = jax.block_until_ready(out)

    ref = _reference(x, temporal, params)
    assert out.shape == (N, inplanes, H, W)
    max_diff = jnp.max(jnp.abs(out - ref))
    assert jnp.allclose(out, ref, atol=2e-4, rtol=2e-4), f"max abs diff {max_diff}"

    print("KERNEL_OK")
</pallas_src>

<mosaic_0001>
module attributes {stable_mosaic.version = 11 : i64} {
  func.func @_bottleneck_kernel(%arg0: i32, %arg1: memref<1x256x32xf32, #tpu.memory_space<vmem>>, %arg2: memref<1x256x32xf32, #tpu.memory_space<vmem>>, %arg3: memref<32x8xf32, #tpu.memory_space<vmem>>, %arg4: memref<1x8xf32, #tpu.memory_space<vmem>>, %arg5: memref<72x8xf32, #tpu.memory_space<vmem>>, %arg6: memref<1x8xf32, #tpu.memory_space<vmem>>, %arg7: memref<8x32xf32, #tpu.memory_space<vmem>>, %arg8: memref<1x32xf32, #tpu.memory_space<vmem>>, %arg9: memref<1x256x32xf32, #tpu.memory_space<vmem>>, %arg10: memref<18x18x8xf32, #tpu.memory_space<vmem>>, %arg11: memref<256x72xf32, #tpu.memory_space<vmem>>) attributes {dimension_semantics = [#tpu.dimension_semantics<parallel>], iteration_bounds = array<i64: 2>, scalar_prefetch = 0 : i64, scratch_operands = 2 : i64, tpu.core_type = #tpu.core_type<tc>, window_params = [{transform_indices = @transform_0, window_bounds = array<i64: 1, 256, 32>}, {transform_indices = @transform_1, window_bounds = array<i64: 1, 256, 32>}, {pipeline_mode = #tpu.pipeline_mode<synchronous>, transform_indices = @transform_2, window_bounds = array<i64: 32, 8>}, {pipeline_mode = #tpu.pipeline_mode<synchronous>, transform_indices = @transform_3, window_bounds = array<i64: 1, 8>}, {pipeline_mode = #tpu.pipeline_mode<synchronous>, transform_indices = @transform_4, window_bounds = array<i64: 72, 8>}, {pipeline_mode = #tpu.pipeline_mode<synchronous>, transform_indices = @transform_5, window_bounds = array<i64: 1, 8>}, {pipeline_mode = #tpu.pipeline_mode<synchronous>, transform_indices = @transform_6, window_bounds = array<i64: 8, 32>}, {pipeline_mode = #tpu.pipeline_mode<synchronous>, transform_indices = @transform_7, window_bounds = array<i64: 1, 32>}, {transform_indices = @transform_8, window_bounds = array<i64: 1, 256, 32>}]} {
    %c0 = arith.constant 0 : index
    %c0_0 = arith.constant 0 : index
    %c0_1 = arith.constant 0 : index
    %0 = vector.load %arg1[%c0, %c0_0, %c0_1] : memref<1x256x32xf32, #tpu.memory_space<vmem>>, vector<1x256x32xf32>
    %1 = vector.shape_cast %0 : vector<1x256x32xf32> to vector<256x32xf32>
    %c0_2 = arith.constant 0 : index
    %c0_3 = arith.constant 0 : index
    %c0_4 = arith.constant 0 : index
    %2 = vector.load %arg2[%c0_2, %c0_3, %c0_4] : memref<1x256x32xf32, #tpu.memory_space<vmem>>, vector<1x256x32xf32>
    %3 = vector.shape_cast %2 : vector<1x256x32xf32> to vector<256x32xf32>
    %cst = arith.constant 0.000000e+00 : f32
    %4 = vector.broadcast %cst : f32 to vector<256x32xf32>
    %5 = arith.maximumf %3, %4 : vector<256x32xf32>
    %6 = arith.mulf %1, %5 : vector<256x32xf32>
    %c0_5 = arith.constant 0 : index
    %c0_6 = arith.constant 0 : index
    %7 = vector.load %arg3[%c0_5, %c0_6] : memref<32x8xf32, #tpu.memory_space<vmem>>, vector<32x8xf32>
    %cst_7 = arith.constant dense<0.000000e+00> : vector<256x8xf32>
    %8 = tpu.matmul %6, %7, %cst_7 {dimension_numbers = #tpu.dot_dimension_numbers<[1], [0], [0], [1], [0, 0, 1, 1], [], []>} : vector<256x32xf32>, vector<32x8xf32>, vector<256x8xf32> -> vector<256x8xf32>
    %c0_8 = arith.constant 0 : index
    %c0_9 = arith.constant 0 : index
    %9 = vector.load %arg4[%c0_8, %c0_9] : memref<1x8xf32, #tpu.memory_space<vmem>>, vector<1x8xf32>
    %10 = vector.shape_cast %9 : vector<1x8xf32> to vector<8xf32>
    %11 = vector.shape_cast %10 : vector<8xf32> to vector<1x8xf32>
    %12 = vector.broadcast %11 : vector<1x8xf32> to vector<256x8xf32>
    %13 = arith.addf %8, %12 : vector<256x8xf32>
    %cst_10 = arith.constant 0.000000e+00 : f32
    %14 = vector.broadcast %cst_10 : f32 to vector<256x8xf32>
    %15 = arith.maximumf %13, %14 : vector<256x8xf32>
    %cst_11 = arith.constant 0.000000e+00 : f32
    %16 = vector.broadcast %cst_11 : f32 to vector<18x18x8xf32>
    %c0_12 = arith.constant 0 : index
    %c0_13 = arith.constant 0 : index
    %c0_14 = arith.constant 0 : index
    %17 = vector.load %arg10[%c0_12, %c0_13, %c0_14] : memref<18x18x8xf32, #tpu.memory_space<vmem>>, vector<18x18x8xf32>
    tpu.vector_store %arg10[%c0_12, %c0_13, %c0_14], %16 {strides = array<i32>} : memref<18x18x8xf32, #tpu.memory_space<vmem>>, vector<18x18x8xf32>,
    %18 = vector.shape_cast %15 : vector<256x8xf32> to vector<16x16x8xf32>
    %c1 = arith.constant 1 : index
    %c1_15 = arith.constant 1 : index
    %c0_16 = arith.constant 0 : index
    %19 = vector.load %arg10[%c1, %c1_15, %c0_16] : memref<18x18x8xf32, #tpu.memory_space<vmem>>, vector<16x16x8xf32>
    tpu.vector_store %arg10[%c1, %c1_15, %c0_16], %18 {strides = array<i32>} : memref<18x18x8xf32, #tpu.memory_space<vmem>>, vector<16x16x8xf32>,
    %c0_17 = arith.constant 0 : index
    %c0_18 = arith.constant 0 : index
    %c0_19 = arith.constant 0 : index
    %20 = vector.load %arg10[%c0_17, %c0_18, %c0_19] : memref<18x18x8xf32, #tpu.memory_space<vmem>>, vector<16x16x8xf32>
    %21 = vector.shape_cast %20 : vector<16x16x8xf32> to vector<256x8xf32>
    %c0_20 = arith.constant 0 : index
    %c0_21 = arith.constant 0 : index
    %22 = vector.load %arg11[%c0_20, %c0_21] : memref<256x72xf32, #tpu.memory_space<vmem>>, vector<256x8xf32>
    tpu.vector_store %arg11[%c0_20, %c0_21], %21 {strides = array<i32>} : memref<256x72xf32, #tpu.memory_space<vmem>>, vector<256x8xf32>,
    %c0_22 = arith.constant 0 : index
    %c1_23 = arith.constant 1 : index
    %c0_24 = arith.constant 0 : index
    %23 = vector.load %arg10[%c0_22, %c1_23, %c0_24] : memref<18x18x8xf32, #tpu.memory_space<vmem>>, vector<16x16x8xf32>
    %24 = vector.shape_cast %23 : vector<16x16x8xf32> to vector<256x8xf32>
    %c0_25 = arith.constant 0 : index
    %c8 = arith.constant 8 : index
    %25 = vector.load %arg11[%c0_25, %c8] : memref<256x72xf32, #tpu.memory_space<vmem>>, vector<256x8xf32>
    tpu.vector_store %arg11[%c0_25, %c8], %24 {strides = array<i32>} : memref<256x72xf32, #tpu.memory_space<vmem>>, vector<256x8xf32>,
    %c0_26 = arith.constant 0 : index
    %c2 = arith.constant 2 : index
    %c0_27 = arith.constant 0 : index
    %26 = vector.load %arg10[%c0_26, %c2, %c0_27] : memref<18x18x8xf32, #tpu.memory_space<vmem>>, vector<16x16x8xf32>
    %27 = vector.shape_cast %26 : vector<16x16x8xf32> to vector<256x8xf32>
    %c0_28 = arith.constant 0 : index
    %c16 = arith.constant 16 : index
    %28 = vector.load %arg11[%c0_28, %c16] : memref<256x72xf32, #tpu.memory_space<vmem>>, vector<256x8xf32>
    tpu.vector_store %arg11[%c0_28, %c16], %27 {strides = array<i32>} : memref<256x72xf32, #tpu.memory_space<vmem>>, vector<256x8xf32>,
    %c1_29 = arith.constant 1 : index
    %c0_30 = arith.constant 0 : index
    %c0_31 = arith.constant 0 : index
    %29 = vector.load %arg10[%c1_29, %c0_30, %c0_31] : memref<18x18x8xf32, #tpu.memory_space<vmem>>, vector<16x16x8xf32>
    %30 = vector.shape_cast %29 : vector<16x16x8xf32> to vector<256x8xf32>
    %c0_32 = arith.constant 0 : index
    %c24 = arith.constant 24 : index
    %31 = vector.load %arg11[%c0_32, %c24] : memref<256x72xf32, #tpu.memory_space<vmem>>, vector<256x8xf32>
    tpu.vector_store %arg11[%c0_32, %c24], %30 {strides = array<i32>} : memref<256x72xf32, #tpu.memory_space<vmem>>, vector<256x8xf32>,
    %c1_33 = arith.constant 1 : index
    %c1_34 = arith.constant 1 : index
    %c0_35 = arith.constant 0 : index
    %32 = vector.load %arg10[%c1_33, %c1_34, %c0_35] : memref<18x18x8xf32, #tpu.memory_space<vmem>>, vector<16x16x8xf32>
    %33 = vector.shape_cast %32 : vector<16x16x8xf32> to vector<256x8xf32>
    %c0_36 = arith.constant 0 : index
    %c32 = arith.constant 32 : index
    %34 = vector.load %arg11[%c0_36, %c32] : memref<256x72xf32, #tpu.memory_space<vmem>>, vector<256x8xf32>
    tpu.vector_store %arg11[%c0_36, %c32], %33 {strides = array<i32>} : memref<256x72xf32, #tpu.memory_space<vmem>>, vector<256x8xf32>,
    %c1_37 = arith.constant 1 : index
    %c2_38 = arith.constant 2 : index
    %c0_39 = arith.constant 0 : index
    %35 = vector.load %arg10[%c1_37, %c2_38, %c0_39] : memref<18x18x8xf32, #tpu.memory_space<vmem>>, vector<16x16x8xf32>
    %36 = vector.shape_cast %35 : vector<16x16x8xf32> to vector<256x8xf32>
    %c0_40 = arith.constant 0 : index
    %c40 = arith.constant 40 : index
    %37 = vector.load %arg11[%c0_40, %c40] : memref<256x72xf32, #tpu.memory_space<vmem>>, vector<256x8xf32>
    tpu.vector_store %arg11[%c0_40, %c40], %36 {strides = array<i32>} : memref<256x72xf32, #tpu.memory_space<vmem>>, vector<256x8xf32>,
    %c2_41 = arith.constant 2 : index
    %c0_42 = arith.constant 0 : index
    %c0_43 = arith.constant 0 : index
    %38 = vector.load %arg10[%c2_41, %c0_42, %c0_43] : memref<18x18x8xf32, #tpu.memory_space<vmem>>, vector<16x16x8xf32>
    %39 = vector.shape_cast %38 : vector<16x16x8xf32> to vector<256x8xf32>
    %c0_44 = arith.constant 0 : index
    %c48 = arith.constant 48 : index
    %40 = vector.load %arg11[%c0_44, %c48] : memref<256x72xf32, #tpu.memory_space<vmem>>, vector<256x8xf32>
    tpu.vector_store %arg11[%c0_44, %c48], %39 {strides = array<i32>} : memref<256x72xf32, #tpu.memory_space<vmem>>, vector<256x8xf32>,
    %c2_45 = arith.constant 2 : index
    %c1_46 = arith.constant 1 : index
    %c0_47 = arith.constant 0 : index
    %41 = vector.load %arg10[%c2_45, %c1_46, %c0_47] : memref<18x18x8xf32, #tpu.memory_space<vmem>>, vector<16x16x8xf32>
    %42 = vector.shape_cast %41 : vector<16x16x8xf32> to vector<256x8xf32>
    %c0_48 = arith.constant 0 : index
    %c56 = arith.constant 56 : index
    %43 = vector.load %arg11[%c0_48, %c56] : memref<256x72xf32, #tpu.memory_space<vmem>>, vector<256x8xf32>
    tpu.vector_store %arg11[%c0_48, %c56], %42 {strides = array<i32>} : memref<256x72xf32, #tpu.memory_space<vmem>>, vector<256x8xf32>,
    %c2_49 = arith.constant 2 : index
    %c2_50 = arith.constant 2 : index
    %c0_51 = arith.constant 0 : index
    %44 = vector.load %arg10[%c2_49, %c2_50, %c0_51] : memref<18x18x8xf32, #tpu.memory_space<vmem>>, vector<16x16x8xf32>
    %45 = vector.shape_cast %44 : vector<16x16x8xf32> to vector<256x8xf32>
    %c0_52 = arith.constant 0 : index
    %c64 = arith.constant 64 : index
    %46 = vector.load %arg11[%c0_52, %c64] : memref<256x72xf32, #tpu.memory_space<vmem>>, vector<256x8xf32>
    tpu.vector_store %arg11[%c0_52, %c64], %45 {strides = array<i32>} : memref<256x72xf32, #tpu.memory_space<vmem>>, vector<256x8xf32>,
    %c0_53 = arith.constant 0 : index
    %c0_54 = arith.constant 0 : index
    %47 = vector.load %arg11[%c0_53, %c0_54] : memref<256x72xf32, #tpu.memory_space<vmem>>, vector<256x72xf32>
    %c0_55 = arith.constant 0 : index
    %c0_56 = arith.constant 0 : index
    %48 = vector.load %arg5[%c0_55, %c0_56] : memref<72x8xf32, #tpu.memory_space<vmem>>, vector<72x8xf32>
    %cst_57 = arith.constant dense<0.000000e+00> : vector<256x8xf32>
    %49 = tpu.matmul %47, %48, %cst_57 {dimension_numbers = #tpu.dot_dimension_numbers<[1], [0], [0], [1], [0, 0, 1, 1], [], []>} : vector<256x72xf32>, vector<72x8xf32>, vector<256x8xf32> -> vector<256x8xf32>
    %c0_58 = arith.constant 0 : index
    %c0_59 = arith.constant 0 : index
    %50 = vector.load %arg6[%c0_58, %c0_59] : memref<1x8xf32, #tpu.memory_space<vmem>>, vector<1x8xf32>
    %51 = vector.shape_cast %50 : vector<1x8xf32> to vector<8xf32>
    %52 = vector.shape_cast %51 : vector<8xf32> to vector<1x8xf32>
    %53 = vector.broadcast %52 : vector<1x8xf32> to vector<256x8xf32>
    %54 = arith.addf %49, %53 : vector<256x8xf32>
    %cst_60 = arith.constant 0.000000e+00 : f32
    %55 = vector.broadcast %cst_60 : f32 to vector<256x8xf32>
    %56 = arith.maximumf %54, %55 : vector<256x8xf32>
    %c0_61 = arith.constant 0 : index
    %c0_62 = arith.constant 0 : index
    %57 = vector.load %arg7[%c0_61, %c0_62] : memref<8x32xf32, #tpu.memory_space<vmem>>, vector<8x32xf32>
    %cst_63 = arith.constant dense<0.000000e+00> : vector<256x32xf32>
    %58 = tpu.matmul %56, %57, %cst_63 {dimension_numbers = #tpu.dot_dimension_numbers<[1], [0], [0], [1], [0, 0, 1, 1], [], []>} : vector<256x8xf32>, vector<8x32xf32>, vector<256x32xf32> -> vector<256x32xf32>
    %c0_64 = arith.constant 0 : index
    %c0_65 = arith.constant 0 : index
    %59 = vector.load %arg8[%c0_64, %c0_65] : memref<1x32xf32, #tpu.memory_space<vmem>>, vector<1x32xf32>
    %60 = vector.shape_cast %59 : vector<1x32xf32> to vector<32xf32>
    %61 = vector.shape_cast %60 : vector<32xf32> to vector<1x32xf32>
    %62 = vector.broadcast %61 : vector<1x32xf32> to vector<256x32xf32>
    %63 = arith.addf %58, %62 : vector<256x32xf32>
    %64 = arith.addf %63, %1 : vector<256x32xf32>
    %cst_66 = arith.constant 0.000000e+00 : f32
    %65 = vector.broadcast %cst_66 : f32 to vector<256x32xf32>
    %66 = arith.maximumf %64, %65 : vector<256x32xf32>
    %c0_67 = arith.constant 0 : index
    %c0_68 = arith.constant 0 : index
    %c0_69 = arith.constant 0 : index
    %67 = vector.load %arg9[%c0_67, %c0_68, %c0_69] : memref<1x256x32xf32, #tpu.memory_space<vmem>>, vector<1x256x32xf32>
    %68 = vector.shape_cast %67 : vector<1x256x32xf32> to vector<256x32xf32>
    %69 = vector.shape_cast %66 : vector<256x32xf32> to vector<1x256x32xf32>
    tpu.vector_store %arg9[%c0_67, %c0_68, %c0_69], %69 {strides = array<i32>} : memref<1x256x32xf32, #tpu.memory_space<vmem>>, vector<1x256x32xf32>,
    return
  }
  func.func @transform_0(%arg0: i32) -> (i32, i32, i32) {
    %c0_i32 = arith.constant 0 : i32
    %c0_i32_0 = arith.constant 0 : i32
    %c0_i32_1 = arith.constant 0 : i32
    return %arg0, %c0_i32, %c0_i32_0 : i32, i32, i32
  }
  func.func @transform_1(%arg0: i32) -> (i32, i32, i32) {
    %c0_i32 = arith.constant 0 : i32
    %c0_i32_0 = arith.constant 0 : i32
    %c0_i32_1 = arith.constant 0 : i32
    return %arg0, %c0_i32, %c0_i32_0 : i32, i32, i32
  }
  func.func @transform_2(%arg0: i32) -> (i32, i32) {
    %c0_i32 = arith.constant 0 : i32
    %c0_i32_0 = arith.constant 0 : i32
    %c0_i32_1 = arith.constant 0 : i32
    return %c0_i32, %c0_i32_0 : i32, i32
  }
  func.func @transform_3(%arg0: i32) -> (i32, i32) {
    %c0_i32 = arith.constant 0 : i32
    %c0_i32_0 = arith.constant 0 : i32
    %c0_i32_1 = arith.constant 0 : i32
    return %c0_i32, %c0_i32_0 : i32, i32
  }
  func.func @transform_4(%arg0: i32) -> (i32, i32) {
    %c0_i32 = arith.constant 0 : i32
    %c0_i32_0 = arith.constant 0 : i32
    %c0_i32_1 = arith.constant 0 : i32
    return %c0_i32, %c0_i32_0 : i32, i32
  }
  func.func @transform_5(%arg0: i32) -> (i32, i32) {
    %c0_i32 = arith.constant 0 : i32
    %c0_i32_0 = arith.constant 0 : i32
    %c0_i32_1 = arith.constant 0 : i32
    return %c0_i32, %c0_i32_0 : i32, i32
  }
  func.func @transform_6(%arg0: i32) -> (i32, i32) {
    %c0_i32 = arith.constant 0 : i32
    %c0_i32_0 = arith.constant 0 : i32
    %c0_i32_1 = arith.constant 0 : i32
    return %c0_i32, %c0_i32_0 : i32, i32
  }
  func.func @transform_7(%arg0: i32) -> (i32, i32) {
    %c0_i32 = arith.constant 0 : i32
    %c0_i32_0 = arith.constant 0 : i32
    %c0_i32_1 = arith.constant 0 : i32
    return %c0_i32, %c0_i32_0 : i32, i32
  }
  func.func @transform_8(%arg0: i32) -> (i32, i32, i32) {
    %c0_i32 = arith.constant 0 : i32
    %c0_i32_0 = arith.constant 0 : i32
    %c0_i32_1 = arith.constant 0 : i32
    return %arg0, %c0_i32, %c0_i32_0 : i32, i32, i32
  }
}

</mosaic_0001>

<llo_original>
// kernel: bottleneck_forward.1
$region0: #{bottleneck_forward.1}
  #allocation0 [shape = 'u32[]', space=smem, size = 0x4, offset = 0x4, fixed_abs, tag = 'smem constant byte address 0x4 - core index']
  #allocation1 [shape = 'u32[144,128]{1,0:T(1,128)}', space=vmem, size = 0x12000, scoped, tag = 'internal scratch']
  #allocation2 [shape = 'f32[18,18,8]{2,1,0:T(8,128)}', space=vmem, size = 0x36000, scoped, tag = 'scratch operand']
  #allocation3 [shape = 'f32[256,72]{1,0:T(8,128)}', space=vmem, size = 0x20000, scoped, tag = 'scratch operand']
  %s0 = inlined_call_operand.hbm [shape: f32[2,256,32], index: 0, kind: input, shape index: {}]
  %s1 = inlined_call_operand.hbm [shape: f32[2,256,32], index: 1, kind: input, shape index: {}]
  %s2 = inlined_call_operand.vmem [shape: f32[32,8], index: 2, kind: input, shape index: {}]
  %s3 = inlined_call_operand.vmem [shape: f32[1,8], index: 3, kind: input, shape index: {}]
  %s4 = inlined_call_operand.vmem [shape: f32[72,8], index: 4, kind: input, shape index: {}]
  %s5 = inlined_call_operand.vmem [shape: f32[1,8], index: 5, kind: input, shape index: {}]
  %s6 = inlined_call_operand.vmem [shape: f32[8,32], index: 6, kind: input, shape index: {}]
  %s7 = inlined_call_operand.vmem [shape: f32[1,32], index: 7, kind: input, shape index: {}]
  %s8 = inlined_call_operand.hbm [shape: f32[2,256,32], index: 8, kind: output, shape index: {}]
  %s9 = sld [smem:[#allocation0]]
  $region73: #{bottleneck_forward.1} parent=0
    _
  %s11 = ssub.s32 1, %s9
  %s12 = scalar_select 0, %s11, %s9
  $region1: #{bottleneck_forward.1} parent=0
    #allocation4 [shape = 'u8[262144]{0}', space=vmem, size = 0x40000, scoped, tag = 'input window, operand 0']
    #allocation5 [shape = 's32[2]{0}', space=sflag, size = 0x8, scoped, tag = 'scoped memory for bottleneck_forward.1']
    #allocation6 [shape = 's32[2]{0}', space=sflag, size = 0x8, scoped, tag = 'scoped memory for bottleneck_forward.1']
    #allocation7 [shape = 'u8[262144]{0}', space=vmem, size = 0x40000, scoped, tag = 'input window, operand 1']
    #allocation8 [shape = 's32[2]{0}', space=sflag, size = 0x8, scoped, tag = 'scoped memory for bottleneck_forward.1']
    #allocation9 [shape = 'u8[262144]{0}', space=vmem, size = 0x40000, scoped, tag = 'output window, operand 0']
    %13 = vsyncpa [#allocation5], 0
    %s14 = scalar_lea.sflag [#allocation5], 1
    %15 = vsyncpa %s14, 0
    %16 = vsyncpa [#allocation8], 0
    %s17 = scalar_lea.sflag [#allocation8], 1
    %18 = vsyncpa %s17, 0
    %19 = vsyncpa [#allocation6], 0
    %s20 = scalar_lea.sflag [#allocation6], 1
    %21 = vsyncpa %s20, 0
    loop: start=0, step=1, limit=4
    $region2: #{bottleneck_forward.1} parent=1 // loop_pre_header
      _
    $region3: #{bottleneck_forward.1} parent=1 // loop_header
      %s23 = sphi 0, %s27
      %p24 = scmp.ge.s32.totalorder %s23, 4
      %s33 = sphi 0, %s35
      %s36 = sphi 0, %s33
      %s37 = sphi 0, %s36
      %s53 = sphi 0, %s37
      %s59 = sphi 0, %s61
      %s62 = sphi 0, %s59
      %s63 = sphi 0, %s62
      %s79 = sphi 0, %s63
      %s83 = sphi 0, %s83
      %s85 = sphi 0, %s83
      %s86 = sphi 0, %s85
      %s100 = sphi 0, %s86
      %s104 = sphi 0, %s104
      %s106 = sphi 0, %s104
      %s107 = sphi 0, %s106
      %s121 = sphi 0, %s107
      %s125 = sphi 0, %s125
      %s127 = sphi 0, %s125
      %s128 = sphi 0, %s127
      %s142 = sphi 0, %s128
      %s146 = sphi 0, %s146
      %s148 = sphi 0, %s146
      %s149 = sphi 0, %s148
      %s163 = sphi 0, %s149
      %s167 = sphi 0, %s167
      %s169 = sphi 0, %s167
      %s170 = sphi 0, %s169
      %s184 = sphi 0, %s170
      %s188 = sphi 0, %s188
      %s190 = sphi 0, %s188
      %s191 = sphi 0, %s190
      %s205 = sphi 0, %s191
      %s211 = sphi 0, %s213
      %s214 = sphi 0, %s211
      %s215 = sphi 0, %s214
      %s231 = sphi 0, %s215
    $region4: #{bottleneck_forward.1} parent=1 // loop_header_branch
      %26 = sbr.rel (%p24) target = $region8
    $region5: #{bottleneck_forward.1} parent=1 // loop_body
      %s28 = ssub.s32 %s23, 1
      %s29 = ssub.s32 %s23, 2
      %s30 = sadd.s32 %s23, 1
      %s31 = ssub.s32 %s23, %s30
      %p32 = scmp.eq.s32.totalorder %s31, 0
      %s34 = sadd.s32 %s33, 1
      %s35 = scalar_select %p32, %s33, %s34
      %p38 = pneg %p32
      %p39 = scmp.eq.s32.totalorder %s23, 1
      %p40 = por %p38, %p39
      %p41 = scmp.ne.s32.totalorder %s33, %s36
      %p42 = scmp.eq.s32.totalorder %s23, 0
      %p43 = por %p41, %p42
      %p44 = scmp.ne.s32.totalorder %s33, %s36
      %p45 = scmp.eq.s32.totalorder %s28, 1
      %p46 = por %p44, %p45
      %p47 = scmp.ne.s32.totalorder %s36, %s37
      %p48 = scmp.eq.s32.totalorder %s28, 0
      %p49 = por %p47, %p48
      %p50 = scmp.ne.s32.totalorder %s36, %s37
      %p51 = scmp.eq.s32.totalorder %s29, 1
      %p52 = por %p50, %p51
      %p54 = scmp.ne.s32.totalorder %s37, %s53
      %p55 = scmp.eq.s32.totalorder %s29, 0
      %p56 = por %p54, %p55
      %s57 = ssub.s32 %s23, %s30
      %p58 = scmp.eq.s32.totalorder %s57, 0
      %s60 = sadd.s32 %s59, 1
      %s61 = scalar_select %p58, %s59, %s60
      %p64 = pneg %p58
      %p65 = scmp.eq.s32.totalorder %s23, 1
      %p66 = por %p64, %p65
      %p67 = scmp.ne.s32.totalorder %s59, %s62
      %p68 = scmp.eq.s32.totalorder %s23, 0
      %p69 = por %p67, %p68
      %p70 = scmp.ne.s32.totalorder %s59, %s62
      %p71 = scmp.eq.s32.totalorder %s28, 1
      %p72 = por %p70, %p71
      %p73 = scmp.ne.s32.totalorder %s62, %s63
      %p74 = scmp.eq.s32.totalorder %s28, 0
      %p75 = por %p73, %p74
      %p76 = scmp.ne.s32.totalorder %s62, %s63
      %p77 = scmp.eq.s32.totalorder %s29, 1
      %p78 = por %p76, %p77
      %p80 = scmp.ne.s32.totalorder %s63, %s79
      %p81 = scmp.eq.s32.totalorder %s29, 0
      %p82 = por %p80, %p81
      %s84 = sadd.s32 %s83, 1
      %p87 = scmp.eq.s32.totalorder %s23, 1
      %p88 = scmp.ne.s32.totalorder %s83, %s85
      %p89 = scmp.eq.s32.totalorder %s23, 0
      %p90 = por %p88, %p89
      %p91 = scmp.ne.s32.totalorder %s83, %s85
      %p92 = scmp.eq.s32.totalorder %s28, 1
      %p93 = por %p91, %p92
      %p94 = scmp.ne.s32.totalorder %s85, %s86
      %p95 = scmp.eq.s32.totalorder %s28, 0
      %p96 = por %p94, %p95
      %p97 = scmp.ne.s32.totalorder %s85, %s86
      %p98 = scmp.eq.s32.totalorder %s29, 1
      %p99 = por %p97, %p98
      %p101 = scmp.ne.s32.totalorder %s86, %s100
      %p102 = scmp.eq.s32.totalorder %s29, 0
      %p103 = por %p101, %p102
      %s105 = sadd.s32 %s104, 1
      %p108 = scmp.eq.s32.totalorder %s23, 1
      %p109 = scmp.ne.s32.totalorder %s104, %s106
      %p110 = scmp.eq.s32.totalorder %s23, 0
      %p111 = por %p109, %p110
      %p112 = scmp.ne.s32.totalorder %s104, %s106
      %p113 = scmp.eq.s32.totalorder %s28, 1
      %p114 = por %p112, %p113
      %p115 = scmp.ne.s32.totalorder %s106, %s107
      %p116 = scmp.eq.s32.totalorder %s28, 0
      %p117 = por %p115, %p116
      %p118 = scmp.ne.s32.totalorder %s106, %s107
      %p119 = scmp.eq.s32.totalorder %s29, 1
      %p120 = por %p118, %p119
      %p122 = scmp.ne.s32.totalorder %s107, %s121
      %p123 = scmp.eq.s32.totalorder %s29, 0
      %p124 = por %p122, %p123
      %s126 = sadd.s32 %s125, 1
      %p129 = scmp.eq.s32.totalorder %s23, 1
      %p130 = scmp.ne.s32.totalorder %s125, %s127
      %p131 = scmp.eq.s32.totalorder %s23, 0
      %p132 = por %p130, %p131
      %p133 = scmp.ne.s32.totalorder %s125, %s127
      %p134 = scmp.eq.s32.totalorder %s28, 1
      %p135 = por %p133, %p134
      %p136 = scmp.ne.s32.totalorder %s127, %s128
      %p137 = scmp.eq.s32.totalorder %s28, 0
      %p138 = por %p136, %p137
      %p139 = scmp.ne.s32.totalorder %s127, %s128
      %p140 = scmp.eq.s32.totalorder %s29, 1
      %p141 = por %p139, %p140
      %p143 = scmp.ne.s32.totalorder %s128, %s142
      %p144 = scmp.eq.s32.totalorder %s29, 0
      %p145 = por %p143, %p144
      %s147 = sadd.s32 %s146, 1
      %p150 = scmp.eq.s32.totalorder %s23, 1
      %p151 = scmp.ne.s32.totalorder %s146, %s148
      %p152 = scmp.eq.s32.totalorder %s23, 0
      %p153 = por %p151, %p152
      %p154 = scmp.ne.s32.totalorder %s146, %s148
      %p155 = scmp.eq.s32.totalorder %s28, 1
      %p156 = por %p154, %p155
      %p157 = scmp.ne.s32.totalorder %s148, %s149
      %p158 = scmp.eq.s32.totalorder %s28, 0
      %p159 = por %p157, %p158
      %p160 = scmp.ne.s32.totalorder %s148, %s149
      %p161 = scmp.eq.s32.totalorder %s29, 1
      %p162 = por %p160, %p161
      %p164 = scmp.ne.s32.totalorder %s149, %s163
      %p165 = scmp.eq.s32.totalorder %s29, 0
      %p166 = por %p164, %p165
      %s168 = sadd.s32 %s167, 1
      %p171 = scmp.eq.s32.totalorder %s23, 1
      %p172 = scmp.ne.s32.totalorder %s167, %s169
      %p173 = scmp.eq.s32.totalorder %s23, 0
      %p174 = por %p172, %p173
      %p175 = scmp.ne.s32.totalorder %s167, %s169
      %p176 = scmp.eq.s32.totalorder %s28, 1
      %p177 = por %p175, %p176
      %p178 = scmp.ne.s32.totalorder %s169, %s170
      %p179 = scmp.eq.s32.totalorder %s28, 0
      %p180 = por %p178, %p179
      %p181 = scmp.ne.s32.totalorder %s169, %s170
      %p182 = scmp.eq.s32.totalorder %s29, 1
      %p183 = por %p181, %p182
      %p185 = scmp.ne.s32.totalorder %s170, %s184
      %p186 = scmp.eq.s32.totalorder %s29, 0
      %p187 = por %p185, %p186
      %s189 = sadd.s32 %s188, 1
      %p192 = scmp.eq.s32.totalorder %s23, 1
      %p193 = scmp.ne.s32.totalorder %s188, %s190
      %p194 = scmp.eq.s32.totalorder %s23, 0
      %p195 = por %p193, %p194
      %p196 = scmp.ne.s32.totalorder %s188, %s190
      %p197 = scmp.eq.s32.totalorder %s28, 1
      %p198 = por %p196, %p197
      %p199 = scmp.ne.s32.totalorder %s190, %s191
      %p200 = scmp.eq.s32.totalorder %s28, 0
      %p201 = por %p199, %p200
      %p202 = scmp.ne.s32.totalorder %s190, %s191
      %p203 = scmp.eq.s32.totalorder %s29, 1
      %p204 = por %p202, %p203
      %p206 = scmp.ne.s32.totalorder %s191, %s205
      %p207 = scmp.eq.s32.totalorder %s29, 0
      %p208 = por %p206, %p207
      %s209 = ssub.s32 %s23, %s30
      %p210 = scmp.eq.s32.totalorder %s209, 0
      %s212 = sadd.s32 %s211, 1
      %s213 = scalar_select %p210, %s211, %s212
      %p216 = pneg %p210
      %p217 = scmp.eq.s32.totalorder %s23, 1
      %p218 = por %p216, %p217
      %p219 = scmp.ne.s32.totalorder %s211, %s214
      %p220 = scmp.eq.s32.totalorder %s23, 0
      %p221 = por %p219, %p220
      %p222 = scmp.ne.s32.totalorder %s211, %s214
      %p223 = scmp.eq.s32.totalorder %s28, 1
      %p224 = por %p222, %p223
      %p225 = scmp.ne.s32.totalorder %s214, %s215
      %p226 = scmp.eq.s32.totalorder %s28, 0
      %p227 = por %p225, %p226
      %p228 = scmp.ne.s32.totalorder %s214, %s215
      %p229 = scmp.eq.s32.totalorder %s29, 1
      %p230 = por %p228, %p229
      %p232 = scmp.ne.s32.totalorder %s215, %s231
      %p233 = scmp.eq.s32.totalorder %s29, 0
      %p234 = por %p232, %p233
      %p235 = scmp.le.s32.totalorder 1, %s23
      %p236 = scmp.lt.s32.totalorder %s23, 3
      %p237 = pnand %p235, %p236
      %p238 = pneg %p237
      // Predicated region
      $region9: #{bottleneck_forward.1} parent=5 // pred_check
        _
      $region10: #{bottleneck_forward.1} parent=5 // pred_check_branch
        %240 = sbr.rel (%p237) target = $region12
      $region11: #{bottleneck_forward.1} parent=5 // pred_region
        %s241 = ssub.s32 %s23, 1
        // Predicated region
        $region13: #{bottleneck_forward.1} parent=11 // pred_check
          %p242 = pneg %p96
        $region14: #{bottleneck_forward.1} parent=11 // pred_check_branch
          %244 = sbr.rel (%p242) target = $region16
        $region15: #{bottleneck_forward.1} parent=11 // pred_region
          _
        $region16: #{bottleneck_forward.1} parent=11 // pred_fallthru
          _
        // Predicated region
        $region17: #{bottleneck_forward.1} parent=11 // pred_check
          %p245 = pneg %p117
        $region18: #{bottleneck_forward.1} parent=11 // pred_check_branch
          %247 = sbr.rel (%p245) target = $region20
        $region19: #{bottleneck_forward.1} parent=11 // pred_region
          _
        $region20: #{bottleneck_forward.1} parent=11 // pred_fallthru
          _
        // Predicated region
        $region21: #{bottleneck_forward.1} parent=11 // pred_check
          %p248 = pneg %p138
        $region22: #{bottleneck_forward.1} parent=11 // pred_check_branch
          %250 = sbr.rel (%p248) target = $region24
        $region23: #{bottleneck_forward.1} parent=11 // pred_region
          _
        $region24: #{bottleneck_forward.1} parent=11 // pred_fallthru
          _
        // Predicated region
        $region25: #{bottleneck_forward.1} parent=11 // pred_check
          %p251 = pneg %p159
        $region26: #{bottleneck_forward.1} parent=11 // pred_check_branch
          %253 = sbr.rel (%p251) target = $region28
        $region27: #{bottleneck_forward.1} parent=11 // pred_region
          _
        $region28: #{bottleneck_forward.1} parent=11 // pred_fallthru
          _
        // Predicated region
        $region29: #{bottleneck_forward.1} parent=11 // pred_check
          %p254 = pneg %p180
        $region30: #{bottleneck_forward.1} parent=11 // pred_check_branch
          %256 = sbr.rel (%p254) target = $region32
        $region31: #{bottleneck_forward.1} parent=11 // pred_region
          _
        $region32: #{bottleneck_forward.1} parent=11 // pred_fallthru
          _
        // Predicated region
        $region33: #{bottleneck_forward.1} parent=11 // pred_check
          %p257 = pneg %p201
        $region34: #{bottleneck_forward.1} parent=11 // pred_check_branch
          %259 = sbr.rel (%p257) target = $region36
        $region35: #{bottleneck_forward.1} parent=11 // pred_region
          _
        $region36: #{bottleneck_forward.1} parent=11 // pred_fallthru
          _
      $region12: #{bottleneck_forward.1} parent=5 // pred_fallthru
        _
      %p260 = scmp.lt.s32.totalorder %s23, 2
      // Predicated region
      $region37: #{bottleneck_forward.1} parent=5 // pred_check
        %p261 = pneg %p260
      $region38: #{bottleneck_forward.1} parent=5 // pred_check_branch
        %263 = sbr.rel (%p261) target = $region40
      $region39: #{bottleneck_forward.1} parent=5 // pred_region
        // Predicated region
        $region41: #{bottleneck_forward.1} parent=39 // pred_check
          %p264 = pneg %p43
        $region42: #{bottleneck_forward.1} parent=39 // pred_check_branch
          %266 = sbr.rel (%p264) target = $region44
        $region43: #{bottleneck_forward.1} parent=39 // pred_region
          %s267 = sand.u32 %s33, 1
          %s268 = scalar_lea.sflag [#allocation5], %s267
          %s269 = sand.u32 %s33, 1
          %s270 = smul.addr %s269, 256
          %s271 = scalar_lea.vmem [#allocation4], %s270
          %s273 = ssub.s32 4096, 4096
          %274 = vsyncadd %s268, %s273
          %s275 = smul.addr %s23, 32
          %s276 = smul.addr %s275, 128
          %s277 = scalar_lea.hbm %s0, %s276
          %s278 = sshll.u32 %s271, 4
          %s279 = int_to_ptr.vmem [resolvable:$true] %s278
          %284 = dma.hbm_to_vmem [thread:$0]  %s277, 4096, %s279, %s268, 128, 128, 8
        $region44: #{bottleneck_forward.1} parent=39 // pred_fallthru
          _
        // Predicated region
        $region45: #{bottleneck_forward.1} parent=39 // pred_check
          %p285 = pneg %p69
        $region46: #{bottleneck_forward.1} parent=39 // pred_check_branch
          %287 = sbr.rel (%p285) target = $region48
        $region47: #{bottleneck_forward.1} parent=39 // pred_region
          %s288 = sand.u32 %s59, 1
          %s289 = scalar_lea.sflag [#allocation8], %s288
          %s290 = sand.u32 %s59, 1
          %s291 = smul.addr %s290, 256
          %s292 = scalar_lea.vmem [#allocation7], %s291
          %s294 = ssub.s32 4096, 4096
          %295 = vsyncadd %s289, %s294
          %s296 = smul.addr %s23, 32
          %s297 = smul.addr %s296, 128
          %s298 = scalar_lea.hbm %s1, %s297
          %s299 = sshll.u32 %s292, 4
          %s300 = int_to_ptr.vmem [resolvable:$true] %s299
          %305 = dma.hbm_to_vmem [thread:$0]  %s298, 4096, %s300, %s289, 128, 128, 8
        $region48: #{bottleneck_forward.1} parent=39 // pred_fallthru
          _
      $region40: #{bottleneck_forward.1} parent=5 // pred_fallthru
        _
      %p306 = scmp.le.s32.totalorder 1, %s23
      %p307 = scmp.lt.s32.totalorder %s23, 3
      %p308 = pnand %p306, %p307
      %p309 = pneg %p308
      // Predicated region
      $region49: #{bottleneck_forward.1} parent=5 // pred_check
        _
      $region50: #{bottleneck_forward.1} parent=5 // pred_check_branch
        %311 = sbr.rel (%p308) target = $region52
      $region51: #{bottleneck_forward.1} parent=5 // pred_region
        %s312 = ssub.s32 %s23, 1
        %s313 = sand.u32 %s36, 1
        %s314 = scalar_lea.sflag [#allocation5], %s313
        %s315 = sand.u32 %s36, 1
        %s316 = smul.addr %s315, 256
        %s317 = scalar_lea.vmem [#allocation4], %s316
        // Predicated region
        $region53: #{bottleneck_forward.1} parent=51 // pred_check
          %p318 = pneg %p49
        $region54: #{bottleneck_forward.1} parent=51 // pred_check_branch
          %320 = sbr.rel (%p318) target = $region56
        $region55: #{bottleneck_forward.1} parent=51 // pred_region
          %321 = dma.done %s314, 4096
        $region56: #{bottleneck_forward.1} parent=51 // pred_fallthru
          _
        %s322 = sand.u32 %s62, 1
        %s323 = scalar_lea.sflag [#allocation8], %s322
        %s324 = sand.u32 %s62, 1
        %s325 = smul.addr %s324, 256
        %s326 = scalar_lea.vmem [#allocation7], %s325
        // Predicated region
        $region57: #{bottleneck_forward.1} parent=51 // pred_check
          %p327 = pneg %p75
        $region58: #{bottleneck_forward.1} parent=51 // pred_check_branch
          %329 = sbr.rel (%p327) target = $region60
        $region59: #{bottleneck_forward.1} parent=51 // pred_region
          %330 = dma.done %s323, 4096
        $region60: #{bottleneck_forward.1} parent=51 // pred_fallthru
          _
        %s331 = sand.u32 %s36, 1
        %s332 = scalar_lea.sflag [#allocation5], %s331
        %s333 = sand.u32 %s36, 1
        %s334 = smul.addr %s333, 256
        %s335 = scalar_lea.vmem [#allocation4], %s334
        %p336 = pneg %p49
        %p337 = pneg %p46
        %s338 = sand.u32 %s62, 1
        %s339 = scalar_lea.sflag [#allocation8], %s338
        %s340 = sand.u32 %s62, 1
        %s341 = smul.addr %s340, 256
        %s342 = scalar_lea.vmem [#allocation7], %s341
        %p343 = pneg %p75
        %p344 = pneg %p72
        %p345 = pneg %p96
        %p346 = pneg %p93
        %p347 = pneg %p117
        %p348 = pneg %p114
        %p349 = pneg %p138
        %p350 = pneg %p135
        %p351 = pneg %p159
        %p352 = pneg %p156
        %p353 = pneg %p180
        %p354 = pneg %p177
        %p355 = pneg %p201
        %p356 = pneg %p198
        %p357 = pneg %p227
        %p358 = pneg %p224
        %s359 = sand.u32 %s214, 1
        %s360 = scalar_lea.sflag [#allocation6], %s359
        %s361 = sand.u32 %s214, 1
        %s362 = smul.addr %s361, 256
        %s363 = scalar_lea.vmem [#allocation9], %s362
        %v364 = vld [vmem:[%s317] sm:$0xff]
        %v365 = vld [vmem:[%s317 + $0x8] sm:$0xff]
        %v366 = vld [vmem:[%s317 + $0x10] sm:$0xff]
        %v367 = vld [vmem:[%s317 + $0x18] sm:$0xff]
        %v368 = vld [vmem:[%s317 + $0x20] sm:$0xff]
        %v369 = vld [vmem:[%s317 + $0x28] sm:$0xff]
        %v370 = vld [vmem:[%s317 + $0x30] sm:$0xff]
        %v371 = vld [vmem:[%s317 + $0x38] sm:$0xff]
        %v372 = vld [vmem:[%s317 + $0x40] sm:$0xff]
        %v373 = vld [vmem:[%s317 + $0x48] sm:$0xff]
        %v374 = vld [vmem:[%s317 + $0x50] sm:$0xff]
        %v375 = vld [vmem:[%s317 + $0x58] sm:$0xff]
        %v376 = vld [vmem:[%s317 + $0x60] sm:$0xff]
        %v377 = vld [vmem:[%s317 + $0x68] sm:$0xff]
        %v378 = vld [vmem:[%s317 + $0x70] sm:$0xff]
        %v379 = vld [vmem:[%s317 + $0x78] sm:$0xff]
        %v380 = vld [vmem:[%s317 + $0x80] sm:$0xff]
        %v381 = vld [vmem:[%s317 + $0x88] sm:$0xff]
        %v382 = vld [vmem:[%s317 + $0x90] sm:$0xff]
        %v383 = vld [vmem:[%s317 + $0x98] sm:$0xff]
        %v384 = vld [vmem:[%s317 + $0xa0] sm:$0xff]
        %v385 = vld [vmem:[%s317 + $0xa8] sm:$0xff]
        %v386 = vld [vmem:[%s317 + $0xb0] sm:$0xff]
        %v387 = vld [vmem:[%s317 + $0xb8] sm:$0xff]
        %v388 = vld [vmem:[%s317 + $0xc0] sm:$0xff]
        %v389 = vld [vmem:[%s317 + $0xc8] sm:$0xff]
        %v390 = vld [vmem:[%s317 + $0xd0] sm:$0xff]
        %v391 = vld [vmem:[%s317 + $0xd8] sm:$0xff]
        %v392 = vld [vmem:[%s317 + $0xe0] sm:$0xff]
        %v393 = vld [vmem:[%s317 + $0xe8] sm:$0xff]
        %v394 = vld [vmem:[%s317 + $0xf0] sm:$0xff]
        %v395 = vld [vmem:[%s317 + $0xf8] sm:$0xff]
        %v396 = vld [vmem:[%s326] sm:$0xff]
        %v397 = vld [vmem:[%s326 + $0x8] sm:$0xff]
        %v398 = vld [vmem:[%s326 + $0x10] sm:$0xff]
        %v399 = vld [vmem:[%s326 + $0x18] sm:$0xff]
        %v400 = vld [vmem:[%s326 + $0x20] sm:$0xff]
        %v401 = vld [vmem:[%s326 + $0x28] sm:$0xff]
        %v402 = vld [vmem:[%s326 + $0x30] sm:$0xff]
        %v403 = vld [vmem:[%s326 + $0x38] sm:$0xff]
        %v404 = vld [vmem:[%s326 + $0x40] sm:$0xff]
        %v405 = vld [vmem:[%s326 + $0x48] sm:$0xff]
        %v406 = vld [vmem:[%s326 + $0x50] sm:$0xff]
        %v407 = vld [vmem:[%s326 + $0x58] sm:$0xff]
        %v408 = vld [vmem:[%s326 + $0x60] sm:$0xff]
        %v409 = vld [vmem:[%s326 + $0x68] sm:$0xff]
        %v410 = vld [vmem:[%s326 + $0x70] sm:$0xff]
        %v411 = vld [vmem:[%s326 + $0x78] sm:$0xff]
        %v412 = vld [vmem:[%s326 + $0x80] sm:$0xff]
        %v413 = vld [vmem:[%s326 + $0x88] sm:$0xff]
        %v414 = vld [vmem:[%s326 + $0x90] sm:$0xff]
        %v415 = vld [vmem:[%s326 + $0x98] sm:$0xff]
        %v416 = vld [vmem:[%s326 + $0xa0] sm:$0xff]
        %v417 = vld [vmem:[%s326 + $0xa8] sm:$0xff]
        %v418 = vld [vmem:[%s326 + $0xb0] sm:$0xff]
        %v419 = vld [vmem:[%s326 + $0xb8] sm:$0xff]
        %v420 = vld [vmem:[%s326 + $0xc0] sm:$0xff]
        %v421 = vld [vmem:[%s326 + $0xc8] sm:$0xff]
        %v422 = vld [vmem:[%s326 + $0xd0] sm:$0xff]
        %v423 = vld [vmem:[%s326 + $0xd8] sm:$0xff]
        %v424 = vld [vmem:[%s326 + $0xe0] sm:$0xff]
        %v425 = vld [vmem:[%s326 + $0xe8] sm:$0xff]
        %v426 = vld [vmem:[%s326 + $0xf0] sm:$0xff]
        %v427 = vld [vmem:[%s326 + $0xf8] sm:$0xff]
        %v428 = vmax.f32 %v396, 0.0
        %v429 = vmax.f32 %v397, 0.0
        %v430 = vmax.f32 %v398, 0.0
        %v431 = vmax.f32 %v399, 0.0
        %v432 = vmax.f32 %v400, 0.0
        %v433 = vmax.f32 %v401, 0.0
        %v434 = vmax.f32 %v402, 0.0
        %v435 = vmax.f32 %v403, 0.0
        %v436 = vmax.f32 %v404, 0.0
        %v437 = vmax.f32 %v405, 0.0
        %v438 = vmax.f32 %v406, 0.0
        %v439 = vmax.f32 %v407, 0.0
        %v440 = vmax.f32 %v408, 0.0
        %v441 = vmax.f32 %v409, 0.0
        %v442 = vmax.f32 %v410, 0.0
        %v443 = vmax.f32 %v411, 0.0
        %v444 = vmax.f32 %v412, 0.0
        %v445 = vmax.f32 %v413, 0.0
        %v446 = vmax.f32 %v414, 0.0
        %v447 = vmax.f32 %v415, 0.0
        %v448 = vmax.f32 %v416, 0.0
        %v449 = vmax.f32 %v417, 0.0
        %v450 = vmax.f32 %v418, 0.0
        %v451 = vmax.f32 %v419, 0.0
        %v452 = vmax.f32 %v420, 0.0
        %v453 = vmax.f32 %v421, 0.0
        %v454 = vmax.f32 %v422, 0.0
        %v455 = vmax.f32 %v423, 0.0
        %v456 = vmax.f32 %v424, 0.0
        %v457 = vmax.f32 %v425, 0.0
        %v458 = vmax.f32 %v426, 0.0
        %v459 = vmax.f32 %v427, 0.0
        %v460 = vmul.f32 %v364, %v428
        %v461 = vmul.f32 %v365, %v429
        %v462 = vmul.f32 %v366, %v430
        %v463 = vmul.f32 %v367, %v431
        %v464 = vmul.f32 %v368, %v432
        %v465 = vmul.f32 %v369, %v433
        %v466 = vmul.f32 %v370, %v434
        %v467 = vmul.f32 %v371, %v435
        %v468 = vmul.f32 %v372, %v436
        %v469 = vmul.f32 %v373, %v437
        %v470 = vmul.f32 %v374, %v438
        %v471 = vmul.f32 %v375, %v439
        %v472 = vmul.f32 %v376, %v440
        %v473 = vmul.f32 %v377, %v441
        %v474 = vmul.f32 %v378, %v442
        %v475 = vmul.f32 %v379, %v443
        %v476 = vmul.f32 %v380, %v444
        %v477 = vmul.f32 %v381, %v445
        %v478 = vmul.f32 %v382, %v446
        %v479 = vmul.f32 %v383, %v447
        %v480 = vmul.f32 %v384, %v448
        %v481 = vmul.f32 %v385, %v449
        %v482 = vmul.f32 %v386, %v450
        %v483 = vmul.f32 %v387, %v451
        %v484 = vmul.f32 %v388, %v452
        %v485 = vmul.f32 %v389, %v453
        %v486 = vmul.f32 %v390, %v454
        %v487 = vmul.f32 %v391, %v455
        %v488 = vmul.f32 %v392, %v456
        %v489 = vmul.f32 %v393, %v457
        %v490 = vmul.f32 %v394, %v458
        %v491 = vmul.f32 %v395, %v459
        %v492 = vld [vmem:[%s2] sm:$0xff]
        %v493 = vld [vmem:[%s2 + $0x8] sm:$0xff]
        %v494 = vld [vmem:[%s2 + $0x10] sm:$0xff]
        %v495 = vld [vmem:[%s2 + $0x18] sm:$0xff]
        %v496 = vld [vmem:[%s3] sm:$0x1]
        %v498 = vlaneseq
        %v499 = vshrl.u32 %v498, 7
        %v500 = vsub.s32 0, %v499
        %v501 = vrot.slane %v496, %v500
        %vm503 = vcmask 261120
        %v505 = vsel %vm503, %v460, 0
        %v508 = vsel %vm503, %v461, 0
        %v511 = vsel %vm503, %v462, 0
        %v514 = vsel %vm503, %v463, 0
        %v517 = vsel %vm503, %v464, 0
        %v520 = vsel %vm503, %v465, 0
        %v523 = vsel %vm503, %v466, 0
        %v526 = vsel %vm503, %v467, 0
        %v529 = vsel %vm503, %v468, 0
        %v532 = vsel %vm503, %v469, 0
        %v535 = vsel %vm503, %v470, 0
        %v538 = vsel %vm503, %v471, 0
        %v541 = vsel %vm503, %v472, 0
        %v544 = vsel %vm503, %v473, 0
        %v547 = vsel %vm503, %v474, 0
        %v550 = vsel %vm503, %v475, 0
        %v553 = vsel %vm503, %v476, 0
        %v556 = vsel %vm503, %v477, 0
        %v559 = vsel %vm503, %v478, 0
        %v562 = vsel %vm503, %v479, 0
        %v565 = vsel %vm503, %v480, 0
        %v568 = vsel %vm503, %v481, 0
        %v571 = vsel %vm503, %v482, 0
        %v574 = vsel %vm503, %v483, 0
        %v577 = vsel %vm503, %v484, 0
        %v580 = vsel %vm503, %v485, 0
        %v583 = vsel %vm503, %v486, 0
        %v586 = vsel %vm503, %v487, 0
        %v589 = vsel %vm503, %v488, 0
        %v592 = vsel %vm503, %v489, 0
        %v595 = vsel %vm503, %v490, 0
        %v598 = vsel %vm503, %v491, 0
        %600 = vmatprep.subr.mxu0 0.0
        %601 = vmatpush1.msra.mxu0 %v492
        %602 = vmatprep.subr.mxu0 0.0
        %603 = vmatpush1.msra.mxu0 %v493
        %604 = vmatprep.subr.mxu0 0.0
        %605 = vmatpush1.msra.mxu0 %v494
        %606 = vmatprep.subr.mxu0 0.0
        %607 = vmatpush1.msra.mxu0 %v495
        %608 = vmatprep.subr.mxu0 0.0
        %609 = vmatpush1.msra.mxu0 0.0
        %610 = vmatprep.subr.mxu0 0.0
        %611 = vmatpush1.msra.mxu0 0.0
        %612 = vmatprep.subr.mxu0 0.0
        %613 = vmatpush1.msra.mxu0 0.0
        %614 = vmatprep.subr.mxu0 0.0
        %615 = vmatpush1.msra.mxu0 0.0
        %616 = vmatprep.subr.mxu0 0.0
        %617 = vmatpush1.msra.mxu0 0.0
        %618 = vmatprep.subr.mxu0 0.0
        %619 = vmatpush1.msra.mxu0 0.0
        %620 = vmatprep.subr.mxu0 0.0
        %621 = vmatpush1.msra.mxu0 0.0
        %622 = vmatprep.subr.mxu0 0.0
        %623 = vmatpush1.msra.mxu0 0.0
        %624 = vmatprep.subr.mxu0 0.0
        %625 = vmatpush1.msra.mxu0 0.0
        %626 = vmatprep.subr.mxu0 0.0
        %627 = vmatpush1.msra.mxu0 0.0
        %628 = vmatprep.subr.mxu0 0.0
        %629 = vmatpush1.msra.mxu0 0.0
        %630 = vmatprep.subr.mxu0 0.0
        %631 = vmatpush1.msra.mxu0 0.0
        %632 = vmatprep.subr.mxu0 0.0
        %633 = vmatpush1.msra.mxu0 0.0
        %634 = vmatprep.subr.mxu0 0.0
        %635 = vmatpush1.msra.mxu0 0.0
        %636 = vmatprep.subr.mxu0 0.0
        %637 = vmatpush1.msra.mxu0 0.0
        %638 = vmatprep.subr.mxu0 0.0
        %639 = vmatpush1.msra.mxu0 0.0
        %640 = vmatprep.subr.mxu0 0.0
        %641 = vmatpush1.msra.mxu0 0.0
        %642 = vmatprep.subr.mxu0 0.0
        %643 = vmatpush1.msra.mxu0 0.0
        %644 = vmatprep.subr.mxu0 0.0
        %645 = vmatpush1.msra.mxu0 0.0
        %646 = vmatprep.subr.mxu0 0.0
        %647 = vmatpush1.msra.mxu0 0.0
        %648 = vmatprep.subr.mxu0 0.0
        %649 = vmatpush1.msra.mxu0 0.0
        %650 = vmatprep.subr.mxu0 0.0
        %651 = vmatpush1.msra.mxu0 0.0
        %652 = vmatprep.subr.mxu0 0.0
        %653 = vmatpush1.msra.mxu0 0.0
        %654 = vmatprep.subr.mxu0 0.0
        %655 = vmatpush1.msra.mxu0 0.0
        %656 = vmatprep.subr.mxu0 0.0
        %657 = vmatpush1.msra.mxu0 0.0
        %658 = vmatprep.subr.mxu0 0.0
        %659 = vmatpush1.msra.mxu0 0.0
        %660 = vmatprep.subr.mxu0 0.0
        %661 = vmatpush1.msra.mxu0 0.0
        %662 = vmatprep.subr.mxu0 0.0
        %663 = vmatpush1.msra.mxu0 0.0
        %664 = vmatprep.mubr.f32.mxu0 0.0
        %665 = vmatmul.mubr.f32.gmra.mrb[0].mxu0 %v505
        %v666 = vpop.f32.mrb[0].mxu0
        %v667 = vadd.f32 %v501, %v666
        %v668 = vpop.f32.mrb[0].mxu0
        %669 = vmatprep.mubr.f32.mxu0 0.0
        %670 = vmatmul.mubr.f32.gmra.mrb[0].mxu0 %v508
        %v671 = vpop.f32.mrb[0].mxu0
        %v672 = vadd.f32 %v501, %v671
        %v673 = vpop.f32.mrb[0].mxu0
        %674 = vmatprep.mubr.f32.mxu0 0.0
        %675 = vmatmul.mubr.f32.gmra.mrb[0].mxu0 %v511
        %v676 = vpop.f32.mrb[0].mxu0
        %v677 = vadd.f32 %v501, %v676
        %v678 = vpop.f32.mrb[0].mxu0
        %679 = vmatprep.mubr.f32.mxu0 0.0
        %680 = vmatmul.mubr.f32.gmra.mrb[0].mxu0 %v514
        %v681 = vpop.f32.mrb[0].mxu0
        %v682 = vadd.f32 %v501, %v681
        %v683 = vpop.f32.mrb[0].mxu0
        %684 = vmatprep.mubr.f32.mxu0 0.0
        %685 = vmatmul.mubr.f32.gmra.mrb[0].mxu0 %v517
        %v686 = vpop.f32.mrb[0].mxu0
        %v687 = vadd.f32 %v501, %v686
        %v688 = vpop.f32.mrb[0].mxu0
        %689 = vmatprep.mubr.f32.mxu0 0.0
        %690 = vmatmul.mubr.f32.gmra.mrb[0].mxu0 %v520
        %v691 = vpop.f32.mrb[0].mxu0
        %v692 = vadd.f32 %v501, %v691
        %v693 = vpop.f32.mrb[0].mxu0
        %694 = vmatprep.mubr.f32.mxu0 0.0
        %695 = vmatmul.mubr.f32.gmra.mrb[0].mxu0 %v523
        %v696 = vpop.f32.mrb[0].mxu0
        %v697 = vadd.f32 %v501, %v696
        %v698 = vpop.f32.mrb[0].mxu0
        %699 = vmatprep.mubr.f32.mxu0 0.0
        %700 = vmatmul.mubr.f32.gmra.mrb[0].mxu0 %v526
        %v701 = vpop.f32.mrb[0].mxu0
        %v702 = vadd.f32 %v501, %v701
        %v703 = vpop.f32.mrb[0].mxu0
        %704 = vmatprep.mubr.f32.mxu0 0.0
        %705 = vmatmul.mubr.f32.gmra.mrb[0].mxu0 %v529
        %v706 = vpop.f32.mrb[0].mxu0
        %v707 = vadd.f32 %v501, %v706
        %v708 = vpop.f32.mrb[0].mxu0
        %709 = vmatprep.mubr.f32.mxu0 0.0
        %710 = vmatmul.mubr.f32.gmra.mrb[0].mxu0 %v532
        %v711 = vpop.f32.mrb[0].mxu0
        %v712 = vadd.f32 %v501, %v711
        %v713 = vpop.f32.mrb[0].mxu0
        %714 = vmatprep.mubr.f32.mxu0 0.0
        %715 = vmatmul.mubr.f32.gmra.mrb[0].mxu0 %v535
        %v716 = vpop.f32.mrb[0].mxu0
        %v717 = vadd.f32 %v501, %v716
        %v718 = vpop.f32.mrb[0].mxu0
        %719 = vmatprep.mubr.f32.mxu0 0.0
        %720 = vmatmul.mubr.f32.gmra.mrb[0].mxu0 %v538
        %v721 = vpop.f32.mrb[0].mxu0
        %v722 = vadd.f32 %v501, %v721
        %v723 = vpop.f32.mrb[0].mxu0
        %724 = vmatprep.mubr.f32.mxu0 0.0
        %725 = vmatmul.mubr.f32.gmra.mrb[0].mxu0 %v541
        %v726 = vpop.f32.mrb[0].mxu0
        %v727 = vadd.f32 %v501, %v726
        %v728 = vpop.f32.mrb[0].mxu0
        %729 = vmatprep.mubr.f32.mxu0 0.0
        %730 = vmatmul.mubr.f32.gmra.mrb[0].mxu0 %v544
        %v731 = vpop.f32.mrb[0].mxu0
        %v732 = vadd.f32 %v501, %v731
        %v733 = vpop.f32.mrb[0].mxu0
        %734 = vmatprep.mubr.f32.mxu0 0.0
        %735 = vmatmul.mubr.f32.gmra.mrb[0].mxu0 %v547
        %v736 = vpop.f32.mrb[0].mxu0
        %v737 = vadd.f32 %v501, %v736
        %v738 = vpop.f32.mrb[0].mxu0
        %739 = vmatprep.mubr.f32.mxu0 0.0
        %740 = vmatmul.mubr.f32.gmra.mrb[0].mxu0 %v550
        %v741 = vpop.f32.mrb[0].mxu0
        %v742 = vadd.f32 %v501, %v741
        %v743 = vpop.f32.mrb[0].mxu0
        %744 = vmatprep.mubr.f32.mxu0 0.0
        %745 = vmatmul.mubr.f32.gmra.mrb[0].mxu0 %v553
        %v746 = vpop.f32.mrb[0].mxu0
        %v747 = vadd.f32 %v501, %v746
        %v748 = vpop.f32.mrb[0].mxu0
        %749 = vmatprep.mubr.f32.mxu0 0.0
        %750 = vmatmul.mubr.f32.gmra.mrb[0].mxu0 %v556
        %v751 = vpop.f32.mrb[0].mxu0
        %v752 = vadd.f32 %v501, %v751
        %v753 = vpop.f32.mrb[0].mxu0
        %754 = vmatprep.mubr.f32.mxu0 0.0
        %755 = vmatmul.mubr.f32.gmra.mrb[0].mxu0 %v559
        %v756 = vpop.f32.mrb[0].mxu0
        %v757 = vadd.f32 %v501, %v756
        %v758 = vpop.f32.mrb[0].mxu0
        %759 = vmatprep.mubr.f32.mxu0 0.0
        %760 = vmatmul.mubr.f32.gmra.mrb[0].mxu0 %v562
        %v761 = vpop.f32.mrb[0].mxu0
        %v762 = vadd.f32 %v501, %v761
        %v763 = vpop.f32.mrb[0].mxu0
        %764 = vmatprep.mubr.f32.mxu0 0.0
        %765 = vmatmul.mubr.f32.gmra.mrb[0].mxu0 %v565
        %v766 = vpop.f32.mrb[0].mxu0
        %v767 = vadd.f32 %v501, %v766
        %v768 = vpop.f32.mrb[0].mxu0
        %769 = vmatprep.mubr.f32.mxu0 0.0
        %770 = vmatmul.mubr.f32.gmra.mrb[0].mxu0 %v568
        %v771 = vpop.f32.mrb[0].mxu0
        %v772 = vadd.f32 %v501, %v771
        %v773 = vpop.f32.mrb[0].mxu0
        %774 = vmatprep.mubr.f32.mxu0 0.0
        %775 = vmatmul.mubr.f32.gmra.mrb[0].mxu0 %v571
        %v776 = vpop.f32.mrb[0].mxu0
        %v777 = vadd.f32 %v501, %v776
        %v778 = vpop.f32.mrb[0].mxu0
        %779 = vmatprep.mubr.f32.mxu0 0.0
        %780 = vmatmul.mubr.f32.gmra.mrb[0].mxu0 %v574
        %v781 = vpop.f32.mrb[0].mxu0
        %v782 = vadd.f32 %v501, %v781
        %v783 = vpop.f32.mrb[0].mxu0
        %784 = vmatprep.mubr.f32.mxu0 0.0
        %785 = vmatmul.mubr.f32.gmra.mrb[0].mxu0 %v577
        %v786 = vpop.f32.mrb[0].mxu0
        %v787 = vadd.f32 %v501, %v786
        %v788 = vpop.f32.mrb[0].mxu0
        %789 = vmatprep.mubr.f32.mxu0 0.0
        %790 = vmatmul.mubr.f32.gmra.mrb[0].mxu0 %v580
        %v791 = vpop.f32.mrb[0].mxu0
        %v792 = vadd.f32 %v501, %v791
        %v793 = vpop.f32.mrb[0].mxu0
        %794 = vmatprep.mubr.f32.mxu0 0.0
        %795 = vmatmul.mubr.f32.gmra.mrb[0].mxu0 %v583
        %v796 = vpop.f32.mrb[0].mxu0
        %v797 = vadd.f32 %v501, %v796
        %v798 = vpop.f32.mrb[0].mxu0
        %799 = vmatprep.mubr.f32.mxu0 0.0
        %800 = vmatmul.mubr.f32.gmra.mrb[0].mxu0 %v586
        %v801 = vpop.f32.mrb[0].mxu0
        %v802 = vadd.f32 %v501, %v801
        %v803 = vpop.f32.mrb[0].mxu0
        %804 = vmatprep.mubr.f32.mxu0 0.0
        %805 = vmatmul.mubr.f32.gmra.mrb[0].mxu0 %v589
        %v806 = vpop.f32.mrb[0].mxu0
        %v807 = vadd.f32 %v501, %v806
        %v808 = vpop.f32.mrb[0].mxu0
        %809 = vmatprep.mubr.f32.mxu0 0.0
        %810 = vmatmul.mubr.f32.gmra.mrb[0].mxu0 %v592
        %v811 = vpop.f32.mrb[0].mxu0
        %v812 = vadd.f32 %v501, %v811
        %v813 = vpop.f32.mrb[0].mxu0
        %814 = vmatprep.mubr.f32.mxu0 0.0
        %815 = vmatmul.mubr.f32.gmra.mrb[0].mxu0 %v595
        %v816 = vpop.f32.mrb[0].mxu0
        %v817 = vadd.f32 %v501, %v816
        %v818 = vpop.f32.mrb[0].mxu0
        %819 = vmatprep.mubr.f32.mxu0 0.0
        %820 = vmatmul.mubr.f32.gmra.mrb[0].mxu0 %v598
        %v821 = vpop.f32.mrb[0].mxu0
        %v822 = vadd.f32 %v501, %v821
        %v823 = vpop.f32.mrb[0].mxu0
        %824 = vdwg.mxu0
        %v825 = vmax.f32 %v667, 0.0
        %v826 = vmax.f32 %v672, 0.0
        %v827 = vmax.f32 %v677, 0.0
        %v828 = vmax.f32 %v682, 0.0
        %v829 = vmax.f32 %v687, 0.0
        %v830 = vmax.f32 %v692, 0.0
        %v831 = vmax.f32 %v697, 0.0
        %v832 = vmax.f32 %v702, 0.0
        %v833 = vmax.f32 %v707, 0.0
        %v834 = vmax.f32 %v712, 0.0
        %v835 = vmax.f32 %v717, 0.0
        %v836 = vmax.f32 %v722, 0.0
        %v837 = vmax.f32 %v727, 0.0
        %v838 = vmax.f32 %v732, 0.0
        %v839 = vmax.f32 %v737, 0.0
        %v840 = vmax.f32 %v742, 0.0
        %v841 = vmax.f32 %v747, 0.0
        %v842 = vmax.f32 %v752, 0.0
        %v843 = vmax.f32 %v757, 0.0
        %v844 = vmax.f32 %v762, 0.0
        %v845 = vmax.f32 %v767, 0.0
        %v846 = vmax.f32 %v772, 0.0
        %v847 = vmax.f32 %v777, 0.0
        %v848 = vmax.f32 %v782, 0.0
        %v849 = vmax.f32 %v787, 0.0
        %v850 = vmax.f32 %v792, 0.0
        %v851 = vmax.f32 %v797, 0.0
        %v852 = vmax.f32 %v802, 0.0
        %v853 = vmax.f32 %v807, 0.0
        %v854 = vmax.f32 %v812, 0.0
        %v855 = vmax.f32 %v817, 0.0
        %v856 = vmax.f32 %v822, 0.0
        %vm857 = vcmask 64512
        %858 = vst.msk [vmem:[#allocation2] sm:$0xff] %vm857, 0.0
        %859 = vst.msk [vmem:[#allocation2 + $0x8] sm:$0xff] %vm857, 0.0
        %vm860 = vcmask 58368
        %861 = vst.msk [vmem:[#allocation2 + $0x10] sm:$0x3] %vm860, 0.0
        %862 = vst.msk [vmem:[#allocation2 + $0x18] sm:$0xff] %vm857, 0.0
        %863 = vst.msk [vmem:[#allocation2 + $0x20] sm:$0xff] %vm857, 0.0
        %864 = vst.msk [vmem:[#allocation2 + $0x28] sm:$0x3] %vm860, 0.0
        %865 = vst.msk [vmem:[#allocation2 + $0x30] sm:$0xff] %vm857, 0.0
        %866 = vst.msk [vmem:[#allocation2 + $0x38] sm:$0xff] %vm857, 0.0
        %867 = vst.msk [vmem:[#allocation2 + $0x40] sm:$0x3] %vm860, 0.0
        %868 = vst.msk [vmem:[#allocation2 + $0x48] sm:$0xff] %vm857, 0.0
        %869 = vst.msk [vmem:[#allocation2 + $0x50] sm:$0xff] %vm857, 0.0
        %870 = vst.msk [vmem:[#allocation2 + $0x58] sm:$0x3] %vm860, 0.0
        %871 = vst.msk [vmem:[#allocation2 + $0x60] sm:$0xff] %vm857, 0.0
        %872 = vst.msk [vmem:[#allocation2 + $0x68] sm:$0xff] %vm857, 0.0
        %873 = vst.msk [vmem:[#allocation2 + $0x70] sm:$0x3] %vm860, 0.0
        %874 = vst.msk [vmem:[#allocation2 + $0x78] sm:$0xff] %vm857, 0.0
        %875 = vst.msk [vmem:[#allocation2 + $0x80] sm:$0xff] %vm857, 0.0
        %876 = vst.msk [vmem:[#allocation2 + $0x88] sm:$0x3] %vm860, 0.0
        %877 = vst.msk [vmem:[#allocation2 + $0x90] sm:$0xff] %vm857, 0.0
        %878 = vst.msk [vmem:[#allocation2 + $0x98] sm:$0xff] %vm857, 0.0
        %879 = vst.msk [vmem:[#allocation2 + $0xa0] sm:$0x3] %vm860, 0.0
        %880 = vst.msk [vmem:[#allocation2 + $0xa8] sm:$0xff] %vm857, 0.0
        %881 = vst.msk [vmem:[#allocation2 + $0xb0] sm:$0xff] %vm857, 0.0
        %882 = vst.msk [vmem:[#allocation2 + $0xb8] sm:$0x3] %vm860, 0.0
        %883 = vst.msk [vmem:[#allocation2 + $0xc0] sm:$0xff] %vm857, 0.0
        %884 = vst.msk [vmem:[#allocation2 + $0xc8] sm:$0xff] %vm857, 0.0
        %885 = vst.msk [vmem:[#allocation2 + $0xd0] sm:$0x3] %vm860, 0.0
        %886 = vst.msk [vmem:[#allocation2 + $0xd8] sm:$0xff] %vm857, 0.0
        %887 = vst.msk [vmem:[#allocation2 + $0xe0] sm:$0xff] %vm857, 0.0
        %888 = vst.msk [vmem:[#allocation2 + $0xe8] sm:$0x3] %vm860, 0.0
        %889 = vst.msk [vmem:[#allocation2 + $0xf0] sm:$0xff] %vm857, 0.0
        %890 = vst.msk [vmem:[#allocation2 + $0xf8] sm:$0xff] %vm857, 0.0
        %891 = vst.msk [vmem:[#allocation2 + $0x100] sm:$0x3] %vm860, 0.0
        %892 = vst.msk [vmem:[#allocation2 + $0x108] sm:$0xff] %vm857, 0.0
        %893 = vst.msk [vmem:[#allocation2 + $0x110] sm:$0xff] %vm857, 0.0
        %894 = vst.msk [vmem:[#allocation2 + $0x118] sm:$0x3] %vm860, 0.0
        %895 = vst.msk [vmem:[#allocation2 + $0x120] sm:$0xff] %vm857, 0.0
        %896 = vst.msk [vmem:[#allocation2 + $0x128] sm:$0xff] %vm857, 0.0
        %897 = vst.msk [vmem:[#allocation2 + $0x130] sm:$0x3] %vm860, 0.0
        %898 = vst.msk [vmem:[#allocation2 + $0x138] sm:$0xff] %vm857, 0.0
        %899 = vst.msk [vmem:[#allocation2 + $0x140] sm:$0xff] %vm857, 0.0
        %900 = vst.msk [vmem:[#allocation2 + $0x148] sm:$0x3] %vm860, 0.0
        %901 = vst.msk [vmem:[#allocation2 + $0x150] sm:$0xff] %vm857, 0.0
        %902 = vst.msk [vmem:[#allocation2 + $0x158] sm:$0xff] %vm857, 0.0
        %903 = vst.msk [vmem:[#allocation2 + $0x160] sm:$0x3] %vm860, 0.0
        %904 = vst.msk [vmem:[#allocation2 + $0x168] sm:$0xff] %vm857, 0.0
        %905 = vst.msk [vmem:[#allocation2 + $0x170] sm:$0xff] %vm857, 0.0
        %906 = vst.msk [vmem:[#allocation2 + $0x178] sm:$0x3] %vm860, 0.0
        %907 = vst.msk [vmem:[#allocation2 + $0x180] sm:$0xff] %vm857, 0.0
        %908 = vst.msk [vmem:[#allocation2 + $0x188] sm:$0xff] %vm857, 0.0
        %909 = vst.msk [vmem:[#allocation2 + $0x190] sm:$0x3] %vm860, 0.0
        %910 = vst.msk [vmem:[#allocation2 + $0x198] sm:$0xff] %vm857, 0.0
        %911 = vst.msk [vmem:[#allocation2 + $0x1a0] sm:$0xff] %vm857, 0.0
        %912 = vst.msk [vmem:[#allocation2 + $0x1a8] sm:$0x3] %vm860, 0.0
        %s913 = scalar_lea.vmem [#allocation2], 24
        %914 = vst.msk [vmem:[%s913 + $0x1] sm:$0xff] %vm857, %v825
        %915 = vst.msk [vmem:[%s913 + $0x9] sm:$0xff] %vm857, %v826
        %916 = vst.msk [vmem:[%s913 + $0x19] sm:$0xff] %vm857, %v827
        %917 = vst.msk [vmem:[%s913 + $0x21] sm:$0xff] %vm857, %v828
        %918 = vst.msk [vmem:[%s913 + $0x31] sm:$0xff] %vm857, %v829
        %919 = vst.msk [vmem:[%s913 + $0x39] sm:$0xff] %vm857, %v830
        %920 = vst.msk [vmem:[%s913 + $0x49] sm:$0xff] %vm857, %v831
        %921 = vst.msk [vmem:[%s913 + $0x51] sm:$0xff] %vm857, %v832
        %922 = vst.msk [vmem:[%s913 + $0x61] sm:$0xff] %vm857, %v833
        %923 = vst.msk [vmem:[%s913 + $0x69] sm:$0xff] %vm857, %v834
        %924 = vst.msk [vmem:[%s913 + $0x79] sm:$0xff] %vm857, %v835
        %925 = vst.msk [vmem:[%s913 + $0x81] sm:$0xff] %vm857, %v836
        %926 = vst.msk [vmem:[%s913 + $0x91] sm:$0xff] %vm857, %v837
        %927 = vst.msk [vmem:[%s913 + $0x99] sm:$0xff] %vm857, %v838
        %928 = vst.msk [vmem:[%s913 + $0xa9] sm:$0xff] %vm857, %v839
        %929 = vst.msk [vmem:[%s913 + $0xb1] sm:$0xff] %vm857, %v840
        %930 = vst.msk [vmem:[%s913 + $0xc1] sm:$0xff] %vm857, %v841
        %931 = vst.msk [vmem:[%s913 + $0xc9] sm:$0xff] %vm857, %v842
        %932 = vst.msk [vmem:[%s913 + $0xd9] sm:$0xff] %vm857, %v843
        %933 = vst.msk [vmem:[%s913 + $0xe1] sm:$0xff] %vm857, %v844
        %934 = vst.msk [vmem:[%s913 + $0xf1] sm:$0xff] %vm857, %v845
        %935 = vst.msk [vmem:[%s913 + $0xf9] sm:$0xff] %vm857, %v846
        %936 = vst.msk [vmem:[%s913 + $0x109] sm:$0xff] %vm857, %v847
        %937 = vst.msk [vmem:[%s913 + $0x111] sm:$0xff] %vm857, %v848
        %938 = vst.msk [vmem:[%s913 + $0x121] sm:$0xff] %vm857, %v849
        %939 = vst.msk [vmem:[%s913 + $0x129] sm:$0xff] %vm857, %v850
        %940 = vst.msk [vmem:[%s913 + $0x139] sm:$0xff] %vm857, %v851
        %941 = vst.msk [vmem:[%s913 + $0x141] sm:$0xff] %vm857, %v852
        %942 = vst.msk [vmem:[%s913 + $0x151] sm:$0xff] %vm857, %v853
        %943 = vst.msk [vmem:[%s913 + $0x159] sm:$0xff] %vm857, %v854
        %944 = vst.msk [vmem:[%s913 + $0x169] sm:$0xff] %vm857, %v855
        %945 = vst.msk [vmem:[%s913 + $0x171] sm:$0xff] %vm857, %v856
        %v946 = vld [vmem:[#allocation2] sm:$0xff]
        %v947 = vld [vmem:[#allocation2 + $0x8] sm:$0xff]
        %v948 = vld [vmem:[#allocation2 + $0x18] sm:$0xff]
        %v949 = vld [vmem:[#allocation2 + $0x20] sm:$0xff]
        %v950 = vld [vmem:[#allocation2 + $0x30] sm:$0xff]
        %v951 = vld [vmem:[#allocation2 + $0x38] sm:$0xff]
        %v952 = vld [vmem:[#allocation2 + $0x48] sm:$0xff]
        %v953 = vld [vmem:[#allocation2 + $0x50] sm:$0xff]
        %v954 = vld [vmem:[#allocation2 + $0x60] sm:$0xff]
        %v955 = vld [vmem:[#allocation2 + $0x68] sm:$0xff]
        %v956 = vld [vmem:[#allocation2 + $0x78] sm:$0xff]
        %v957 = vld [vmem:[#allocation2 + $0x80] sm:$0xff]
        %v958 = vld [vmem:[#allocation2 + $0x90] sm:$0xff]
        %v959 = vld [vmem:[#allocation2 + $0x98] sm:$0xff]
        %v960 = vld [vmem:[#allocation2 + $0xa8] sm:$0xff]
        %v961 = vld [vmem:[#allocation2 + $0xb0] sm:$0xff]
        %v962 = vld [vmem:[#allocation2 + $0xc0] sm:$0xff]
        %v963 = vld [vmem:[#allocation2 + $0xc8] sm:$0xff]
        %v964 = vld [vmem:[#allocation2 + $0xd8] sm:$0xff]
        %v965 = vld [vmem:[#allocation2 + $0xe0] sm:$0xff]
        %v966 = vld [vmem:[#allocation2 + $0xf0] sm:$0xff]
        %v967 = vld [vmem:[#allocation2 + $0xf8] sm:$0xff]
        %v968 = vld [vmem:[#allocation2 + $0x108] sm:$0xff]
        %v969 = vld [vmem:[#allocation2 + $0x110] sm:$0xff]
        %v970 = vld [vmem:[#allocation2 + $0x120] sm:$0xff]
        %v971 = vld [vmem:[#allocation2 + $0x128] sm:$0xff]
        %v972 = vld [vmem:[#allocation2 + $0x138] sm:$0xff]
        %v973 = vld [vmem:[#allocation2 + $0x140] sm:$0xff]
        %v974 = vld [vmem:[#allocation2 + $0x150] sm:$0xff]
        %v975 = vld [vmem:[#allocation2 + $0x158] sm:$0xff]
        %v976 = vld [vmem:[#allocation2 + $0x168] sm:$0xff]
        %v977 = vld [vmem:[#allocation2 + $0x170] sm:$0xff]
        %978 = vst.msk [vmem:[#allocation3] sm:$0xff] %vm857, %v946
        %979 = vst.msk [vmem:[#allocation3 + $0x8] sm:$0xff] %vm857, %v947
        %980 = vst.msk [vmem:[#allocation3 + $0x10] sm:$0xff] %vm857, %v948
        %981 = vst.msk [vmem:[#allocation3 + $0x18] sm:$0xff] %vm857, %v949
        %982 = vst.msk [vmem:[#allocation3 + $0x20] sm:$0xff] %vm857, %v950
        %983 = vst.msk [vmem:[#allocation3 + $0x28] sm:$0xff] %vm857, %v951
        %984 = vst.msk [vmem:[#allocation3 + $0x30] sm:$0xff] %vm857, %v952
        %985 = vst.msk [vmem:[#allocation3 + $0x38] sm:$0xff] %vm857, %v953
        %986 = vst.msk [vmem:[#allocation3 + $0x40] sm:$0xff] %vm857, %v954
        %987 = vst.msk [vmem:[#allocation3 + $0x48] sm:$0xff] %vm857, %v955
        %988 = vst.msk [vmem:[#allocation3 + $0x50] sm:$0xff] %vm857, %v956
        %989 = vst.msk [vmem:[#allocation3 + $0x58] sm:$0xff] %vm857, %v957
        %990 = vst.msk [vmem:[#allocation3 + $0x60] sm:$0xff] %vm857, %v958
        %991 = vst.msk [vmem:[#allocation3 + $0x68] sm:$0xff] %vm857, %v959
        %992 = vst.msk [vmem:[#allocation3 + $0x70] sm:$0xff] %vm857, %v960
        %993 = vst.msk [vmem:[#allocation3 + $0x78] sm:$0xff] %vm857, %v961
        %994 = vst.msk [vmem:[#allocation3 + $0x80] sm:$0xff] %vm857, %v962
        %995 = vst.msk [vmem:[#allocation3 + $0x88] sm:$0xff] %vm857, %v963
        %996 = vst.msk [vmem:[#allocation3 + $0x90] sm:$0xff] %vm857, %v964
        %997 = vst.msk [vmem:[#allocation3 + $0x98] sm:$0xff] %vm857, %v965
        %998 = vst.msk [vmem:[#allocation3 + $0xa0] sm:$0xff] %vm857, %v966
        %999 = vst.msk [vmem:[#allocation3 + $0xa8] sm:$0xff] %vm857, %v967
        %1000 = vst.msk [vmem:[#allocation3 + $0xb0] sm:$0xff] %vm857, %v968
        %1001 = vst.msk [vmem:[#allocation3 + $0xb8] sm:$0xff] %vm857, %v969
        %1002 = vst.msk [vmem:[#allocation3 + $0xc0] sm:$0xff] %vm857, %v970
        %1003 = vst.msk [vmem:[#allocation3 + $0xc8] sm:$0xff] %vm857, %v971
        %1004 = vst.msk [vmem:[#allocation3 + $0xd0] sm:$0xff] %vm857, %v972
        %1005 = vst.msk [vmem:[#allocation3 + $0xd8] sm:$0xff] %vm857, %v973
        %1006 = vst.msk [vmem:[#allocation3 + $0xe0] sm:$0xff] %vm857, %v974
        %1007 = vst.msk [vmem:[#allocation3 + $0xe8] sm:$0xff] %vm857, %v975
        %1008 = vst.msk [vmem:[#allocation3 + $0xf0] sm:$0xff] %vm857, %v976
        %1009 = vst.msk [vmem:[#allocation3 + $0xf8] sm:$0xff] %vm857, %v977
        %v1010 = vld [vmem:[#allocation2 + $0x1] sm:$0xff]
        %v1011 = vld [vmem:[#allocation2 + $0x9] sm:$0xff]
        %v1012 = vld [vmem:[#allocation2 + $0x19] sm:$0xff]
        %v1013 = vld [vmem:[#allocation2 + $0x21] sm:$0xff]
        %v1014 = vld [vmem:[#allocation2 + $0x31] sm:$0xff]
        %v1015 = vld [vmem:[#allocation2 + $0x39] sm:$0xff]
        %v1016 = vld [vmem:[#allocation2 + $0x49] sm:$0xff]
        %v1017 = vld [vmem:[#allocation2 + $0x51] sm:$0xff]
        %v1018 = vld [vmem:[#allocation2 + $0x61] sm:$0xff]
        %v1019 = vld [vmem:[#allocation2 + $0x69] sm:$0xff]
        %v1020 = vld [vmem:[#allocation2 + $0x79] sm:$0xff]
        %v1021 = vld [vmem:[#allocation2 + $0x81] sm:$0xff]
        %v1022 = vld [vmem:[#allocation2 + $0x91] sm:$0xff]
        %v1023 = vld [vmem:[#allocation2 + $0x99] sm:$0xff]
        %v1024 = vld [vmem:[#allocation2 + $0xa9] sm:$0xff]
        %v1025 = vld [vmem:[#allocation2 + $0xb1] sm:$0xff]
        %v1026 = vld [vmem:[#allocation2 + $0xc1] sm:$0xff]
        %v1027 = vld [vmem:[#allocation2 + $0xc9] sm:$0xff]
        %v1028 = vld [vmem:[#allocation2 + $0xd9] sm:$0xff]
        %v1029 = vld [vmem:[#allocation2 + $0xe1] sm:$0xff]
        %v1030 = vld [vmem:[#allocation2 + $0xf1] sm:$0xff]
        %v1031 = vld [vmem:[#allocation2 + $0xf9] sm:$0xff]
        %v1032 = vld [vmem:[#allocation2 + $0x109] sm:$0xff]
        %v1033 = vld [vmem:[#allocation2 + $0x111] sm:$0xff]
        %v1034 = vld [vmem:[#allocation2 + $0x121] sm:$0xff]
        %v1035 = vld [vmem:[#allocation2 + $0x129] sm:$0xff]
        %v1036 = vld [vmem:[#allocation2 + $0x139] sm:$0xff]
        %v1037 = vld [vmem:[#allocation2 + $0x141] sm:$0xff]
        %v1038 = vld [vmem:[#allocation2 + $0x151] sm:$0xff]
        %v1039 = vld [vmem:[#allocation2 + $0x159] sm:$0xff]
        %v1040 = vld [vmem:[#allocation2 + $0x169] sm:$0xff]
        %v1041 = vld [vmem:[#allocation2 + $0x171] sm:$0xff]
        %1074 = vrot.lane.b32.xlu0 %v1010, 8
        %v1075 = vpop.permute.xlu0 %1074
        %1076 = vrot.lane.b32.xlu0 %v1011, 8
        %v1077 = vpop.permute.xlu0 %1076
        %1078 = vrot.lane.b32.xlu0 %v1012, 8
        %v1079 = vpop.permute.xlu0 %1078
        %1080 = vrot.lane.b32.xlu0 %v1013, 8
        %v1081 = vpop.permute.xlu0 %1080
        %1082 = vrot.lane.b32.xlu0 %v1014, 8
        %v1083 = vpop.permute.xlu0 %1082
        %1084 = vrot.lane.b32.xlu0 %v1015, 8
        %v1085 = vpop.permute.xlu0 %1084
        %1086 = vrot.lane.b32.xlu0 %v1016, 8
        %v1087 = vpop.permute.xlu0 %1086
        %1088 = vrot.lane.b32.xlu0 %v1017, 8
        %v1089 = vpop.permute.xlu0 %1088
        %1090 = vrot.lane.b32.xlu0 %v1018, 8
        %v1091 = vpop.permute.xlu0 %1090
        %1092 = vrot.lane.b32.xlu0 %v1019, 8
        %v1093 = vpop.permute.xlu0 %1092
        %1094 = vrot.lane.b32.xlu0 %v1020, 8
        %v1095 = vpop.permute.xlu0 %1094
        %1096 = vrot.lane.b32.xlu0 %v1021, 8
        %v1097 = vpop.permute.xlu0 %1096
        %1098 = vrot.lane.b32.xlu0 %v1022, 8
        %v1099 = vpop.permute.xlu0 %1098
        %1100 = vrot.lane.b32.xlu0 %v1023, 8
        %v1101 = vpop.permute.xlu0 %1100
        %1102 = vrot.lane.b32.xlu0 %v1024, 8
        %v1103 = vpop.permute.xlu0 %1102
        %1104 = vrot.lane.b32.xlu0 %v1025, 8
        %v1105 = vpop.permute.xlu0 %1104
        %1106 = vrot.lane.b32.xlu0 %v1026, 8
        %v1107 = vpop.permute.xlu0 %1106
        %1108 = vrot.lane.b32.xlu0 %v1027, 8
        %v1109 = vpop.permute.xlu0 %1108
        %1110 = vrot.lane.b32.xlu0 %v1028, 8
        %v1111 = vpop.permute.xlu0 %1110
        %1112 = vrot.lane.b32.xlu0 %v1029, 8
        %v1113 = vpop.permute.xlu0 %1112
        %1114 = vrot.lane.b32.xlu0 %v1030, 8
        %v1115 = vpop.permute.xlu0 %1114
        %1116 = vrot.lane.b32.xlu0 %v1031, 8
        %v1117 = vpop.permute.xlu0 %1116
        %1118 = vrot.lane.b32.xlu0 %v1032, 8
        %v1119 = vpop.permute.xlu0 %1118
        %1120 = vrot.lane.b32.xlu0 %v1033, 8
        %v1121 = vpop.permute.xlu0 %1120
        %1122 = vrot.lane.b32.xlu0 %v1034, 8
        %v1123 = vpop.permute.xlu0 %1122
        %1124 = vrot.lane.b32.xlu0 %v1035, 8
        %v1125 = vpop.permute.xlu0 %1124
        %1126 = vrot.lane.b32.xlu0 %v1036, 8
        %v1127 = vpop.permute.xlu0 %1126
        %1128 = vrot.lane.b32.xlu0 %v1037, 8
        %v1129 = vpop.permute.xlu0 %1128
        %1130 = vrot.lane.b32.xlu0 %v1038, 8
        %v1131 = vpop.permute.xlu0 %1130
        %1132 = vrot.lane.b32.xlu0 %v1039, 8
        %v1133 = vpop.permute.xlu0 %1132
        %1134 = vrot.lane.b32.xlu0 %v1040, 8
        %v1135 = vpop.permute.xlu0 %1134
        %1136 = vrot.lane.b32.xlu0 %v1041, 8
        %v1137 = vpop.permute.xlu0 %1136
        %vm1170 = vcmask 130112
        %1171 = vst.msk [vmem:[#allocation3] sm:$0xff] %vm1170, %v1075
        %1172 = vst.msk [vmem:[#allocation3 + $0x8] sm:$0xff] %vm1170, %v1077
        %1173 = vst.msk [vmem:[#allocation3 + $0x10] sm:$0xff] %vm1170, %v1079
        %1174 = vst.msk [vmem:[#allocation3 + $0x18] sm:$0xff] %vm1170, %v1081
        %1175 = vst.msk [vmem:[#allocation3 + $0x20] sm:$0xff] %vm1170, %v1083
        %1176 = vst.msk [vmem:[#allocation3 + $0x28] sm:$0xff] %vm1170, %v1085
        %1177 = vst.msk [vmem:[#allocation3 + $0x30] sm:$0xff] %vm1170, %v1087
        %1178 = vst.msk [vmem:[#allocation3 + $0x38] sm:$0xff] %vm1170, %v1089
        %1179 = vst.msk [vmem:[#allocation3 + $0x40] sm:$0xff] %vm1170, %v1091
        %1180 = vst.msk [vmem:[#allocation3 + $0x48] sm:$0xff] %vm1170, %v1093
        %1181 = vst.msk [vmem:[#allocation3 + $0x50] sm:$0xff] %vm1170, %v1095
        %1182 = vst.msk [vmem:[#allocation3 + $0x58] sm:$0xff] %vm1170, %v1097
        %1183 = vst.msk [vmem:[#allocation3 + $0x60] sm:$0xff] %vm1170, %v1099
        %1184 = vst.msk [vmem:[#allocation3 + $0x68] sm:$0xff] %vm1170, %v1101
        %1185 = vst.msk [vmem:[#allocation3 + $0x70] sm:$0xff] %vm1170, %v1103
        %1186 = vst.msk [vmem:[#allocation3 + $0x78] sm:$0xff] %vm1170, %v1105
        %1187 = vst.msk [vmem:[#allocation3 + $0x80] sm:$0xff] %vm1170, %v1107
        %1188 = vst.msk [vmem:[#allocation3 + $0x88] sm:$0xff] %vm1170, %v1109
        %1189 = vst.msk [vmem:[#allocation3 + $0x90] sm:$0xff] %vm1170, %v1111
        %1190 = vst.msk [vmem:[#allocation3 + $0x98] sm:$0xff] %vm1170, %v1113
        %1191 = vst.msk [vmem:[#allocation3 + $0xa0] sm:$0xff] %vm1170, %v1115
        %1192 = vst.msk [vmem:[#allocation3 + $0xa8] sm:$0xff] %vm1170, %v1117
        %1193 = vst.msk [vmem:[#allocation3 + $0xb0] sm:$0xff] %vm1170, %v1119
        %1194 = vst.msk [vmem:[#allocation3 + $0xb8] sm:$0xff] %vm1170, %v1121
        %1195 = vst.msk [vmem:[#allocation3 + $0xc0] sm:$0xff] %vm1170, %v1123
        %1196 = vst.msk [vmem:[#allocation3 + $0xc8] sm:$0xff] %vm1170, %v1125
        %1197 = vst.msk [vmem:[#allocation3 + $0xd0] sm:$0xff] %vm1170, %v1127
        %1198 = vst.msk [vmem:[#allocation3 + $0xd8] sm:$0xff] %vm1170, %v1129
        %1199 = vst.msk [vmem:[#allocation3 + $0xe0] sm:$0xff] %vm1170, %v1131
        %1200 = vst.msk [vmem:[#allocation3 + $0xe8] sm:$0xff] %vm1170, %v1133
        %1201 = vst.msk [vmem:[#allocation3 + $0xf0] sm:$0xff] %vm1170, %v1135
        %1202 = vst.msk [vmem:[#allocation3 + $0xf8] sm:$0xff] %vm1170, %v1137
        %v1203 = vld [vmem:[#allocation2 + $0x2] sm:$0xff]
        %v1204 = vld [vmem:[#allocation2 + $0xa] sm:$0xff]
        %v1205 = vld [vmem:[#allocation2 + $0x1a] sm:$0xff]
        %v1206 = vld [vmem:[#allocation2 + $0x22] sm:$0xff]
        %v1207 = vld [vmem:[#allocation2 + $0x32] sm:$0xff]
        %v1208 = vld [vmem:[#allocation2 + $0x3a] sm:$0xff]
        %v1209 = vld [vmem:[#allocation2 + $0x4a] sm:$0xff]
        %v1210 = vld [vmem:[#allocation2 + $0x52] sm:$0xff]
        %v1211 = vld [vmem:[#allocation2 + $0x62] sm:$0xff]
        %v1212 = vld [vmem:[#allocation2 + $0x6a] sm:$0xff]
        %v1213 = vld [vmem:[#allocation2 + $0x7a] sm:$0xff]
        %v1214 = vld [vmem:[#allocation2 + $0x82] sm:$0xff]
        %v1215 = vld [vmem:[#allocation2 + $0x92] sm:$0xff]
        %v1216 = vld [vmem:[#allocation2 + $0x9a] sm:$0xff]
        %v1217 = vld [vmem:[#allocation2 + $0xaa] sm:$0xff]
        %v1218 = vld [vmem:[#allocation2 + $0xb2] sm:$0xff]
        %v1219 = vld [vmem:[#allocation2 + $0xc2] sm:$0xff]
        %v1220 = vld [vmem:[#allocation2 + $0xca] sm:$0xff]
        %v1221 = vld [vmem:[#allocation2 + $0xda] sm:$0xff]
        %v1222 = vld [vmem:[#allocation2 + $0xe2] sm:$0xff]
        %v1223 = vld [vmem:[#allocation2 + $0xf2] sm:$0xff]
        %v1224 = vld [vmem:[#allocation2 + $0xfa] sm:$0xff]
        %v1225 = vld [vmem:[#allocation2 + $0x10a] sm:$0xff]
        %v1226 = vld [vmem:[#allocation2 + $0x112] sm:$0xff]
        %v1227 = vld [vmem:[#allocation2 + $0x122] sm:$0xff]
        %v1228 = vld [vmem:[#allocation2 + $0x12a] sm:$0xff]
        %v1229 = vld [vmem:[#allocation2 + $0x13a] sm:$0xff]
        %v1230 = vld [vmem:[#allocation2 + $0x142] sm:$0xff]
        %v1231 = vld [vmem:[#allocation2 + $0x152] sm:$0xff]
        %v1232 = vld [vmem:[#allocation2 + $0x15a] sm:$0xff]
        %v1233 = vld [vmem:[#allocation2 + $0x16a] sm:$0xff]
        %v1234 = vld [vmem:[#allocation2 + $0x172] sm:$0xff]
        %1267 = vrot.lane.b32.xlu0 %v1203, 16
        %v1268 = vpop.permute.xlu0 %1267
        %1269 = vrot.lane.b32.xlu0 %v1204, 16
        %v1270 = vpop.permute.xlu0 %1269
        %1271 = vrot.lane.b32.xlu0 %v1205, 16
        %v1272 = vpop.permute.xlu0 %1271
        %1273 = vrot.lane.b32.xlu0 %v1206, 16
        %v1274 = vpop.permute.xlu0 %1273
        %1275 = vrot.lane.b32.xlu0 %v1207, 16
        %v1276 = vpop.permute.xlu0 %1275
        %1277 = vrot.lane.b32.xlu0 %v1208, 16
        %v1278 = vpop.permute.xlu0 %1277
        %1279 = vrot.lane.b32.xlu0 %v1209, 16
        %v1280 = vpop.permute.xlu0 %1279
        %1281 = vrot.lane.b32.xlu0 %v1210, 16
        %v1282 = vpop.permute.xlu0 %1281
        %1283 = vrot.lane.b32.xlu0 %v1211, 16
        %v1284 = vpop.permute.xlu0 %1283
        %1285 = vrot.lane.b32.xlu0 %v1212, 16
        %v1286 = vpop.permute.xlu0 %1285
        %1287 = vrot.lane.b32.xlu0 %v1213, 16
        %v1288 = vpop.permute.xlu0 %1287
        %1289 = vrot.lane.b32.xlu0 %v1214, 16
        %v1290 = vpop.permute.xlu0 %1289
        %1291 = vrot.lane.b32.xlu0 %v1215, 16
        %v1292 = vpop.permute.xlu0 %1291
        %1293 = vrot.lane.b32.xlu0 %v1216, 16
        %v1294 = vpop.permute.xlu0 %1293
        %1295 = vrot.lane.b32.xlu0 %v1217, 16
        %v1296 = vpop.permute.xlu0 %1295
        %1297 = vrot.lane.b32.xlu0 %v1218, 16
        %v1298 = vpop.permute.xlu0 %1297
        %1299 = vrot.lane.b32.xlu0 %v1219, 16
        %v1300 = vpop.permute.xlu0 %1299
        %1301 = vrot.lane.b32.xlu0 %v1220, 16
        %v1302 = vpop.permute.xlu0 %1301
        %1303 = vrot.lane.b32.xlu0 %v1221, 16
        %v1304 = vpop.permute.xlu0 %1303
        %1305 = vrot.lane.b32.xlu0 %v1222, 16
        %v1306 = vpop.permute.xlu0 %1305
        %1307 = vrot.lane.b32.xlu0 %v1223, 16
        %v1308 = vpop.permute.xlu0 %1307
        %1309 = vrot.lane.b32.xlu0 %v1224, 16
        %v1310 = vpop.permute.xlu0 %1309
        %1311 = vrot.lane.b32.xlu0 %v1225, 16
        %v1312 = vpop.permute.xlu0 %1311
        %1313 = vrot.lane.b32.xlu0 %v1226, 16
        %v1314 = vpop.permute.xlu0 %1313
        %1315 = vrot.lane.b32.xlu0 %v1227, 16
        %v1316 = vpop.permute.xlu0 %1315
        %1317 = vrot.lane.b32.xlu0 %v1228, 16
        %v1318 = vpop.permute.xlu0 %1317
        %1319 = vrot.lane.b32.xlu0 %v1229, 16
        %v1320 = vpop.permute.xlu0 %1319
        %1321 = vrot.lane.b32.xlu0 %v1230, 16
        %v1322 = vpop.permute.xlu0 %1321
        %1323 = vrot.lane.b32.xlu0 %v1231, 16
        %v1324 = vpop.permute.xlu0 %1323
        %1325 = vrot.lane.b32.xlu0 %v1232, 16
        %v1326 = vpop.permute.xlu0 %1325
        %1327 = vrot.lane.b32.xlu0 %v1233, 16
        %v1328 = vpop.permute.xlu0 %1327
        %1329 = vrot.lane.b32.xlu0 %v1234, 16
        %v1330 = vpop.permute.xlu0 %1329
        %vm1363 = vcmask 195712
        %1364 = vst.msk [vmem:[#allocation3] sm:$0xff] %vm1363, %v1268
        %1365 = vst.msk [vmem:[#allocation3 + $0x8] sm:$0xff] %vm1363, %v1270
        %1366 = vst.msk [vmem:[#allocation3 + $0x10] sm:$0xff] %vm1363, %v1272
        %1367 = vst.msk [vmem:[#allocation3 + $0x18] sm:$0xff] %vm1363, %v1274
        %1368 = vst.msk [vmem:[#allocation3 + $0x20] sm:$0xff] %vm1363, %v1276
        %1369 = vst.msk [vmem:[#allocation3 + $0x28] sm:$0xff] %vm1363, %v1278
        %1370 = vst.msk [vmem:[#allocation3 + $0x30] sm:$0xff] %vm1363, %v1280
        %1371 = vst.msk [vmem:[#allocation3 + $0x38] sm:$0xff] %vm1363, %v1282
        %1372 = vst.msk [vmem:[#allocation3 + $0x40] sm:$0xff] %vm1363, %v1284
        %1373 = vst.msk [vmem:[#allocation3 + $0x48] sm:$0xff] %vm1363, %v1286
        %1374 = vst.msk [vmem:[#allocation3 + $0x50] sm:$0xff] %vm1363, %v1288
        %1375 = vst.msk [vmem:[#allocation3 + $0x58] sm:$0xff] %vm1363, %v1290
        %1376 = vst.msk [vmem:[#allocation3 + $0x60] sm:$0xff] %vm1363, %v1292
        %1377 = vst.msk [vmem:[#allocation3 + $0x68] sm:$0xff] %vm1363, %v1294
        %1378 = vst.msk [vmem:[#allocation3 + $0x70] sm:$0xff] %vm1363, %v1296
        %1379 = vst.msk [vmem:[#allocation3 + $0x78] sm:$0xff] %vm1363, %v1298
        %1380 = vst.msk [vmem:[#allocation3 + $0x80] sm:$0xff] %vm1363, %v1300
        %1381 = vst.msk [vmem:[#allocation3 + $0x88] sm:$0xff] %vm1363, %v1302
        %1382 = vst.msk [vmem:[#allocation3 + $0x90] sm:$0xff] %vm1363, %v1304
        %1383 = vst.msk [vmem:[#allocation3 + $0x98] sm:$0xff] %vm1363, %v1306
        %1384 = vst.msk [vmem:[#allocation3 + $0xa0] sm:$0xff] %vm1363, %v1308
        %1385 = vst.msk [vmem:[#allocation3 + $0xa8] sm:$0xff] %vm1363, %v1310
        %1386 = vst.msk [vmem:[#allocation3 + $0xb0] sm:$0xff] %vm1363, %v1312
        %1387 = vst.msk [vmem:[#allocation3 + $0xb8] sm:$0xff] %vm1363, %v1314
        %1388 = vst.msk [vmem:[#allocation3 + $0xc0] sm:$0xff] %vm1363, %v1316
        %1389 = vst.msk [vmem:[#allocation3 + $0xc8] sm:$0xff] %vm1363, %v1318
        %1390 = vst.msk [vmem:[#allocation3 + $0xd0] sm:$0xff] %vm1363, %v1320
        %1391 = vst.msk [vmem:[#allocation3 + $0xd8] sm:$0xff] %vm1363, %v1322
        %1392 = vst.msk [vmem:[#allocation3 + $0xe0] sm:$0xff] %vm1363, %v1324
        %1393 = vst.msk [vmem:[#allocation3 + $0xe8] sm:$0xff] %vm1363, %v1326
        %1394 = vst.msk [vmem:[#allocation3 + $0xf0] sm:$0xff] %vm1363, %v1328
        %1395 = vst.msk [vmem:[#allocation3 + $0xf8] sm:$0xff] %vm1363, %v1330
        %v1396 = vld [vmem:[%s913] sm:$0xff]
        %v1397 = vld [vmem:[%s913 + $0x8] sm:$0xff]
        %v1398 = vld [vmem:[%s913 + $0x18] sm:$0xff]
        %v1399 = vld [vmem:[%s913 + $0x20] sm:$0xff]
        %v1400 = vld [vmem:[%s913 + $0x30] sm:$0xff]
        %v1401 = vld [vmem:[%s913 + $0x38] sm:$0xff]
        %v1402 = vld [vmem:[%s913 + $0x48] sm:$0xff]
        %v1403 = vld [vmem:[%s913 + $0x50] sm:$0xff]
        %v1404 = vld [vmem:[%s913 + $0x60] sm:$0xff]
        %v1405 = vld [vmem:[%s913 + $0x68] sm:$0xff]
        %v1406 = vld [vmem:[%s913 + $0x78] sm:$0xff]
        %v1407 = vld [vmem:[%s913 + $0x80] sm:$0xff]
        %v1408 = vld [vmem:[%s913 + $0x90] sm:$0xff]
        %v1409 = vld [vmem:[%s913 + $0x98] sm:$0xff]
        %v1410 = vld [vmem:[%s913 + $0xa8] sm:$0xff]
        %v1411 = vld [vmem:[%s913 + $0xb0] sm:$0xff]
        %v1412 = vld [vmem:[%s913 + $0xc0] sm:$0xff]
        %v1413 = vld [vmem:[%s913 + $0xc8] sm:$0xff]
        %v1414 = vld [vmem:[%s913 + $0xd8] sm:$0xff]
        %v1415 = vld [vmem:[%s913 + $0xe0] sm:$0xff]
        %v1416 = vld [vmem:[%s913 + $0xf0] sm:$0xff]
        %v1417 = vld [vmem:[%s913 + $0xf8] sm:$0xff]
        %v1418 = vld [vmem:[%s913 + $0x108] sm:$0xff]
        %v1419 = vld [vmem:[%s913 + $0x110] sm:$0xff]
        %v1420 = vld [vmem:[%s913 + $0x120] sm:$0xff]
        %v1421 = vld [vmem:[%s913 + $0x128] sm:$0xff]
        %v1422 = vld [vmem:[%s913 + $0x138] sm:$0xff]
        %v1423 = vld [vmem:[%s913 + $0x140] sm:$0xff]
        %v1424 = vld [vmem:[%s913 + $0x150] sm:$0xff]
        %v1425 = vld [vmem:[%s913 + $0x158] sm:$0xff]
        %v1426 = vld [vmem:[%s913 + $0x168] sm:$0xff]
        %v1427 = vld [vmem:[%s913 + $0x170] sm:$0xff]
        %1460 = vrot.lane.b32.xlu0 %v1396, 24
        %v1461 = vpop.permute.xlu0 %1460
        %1462 = vrot.lane.b32.xlu0 %v1397, 24
        %v1463 = vpop.permute.xlu0 %1462
        %1464 = vrot.lane.b32.xlu0 %v1398, 24
        %v1465 = vpop.permute.xlu0 %1464
        %1466 = vrot.lane.b32.xlu0 %v1399, 24
        %v1467 = vpop.permute.xlu0 %1466
        %1468 = vrot.lane.b32.xlu0 %v1400, 24
        %v1469 = vpop.permute.xlu0 %1468
        %1470 = vrot.lane.b32.xlu0 %v1401, 24
        %v1471 = vpop.permute.xlu0 %1470
        %1472 = vrot.lane.b32.xlu0 %v1402, 24
        %v1473 = vpop.permute.xlu0 %1472
        %1474 = vrot.lane.b32.xlu0 %v1403, 24
        %v1475 = vpop.permute.xlu0 %1474
        %1476 = vrot.lane.b32.xlu0 %v1404, 24
        %v1477 = vpop.permute.xlu0 %1476
        %1478 = vrot.lane.b32.xlu0 %v1405, 24
        %v1479 = vpop.permute.xlu0 %1478
        %1480 = vrot.lane.b32.xlu0 %v1406, 24
        %v1481 = vpop.permute.xlu0 %1480
        %1482 = vrot.lane.b32.xlu0 %v1407, 24
        %v1483 = vpop.permute.xlu0 %1482
        %1484 = vrot.lane.b32.xlu0 %v1408, 24
        %v1485 = vpop.permute.xlu0 %1484
        %1486 = vrot.lane.b32.xlu0 %v1409, 24
        %v1487 = vpop.permute.xlu0 %1486
        %1488 = vrot.lane.b32.xlu0 %v1410, 24
        %v1489 = vpop.permute.xlu0 %1488
        %1490 = vrot.lane.b32.xlu0 %v1411, 24
        %v1491 = vpop.permute.xlu0 %1490
        %1492 = vrot.lane.b32.xlu0 %v1412, 24
        %v1493 = vpop.permute.xlu0 %1492
        %1494 = vrot.lane.b32.xlu0 %v1413, 24
        %v1495 = vpop.permute.xlu0 %1494
        %1496 = vrot.lane.b32.xlu0 %v1414, 24
        %v1497 = vpop.permute.xlu0 %1496
        %1498 = vrot.lane.b32.xlu0 %v1415, 24
        %v1499 = vpop.permute.xlu0 %1498
        %1500 = vrot.lane.b32.xlu0 %v1416, 24
        %v1501 = vpop.permute.xlu0 %1500
        %1502 = vrot.lane.b32.xlu0 %v1417, 24
        %v1503 = vpop.permute.xlu0 %1502
        %1504 = vrot.lane.b32.xlu0 %v1418, 24
        %v1505 = vpop.permute.xlu0 %1504
        %1506 = vrot.lane.b32.xlu0 %v1419, 24
        %v1507 = vpop.permute.xlu0 %1506
        %1508 = vrot.lane.b32.xlu0 %v1420, 24
        %v1509 = vpop.permute.xlu0 %1508
        %1510 = vrot.lane.b32.xlu0 %v1421, 24
        %v1511 = vpop.permute.xlu0 %1510
        %1512 = vrot.lane.b32.xlu0 %v1422, 24
        %v1513 = vpop.permute.xlu0 %1512
        %1514 = vrot.lane.b32.xlu0 %v1423, 24
        %v1515 = vpop.permute.xlu0 %1514
        %1516 = vrot.lane.b32.xlu0 %v1424, 24
        %v1517 = vpop.permute.xlu0 %1516
        %1518 = vrot.lane.b32.xlu0 %v1425, 24
        %v1519 = vpop.permute.xlu0 %1518
        %1520 = vrot.lane.b32.xlu0 %v1426, 24
        %v1521 = vpop.permute.xlu0 %1520
        %1522 = vrot.lane.b32.xlu0 %v1427, 24
        %v1523 = vpop.permute.xlu0 %1522
        %vm1556 = vcmask 261312
        %1557 = vst.msk [vmem:[#allocation3] sm:$0xff] %vm1556, %v1461
        %1558 = vst.msk [vmem:[#allocation3 + $0x8] sm:$0xff] %vm1556, %v1463
        %1559 = vst.msk [vmem:[#allocation3 + $0x10] sm:$0xff] %vm1556, %v1465
        %1560 = vst.msk [vmem:[#allocation3 + $0x18] sm:$0xff] %vm1556, %v1467
        %1561 = vst.msk [vmem:[#allocation3 + $0x20] sm:$0xff] %vm1556, %v1469
        %1562 = vst.msk [vmem:[#allocation3 + $0x28] sm:$0xff] %vm1556, %v1471
        %1563 = vst.msk [vmem:[#allocation3 + $0x30] sm:$0xff] %vm1556, %v1473
        %1564 = vst.msk [vmem:[#allocation3 + $0x38] sm:$0xff] %vm1556, %v1475
        %1565 = vst.msk [vmem:[#allocation3 + $0x40] sm:$0xff] %vm1556, %v1477
        %1566 = vst.msk [vmem:[#allocation3 + $0x48] sm:$0xff] %vm1556, %v1479
        %1567 = vst.msk [vmem:[#allocation3 + $0x50] sm:$0xff] %vm1556, %v1481
        %1568 = vst.msk [vmem:[#allocation3 + $0x58] sm:$0xff] %vm1556, %v1483
        %1569 = vst.msk [vmem:[#allocation3 + $0x60] sm:$0xff] %vm1556, %v1485
        %1570 = vst.msk [vmem:[#allocation3 + $0x68] sm:$0xff] %vm1556, %v1487
        %1571 = vst.msk [vmem:[#allocation3 + $0x70] sm:$0xff] %vm1556, %v1489
        %1572 = vst.msk [vmem:[#allocation3 + $0x78] sm:$0xff] %vm1556, %v1491
        %1573 = vst.msk [vmem:[#allocation3 + $0x80] sm:$0xff] %vm1556, %v1493
        %1574 = vst.msk [vmem:[#allocation3 + $0x88] sm:$0xff] %vm1556, %v1495
        %1575 = vst.msk [vmem:[#allocation3 + $0x90] sm:$0xff] %vm1556, %v1497
        %1576 = vst.msk [vmem:[#allocation3 + $0x98] sm:$0xff] %vm1556, %v1499
        %1577 = vst.msk [vmem:[#allocation3 + $0xa0] sm:$0xff] %vm1556, %v1501
        %1578 = vst.msk [vmem:[#allocation3 + $0xa8] sm:$0xff] %vm1556, %v1503
        %1579 = vst.msk [vmem:[#allocation3 + $0xb0] sm:$0xff] %vm1556, %v1505
        %1580 = vst.msk [vmem:[#allocation3 + $0xb8] sm:$0xff] %vm1556, %v1507
        %1581 = vst.msk [vmem:[#allocation3 + $0xc0] sm:$0xff] %vm1556, %v1509
        %1582 = vst.msk [vmem:[#allocation3 + $0xc8] sm:$0xff] %vm1556, %v1511
        %1583 = vst.msk [vmem:[#allocation3 + $0xd0] sm:$0xff] %vm1556, %v1513
        %1584 = vst.msk [vmem:[#allocation3 + $0xd8] sm:$0xff] %vm1556, %v1515
        %1585 = vst.msk [vmem:[#allocation3 + $0xe0] sm:$0xff] %vm1556, %v1517
        %1586 = vst.msk [vmem:[#allocation3 + $0xe8] sm:$0xff] %vm1556, %v1519
        %1587 = vst.msk [vmem:[#allocation3 + $0xf0] sm:$0xff] %vm1556, %v1521
        %1588 = vst.msk [vmem:[#allocation3 + $0xf8] sm:$0xff] %vm1556, %v1523
        %v1589 = vld [vmem:[%s913 + $0x1] sm:$0xff]
        %v1590 = vld [vmem:[%s913 + $0x9] sm:$0xff]
        %v1591 = vld [vmem:[%s913 + $0x19] sm:$0xff]
        %v1592 = vld [vmem:[%s913 + $0x21] sm:$0xff]
        %v1593 = vld [vmem:[%s913 + $0x31] sm:$0xff]
        %v1594 = vld [vmem:[%s913 + $0x39] sm:$0xff]
        %v1595 = vld [vmem:[%s913 + $0x49] sm:$0xff]
        %v1596 = vld [vmem:[%s913 + $0x51] sm:$0xff]
        %v1597 = vld [vmem:[%s913 + $0x61] sm:$0xff]
        %v1598 = vld [vmem:[%s913 + $0x69] sm:$0xff]
        %v1599 = vld [vmem:[%s913 + $0x79] sm:$0xff]
        %v1600 = vld [vmem:[%s913 + $0x81] sm:$0xff]
        %v1601 = vld [vmem:[%s913 + $0x91] sm:$0xff]
        %v1602 = vld [vmem:[%s913 + $0x99] sm:$0xff]
        %v1603 = vld [vmem:[%s913 + $0xa9] sm:$0xff]
        %v1604 = vld [vmem:[%s913 + $0xb1] sm:$0xff]
        %v1605 = vld [vmem:[%s913 + $0xc1] sm:$0xff]
        %v1606 = vld [vmem:[%s913 + $0xc9] sm:$0xff]
        %v1607 = vld [vmem:[%s913 + $0xd9] sm:$0xff]
        %v1608 = vld [vmem:[%s913 + $0xe1] sm:$0xff]
        %v1609 = vld [vmem:[%s913 + $0xf1] sm:$0xff]
        %v1610 = vld [vmem:[%s913 + $0xf9] sm:$0xff]
        %v1611 = vld [vmem:[%s913 + $0x109] sm:$0xff]
        %v1612 = vld [vmem:[%s913 + $0x111] sm:$0xff]
        %v1613 = vld [vmem:[%s913 + $0x121] sm:$0xff]
        %v1614 = vld [vmem:[%s913 + $0x129] sm:$0xff]
        %v1615 = vld [vmem:[%s913 + $0x139] sm:$0xff]
        %v1616 = vld [vmem:[%s913 + $0x141] sm:$0xff]
        %v1617 = vld [vmem:[%s913 + $0x151] sm:$0xff]
        %v1618 = vld [vmem:[%s913 + $0x159] sm:$0xff]
        %v1619 = vld [vmem:[%s913 + $0x169] sm:$0xff]
        %v1620 = vld [vmem:[%s913 + $0x171] sm:$0xff]
        %1653 = vrot.lane.b32.xlu0 %v1589, 32
        %v1654 = vpop.permute.xlu0 %1653
        %1655 = vrot.lane.b32.xlu0 %v1590, 32
        %v1656 = vpop.permute.xlu0 %1655
        %1657 = vrot.lane.b32.xlu0 %v1591, 32
        %v1658 = vpop.permute.xlu0 %1657
        %1659 = vrot.lane.b32.xlu0 %v1592, 32
        %v1660 = vpop.permute.xlu0 %1659
        %1661 = vrot.lane.b32.xlu0 %v1593, 32
        %v1662 = vpop.permute.xlu0 %1661
        %1663 = vrot.lane.b32.xlu0 %v1594, 32
        %v1664 = vpop.permute.xlu0 %1663
        %1665 = vrot.lane.b32.xlu0 %v1595, 32
        %v1666 = vpop.permute.xlu0 %1665
        %1667 = vrot.lane.b32.xlu0 %v1596, 32
        %v1668 = vpop.permute.xlu0 %1667
        %1669 = vrot.lane.b32.xlu0 %v1597, 32
        %v1670 = vpop.permute.xlu0 %1669
        %1671 = vrot.lane.b32.xlu0 %v1598, 32
        %v1672 = vpop.permute.xlu0 %1671
        %1673 = vrot.lane.b32.xlu0 %v1599, 32
        %v1674 = vpop.permute.xlu0 %1673
        %1675 = vrot.lane.b32.xlu0 %v1600, 32
        %v1676 = vpop.permute.xlu0 %1675
        %1677 = vrot.lane.b32.xlu0 %v1601, 32
        %v1678 = vpop.permute.xlu0 %1677
        %1679 = vrot.lane.b32.xlu0 %v1602, 32
        %v1680 = vpop.permute.xlu0 %1679
        %1681 = vrot.lane.b32.xlu0 %v1603, 32
        %v1682 = vpop.permute.xlu0 %1681
        %1683 = vrot.lane.b32.xlu0 %v1604, 32
        %v1684 = vpop.permute.xlu0 %1683
        %1685 = vrot.lane.b32.xlu0 %v1605, 32
        %v1686 = vpop.permute.xlu0 %1685
        %1687 = vrot.lane.b32.xlu0 %v1606, 32
        %v1688 = vpop.permute.xlu0 %1687
        %1689 = vrot.lane.b32.xlu0 %v1607, 32
        %v1690 = vpop.permute.xlu0 %1689
        %1691 = vrot.lane.b32.xlu0 %v1608, 32
        %v1692 = vpop.permute.xlu0 %1691
        %1693 = vrot.lane.b32.xlu0 %v1609, 32
        %v1694 = vpop.permute.xlu0 %1693
        %1695 = vrot.lane.b32.xlu0 %v1610, 32
        %v1696 = vpop.permute.xlu0 %1695
        %1697 = vrot.lane.b32.xlu0 %v1611, 32
        %v1698 = vpop.permute.xlu0 %1697
        %1699 = vrot.lane.b32.xlu0 %v1612, 32
        %v1700 = vpop.permute.xlu0 %1699
        %1701 = vrot.lane.b32.xlu0 %v1613, 32
        %v1702 = vpop.permute.xlu0 %1701
        %1703 = vrot.lane.b32.xlu0 %v1614, 32
        %v1704 = vpop.permute.xlu0 %1703
        %1705 = vrot.lane.b32.xlu0 %v1615, 32
        %v1706 = vpop.permute.xlu0 %1705
        %1707 = vrot.lane.b32.xlu0 %v1616, 32
        %v1708 = vpop.permute.xlu0 %1707
        %1709 = vrot.lane.b32.xlu0 %v1617, 32
        %v1710 = vpop.permute.xlu0 %1709
        %1711 = vrot.lane.b32.xlu0 %v1618, 32
        %v1712 = vpop.permute.xlu0 %1711
        %1713 = vrot.lane.b32.xlu0 %v1619, 32
        %v1714 = vpop.permute.xlu0 %1713
        %1715 = vrot.lane.b32.xlu0 %v1620, 32
        %v1716 = vpop.permute.xlu0 %1715
        %vm1749 = vcmask 326912
        %1750 = vst.msk [vmem:[#allocation3] sm:$0xff] %vm1749, %v1654
        %1751 = vst.msk [vmem:[#allocation3 + $0x8] sm:$0xff] %vm1749, %v1656
        %1752 = vst.msk [vmem:[#allocation3 + $0x10] sm:$0xff] %vm1749, %v1658
        %1753 = vst.msk [vmem:[#allocation3 + $0x18] sm:$0xff] %vm1749, %v1660
        %1754 = vst.msk [vmem:[#allocation3 + $0x20] sm:$0xff] %vm1749, %v1662
        %1755 = vst.msk [vmem:[#allocation3 + $0x28] sm:$0xff] %vm1749, %v1664
        %1756 = vst.msk [vmem:[#allocation3 + $0x30] sm:$0xff] %vm1749, %v1666
        %1757 = vst.msk [vmem:[#allocation3 + $0x38] sm:$0xff] %vm1749, %v1668
        %1758 = vst.msk [vmem:[#allocation3 + $0x40] sm:$0xff] %vm1749, %v1670
        %1759 = vst.msk [vmem:[#allocation3 + $0x48] sm:$0xff] %vm1749, %v1672
        %1760 = vst.msk [vmem:[#allocation3 + $0x50] sm:$0xff] %vm1749, %v1674
        %1761 = vst.msk [vmem:[#allocation3 + $0x58] sm:$0xff] %vm1749, %v1676
        %1762 = vst.msk [vmem:[#allocation3 + $0x60] sm:$0xff] %vm1749, %v1678
        %1763 = vst.msk [vmem:[#allocation3 + $0x68] sm:$0xff] %vm1749, %v1680
        %1764 = vst.msk [vmem:[#allocation3 + $0x70] sm:$0xff] %vm1749, %v1682
        %1765 = vst.msk [vmem:[#allocation3 + $0x78] sm:$0xff] %vm1749, %v1684
        %1766 = vst.msk [vmem:[#allocation3 + $0x80] sm:$0xff] %vm1749, %v1686
        %1767 = vst.msk [vmem:[#allocation3 + $0x88] sm:$0xff] %vm1749, %v1688
        %1768 = vst.msk [vmem:[#allocation3 + $0x90] sm:$0xff] %vm1749, %v1690
        %1769 = vst.msk [vmem:[#allocation3 + $0x98] sm:$0xff] %vm1749, %v1692
        %1770 = vst.msk [vmem:[#allocation3 + $0xa0] sm:$0xff] %vm1749, %v1694
        %1771 = vst.msk [vmem:[#allocation3 + $0xa8] sm:$0xff] %vm1749, %v1696
        %1772 = vst.msk [vmem:[#allocation3 + $0xb0] sm:$0xff] %vm1749, %v1698
        %1773 = vst.msk [vmem:[#allocation3 + $0xb8] sm:$0xff] %vm1749, %v1700
        %1774 = vst.msk [vmem:[#allocation3 + $0xc0] sm:$0xff] %vm1749, %v1702
        %1775 = vst.msk [vmem:[#allocation3 + $0xc8] sm:$0xff] %vm1749, %v1704
        %1776 = vst.msk [vmem:[#allocation3 + $0xd0] sm:$0xff] %vm1749, %v1706
        %1777 = vst.msk [vmem:[#allocation3 + $0xd8] sm:$0xff] %vm1749, %v1708
        %1778 = vst.msk [vmem:[#allocation3 + $0xe0] sm:$0xff] %vm1749, %v1710
        %1779 = vst.msk [vmem:[#allocation3 + $0xe8] sm:$0xff] %vm1749, %v1712
        %1780 = vst.msk [vmem:[#allocation3 + $0xf0] sm:$0xff] %vm1749, %v1714
        %1781 = vst.msk [vmem:[#allocation3 + $0xf8] sm:$0xff] %vm1749, %v1716
        %v1782 = vld [vmem:[%s913 + $0x2] sm:$0xff]
        %v1783 = vld [vmem:[%s913 + $0xa] sm:$0xff]
        %v1784 = vld [vmem:[%s913 + $0x1a] sm:$0xff]
        %v1785 = vld [vmem:[%s913 + $0x22] sm:$0xff]
        %v1786 = vld [vmem:[%s913 + $0x32] sm:$0xff]
        %v1787 = vld [vmem:[%s913 + $0x3a] sm:$0xff]
        %v1788 = vld [vmem:[%s913 + $0x4a] sm:$0xff]
        %v1789 = vld [vmem:[%s913 + $0x52] sm:$0xff]
        %v1790 = vld [vmem:[%s913 + $0x62] sm:$0xff]
        %v1791 = vld [vmem:[%s913 + $0x6a] sm:$0xff]
        %v1792 = vld [vmem:[%s913 + $0x7a] sm:$0xff]
        %v1793 = vld [vmem:[%s913 + $0x82] sm:$0xff]
        %v1794 = vld [vmem:[%s913 + $0x92] sm:$0xff]
        %v1795 = vld [vmem:[%s913 + $0x9a] sm:$0xff]
        %v1796 = vld [vmem:[%s913 + $0xaa] sm:$0xff]
        %v1797 = vld [vmem:[%s913 + $0xb2] sm:$0xff]
        %v1798 = vld [vmem:[%s913 + $0xc2] sm:$0xff]
        %v1799 = vld [vmem:[%s913 + $0xca] sm:$0xff]
        %v1800 = vld [vmem:[%s913 + $0xda] sm:$0xff]
        %v1801 = vld [vmem:[%s913 + $0xe2] sm:$0xff]
        %v1802 = vld [vmem:[%s913 + $0xf2] sm:$0xff]
        %v1803 = vld [vmem:[%s913 + $0xfa] sm:$0xff]
        %v1804 = vld [vmem:[%s913 + $0x10a] sm:$0xff]
        %v1805 = vld [vmem:[%s913 + $0x112] sm:$0xff]
        %v1806 = vld [vmem:[%s913 + $0x122] sm:$0xff]
        %v1807 = vld [vmem:[%s913 + $0x12a] sm:$0xff]
        %v1808 = vld [vmem:[%s913 + $0x13a] sm:$0xff]
        %v1809 = vld [vmem:[%s913 + $0x142] sm:$0xff]
        %v1810 = vld [vmem:[%s913 + $0x152] sm:$0xff]
        %v1811 = vld [vmem:[%s913 + $0x15a] sm:$0xff]
        %v1812 = vld [vmem:[%s913 + $0x16a] sm:$0xff]
        %v1813 = vld [vmem:[%s913 + $0x172] sm:$0xff]
        %1846 = vrot.lane.b32.xlu0 %v1782, 40
        %v1847 = vpop.permute.xlu0 %1846
        %1848 = vrot.lane.b32.xlu0 %v1783, 40
        %v1849 = vpop.permute.xlu0 %1848
        %1850 = vrot.lane.b32.xlu0 %v1784, 40
        %v1851 = vpop.permute.xlu0 %1850
        %1852 = vrot.lane.b32.xlu0 %v1785, 40
        %v1853 = vpop.permute.xlu0 %1852
        %1854 = vrot.lane.b32.xlu0 %v1786, 40
        %v1855 = vpop.permute.xlu0 %1854
        %1856 = vrot.lane.b32.xlu0 %v1787, 40
        %v1857 = vpop.permute.xlu0 %1856
        %1858 = vrot.lane.b32.xlu0 %v1788, 40
        %v1859 = vpop.permute.xlu0 %1858
        %1860 = vrot.lane.b32.xlu0 %v1789, 40
        %v1861 = vpop.permute.xlu0 %1860
        %1862 = vrot.lane.b32.xlu0 %v1790, 40
        %v1863 = vpop.permute.xlu0 %1862
        %1864 = vrot.lane.b32.xlu0 %v1791, 40
        %v1865 = vpop.permute.xlu0 %1864
        %1866 = vrot.lane.b32.xlu0 %v1792, 40
        %v1867 = vpop.permute.xlu0 %1866
        %1868 = vrot.lane.b32.xlu0 %v1793, 40
        %v1869 = vpop.permute.xlu0 %1868
        %1870 = vrot.lane.b32.xlu0 %v1794, 40
        %v1871 = vpop.permute.xlu0 %1870
        %1872 = vrot.lane.b32.xlu0 %v1795, 40
        %v1873 = vpop.permute.xlu0 %1872
        %1874 = vrot.lane.b32.xlu0 %v1796, 40
        %v1875 = vpop.permute.xlu0 %1874
        %1876 = vrot.lane.b32.xlu0 %v1797, 40
        %v1877 = vpop.permute.xlu0 %1876
        %1878 = vrot.lane.b32.xlu0 %v1798, 40
        %v1879 = vpop.permute.xlu0 %1878
        %1880 = vrot.lane.b32.xlu0 %v1799, 40
        %v1881 = vpop.permute.xlu0 %1880
        %1882 = vrot.lane.b32.xlu0 %v1800, 40
        %v1883 = vpop.permute.xlu0 %1882
        %1884 = vrot.lane.b32.xlu0 %v1801, 40
        %v1885 = vpop.permute.xlu0 %1884
        %1886 = vrot.lane.b32.xlu0 %v1802, 40
        %v1887 = vpop.permute.xlu0 %1886
        %1888 = vrot.lane.b32.xlu0 %v1803, 40
        %v1889 = vpop.permute.xlu0 %1888
        %1890 = vrot.lane.b32.xlu0 %v1804, 40
        %v1891 = vpop.permute.xlu0 %1890
        %1892 = vrot.lane.b32.xlu0 %v1805, 40
        %v1893 = vpop.permute.xlu0 %1892
        %1894 = vrot.lane.b32.xlu0 %v1806, 40
        %v1895 = vpop.permute.xlu0 %1894
        %1896 = vrot.lane.b32.xlu0 %v1807, 40
        %v1897 = vpop.permute.xlu0 %1896
        %1898 = vrot.lane.b32.xlu0 %v1808, 40
        %v1899 = vpop.permute.xlu0 %1898
        %1900 = vrot.lane.b32.xlu0 %v1809, 40
        %v1901 = vpop.permute.xlu0 %1900
        %1902 = vrot.lane.b32.xlu0 %v1810, 40
        %v1903 = vpop.permute.xlu0 %1902
        %1904 = vrot.lane.b32.xlu0 %v1811, 40
        %v1905 = vpop.permute.xlu0 %1904
        %1906 = vrot.lane.b32.xlu0 %v1812, 40
        %v1907 = vpop.permute.xlu0 %1906
        %1908 = vrot.lane.b32.xlu0 %v1813, 40
        %v1909 = vpop.permute.xlu0 %1908
        %vm1942 = vcmask 392512
        %1943 = vst.msk [vmem:[#allocation3] sm:$0xff] %vm1942, %v1847
        %1944 = vst.msk [vmem:[#allocation3 + $0x8] sm:$0xff] %vm1942, %v1849
        %1945 = vst.msk [vmem:[#allocation3 + $0x10] sm:$0xff] %vm1942, %v1851
        %1946 = vst.msk [vmem:[#allocation3 + $0x18] sm:$0xff] %vm1942, %v1853
        %1947 = vst.msk [vmem:[#allocation3 + $0x20] sm:$0xff] %vm1942, %v1855
        %1948 = vst.msk [vmem:[#allocation3 + $0x28] sm:$0xff] %vm1942, %v1857
        %1949 = vst.msk [vmem:[#allocation3 + $0x30] sm:$0xff] %vm1942, %v1859
        %1950 = vst.msk [vmem:[#allocation3 + $0x38] sm:$0xff] %vm1942, %v1861
        %1951 = vst.msk [vmem:[#allocation3 + $0x40] sm:$0xff] %vm1942, %v1863
        %1952 = vst.msk [vmem:[#allocation3 + $0x48] sm:$0xff] %vm1942, %v1865
        %1953 = vst.msk [vmem:[#allocation3 + $0x50] sm:$0xff] %vm1942, %v1867
        %1954 = vst.msk [vmem:[#allocation3 + $0x58] sm:$0xff] %vm1942, %v1869
        %1955 = vst.msk [vmem:[#allocation3 + $0x60] sm:$0xff] %vm1942, %v1871
        %1956 = vst.msk [vmem:[#allocation3 + $0x68] sm:$0xff] %vm1942, %v1873
        %1957 = vst.msk [vmem:[#allocation3 + $0x70] sm:$0xff] %vm1942, %v1875
        %1958 = vst.msk [vmem:[#allocation3 + $0x78] sm:$0xff] %vm1942, %v1877
        %1959 = vst.msk [vmem:[#allocation3 + $0x80] sm:$0xff] %vm1942, %v1879
        %1960 = vst.msk [vmem:[#allocation3 + $0x88] sm:$0xff] %vm1942, %v1881
        %1961 = vst.msk [vmem:[#allocation3 + $0x90] sm:$0xff] %vm1942, %v1883
        %1962 = vst.msk [vmem:[#allocation3 + $0x98] sm:$0xff] %vm1942, %v1885
        %1963 = vst.msk [vmem:[#allocation3 + $0xa0] sm:$0xff] %vm1942, %v1887
        %1964 = vst.msk [vmem:[#allocation3 + $0xa8] sm:$0xff] %vm1942, %v1889
        %1965 = vst.msk [vmem:[#allocation3 + $0xb0] sm:$0xff] %vm1942, %v1891
        %1966 = vst.msk [vmem:[#allocation3 + $0xb8] sm:$0xff] %vm1942, %v1893
        %1967 = vst.msk [vmem:[#allocation3 + $0xc0] sm:$0xff] %vm1942, %v1895
        %1968 = vst.msk [vmem:[#allocation3 + $0xc8] sm:$0xff] %vm1942, %v1897
        %1969 = vst.msk [vmem:[#allocation3 + $0xd0] sm:$0xff] %vm1942, %v1899
        %1970 = vst.msk [vmem:[#allocation3 + $0xd8] sm:$0xff] %vm1942, %v1901
        %1971 = vst.msk [vmem:[#allocation3 + $0xe0] sm:$0xff] %vm1942, %v1903
        %1972 = vst.msk [vmem:[#allocation3 + $0xe8] sm:$0xff] %vm1942, %v1905
        %1973 = vst.msk [vmem:[#allocation3 + $0xf0] sm:$0xff] %vm1942, %v1907
        %1974 = vst.msk [vmem:[#allocation3 + $0xf8] sm:$0xff] %vm1942, %v1909
        %s1975 = scalar_lea.vmem [#allocation2], 48
        %v1976 = vld [vmem:[%s1975] sm:$0xff]
        %v1977 = vld [vmem:[%s1975 + $0x8] sm:$0xff]
        %v1978 = vld [vmem:[%s1975 + $0x18] sm:$0xff]
        %v1979 = vld [vmem:[%s1975 + $0x20] sm:$0xff]
        %v1980 = vld [vmem:[%s1975 + $0x30] sm:$0xff]
        %v1981 = vld [vmem:[%s1975 + $0x38] sm:$0xff]
        %v1982 = vld [vmem:[%s1975 + $0x48] sm:$0xff]
        %v1983 = vld [vmem:[%s1975 + $0x50] sm:$0xff]
        %v1984 = vld [vmem:[%s1975 + $0x60] sm:$0xff]
        %v1985 = vld [vmem:[%s1975 + $0x68] sm:$0xff]
        %v1986 = vld [vmem:[%s1975 + $0x78] sm:$0xff]
        %v1987 = vld [vmem:[%s1975 + $0x80] sm:$0xff]
        %v1988 = vld [vmem:[%s1975 + $0x90] sm:$0xff]
        %v1989 = vld [vmem:[%s1975 + $0x98] sm:$0xff]
        %v1990 = vld [vmem:[%s1975 + $0xa8] sm:$0xff]
        %v1991 = vld [vmem:[%s1975 + $0xb0] sm:$0xff]
        %v1992 = vld [vmem:[%s1975 + $0xc0] sm:$0xff]
        %v1993 = vld [vmem:[%s1975 + $0xc8] sm:$0xff]
        %v1994 = vld [vmem:[%s1975 + $0xd8] sm:$0xff]
        %v1995 = vld [vmem:[%s1975 + $0xe0] sm:$0xff]
        %v1996 = vld [vmem:[%s1975 + $0xf0] sm:$0xff]
        %v1997 = vld [vmem:[%s1975 + $0xf8] sm:$0xff]
        %v1998 = vld [vmem:[%s1975 + $0x108] sm:$0xff]
        %v1999 = vld [vmem:[%s1975 + $0x110] sm:$0xff]
        %v2000 = vld [vmem:[%s1975 + $0x120] sm:$0xff]
        %v2001 = vld [vmem:[%s1975 + $0x128] sm:$0xff]
        %v2002 = vld [vmem:[%s1975 + $0x138] sm:$0xff]
        %v2003 = vld [vmem:[%s1975 + $0x140] sm:$0xff]
        %v2004 = vld [vmem:[%s1975 + $0x150] sm:$0xff]
        %v2005 = vld [vmem:[%s1975 + $0x158] sm:$0xff]
        %v2006 = vld [vmem:[%s1975 + $0x168] sm:$0xff]
        %v2007 = vld [vmem:[%s1975 + $0x170] sm:$0xff]
        %2040 = vrot.lane.b32.xlu0 %v1976, 48
        %v2041 = vpop.permute.xlu0 %2040
        %2042 = vrot.lane.b32.xlu0 %v1977, 48
        %v2043 = vpop.permute.xlu0 %2042
        %2044 = vrot.lane.b32.xlu0 %v1978, 48
        %v2045 = vpop.permute.xlu0 %2044
        %2046 = vrot.lane.b32.xlu0 %v1979, 48
        %v2047 = vpop.permute.xlu0 %2046
        %2048 = vrot.lane.b32.xlu0 %v1980, 48
        %v2049 = vpop.permute.xlu0 %2048
        %2050 = vrot.lane.b32.xlu0 %v1981, 48
        %v2051 = vpop.permute.xlu0 %2050
        %2052 = vrot.lane.b32.xlu0 %v1982, 48
        %v2053 = vpop.permute.xlu0 %2052
        %2054 = vrot.lane.b32.xlu0 %v1983, 48
        %v2055 = vpop.permute.xlu0 %2054
        %2056 = vrot.lane.b32.xlu0 %v1984, 48
        %v2057 = vpop.permute.xlu0 %2056
        %2058 = vrot.lane.b32.xlu0 %v1985, 48
        %v2059 = vpop.permute.xlu0 %2058
        %2060 = vrot.lane.b32.xlu0 %v1986, 48
        %v2061 = vpop.permute.xlu0 %2060
        %2062 = vrot.lane.b32.xlu0 %v1987, 48
        %v2063 = vpop.permute.xlu0 %2062
        %2064 = vrot.lane.b32.xlu0 %v1988, 48
        %v2065 = vpop.permute.xlu0 %2064
        %2066 = vrot.lane.b32.xlu0 %v1989, 48
        %v2067 = vpop.permute.xlu0 %2066
        %2068 = vrot.lane.b32.xlu0 %v1990, 48
        %v2069 = vpop.permute.xlu0 %2068
        %2070 = vrot.lane.b32.xlu0 %v1991, 48
        %v2071 = vpop.permute.xlu0 %2070
        %2072 = vrot.lane.b32.xlu0 %v1992, 48
        %v2073 = vpop.permute.xlu0 %2072
        %2074 = vrot.lane.b32.xlu0 %v1993, 48
        %v2075 = vpop.permute.xlu0 %2074
        %2076 = vrot.lane.b32.xlu0 %v1994, 48
        %v2077 = vpop.permute.xlu0 %2076
        %2078 = vrot.lane.b32.xlu0 %v1995, 48
        %v2079 = vpop.permute.xlu0 %2078
        %2080 = vrot.lane.b32.xlu0 %v1996, 48
        %v2081 = vpop.permute.xlu0 %2080
        %2082 = vrot.lane.b32.xlu0 %v1997, 48
        %v2083 = vpop.permute.xlu0 %2082
        %2084 = vrot.lane.b32.xlu0 %v1998, 48
        %v2085 = vpop.permute.xlu0 %2084
        %2086 = vrot.lane.b32.xlu0 %v1999, 48
        %v2087 = vpop.permute.xlu0 %2086
        %2088 = vrot.lane.b32.xlu0 %v2000, 48
        %v2089 = vpop.permute.xlu0 %2088
        %2090 = vrot.lane.b32.xlu0 %v2001, 48
        %v2091 = vpop.permute.xlu0 %2090
        %2092 = vrot.lane.b32.xlu0 %v2002, 48
        %v2093 = vpop.permute.xlu0 %2092
        %2094 = vrot.lane.b32.xlu0 %v2003, 48
        %v2095 = vpop.permute.xlu0 %2094
        %2096 = vrot.lane.b32.xlu0 %v2004, 48
        %v2097 = vpop.permute.xlu0 %2096
        %2098 = vrot.lane.b32.xlu0 %v2005, 48
        %v2099 = vpop.permute.xlu0 %2098
        %2100 = vrot.lane.b32.xlu0 %v2006, 48
        %v2101 = vpop.permute.xlu0 %2100
        %2102 = vrot.lane.b32.xlu0 %v2007, 48
        %v2103 = vpop.permute.xlu0 %2102
        %vm2136 = vcmask 458112
        %2137 = vst.msk [vmem:[#allocation3] sm:$0xff] %vm2136, %v2041
        %2138 = vst.msk [vmem:[#allocation3 + $0x8] sm:$0xff] %vm2136, %v2043
        %2139 = vst.msk [vmem:[#allocation3 + $0x10] sm:$0xff] %vm2136, %v2045
        %2140 = vst.msk [vmem:[#allocation3 + $0x18] sm:$0xff] %vm2136, %v2047
        %2141 = vst.msk [vmem:[#allocation3 + $0x20] sm:$0xff] %vm2136, %v2049
        %2142 = vst.msk [vmem:[#allocation3 + $0x28] sm:$0xff] %vm2136, %v2051
        %2143 = vst.msk [vmem:[#allocation3 + $0x30] sm:$0xff] %vm2136, %v2053
        %2144 = vst.msk [vmem:[#allocation3 + $0x38] sm:$0xff] %vm2136, %v2055
        %2145 = vst.msk [vmem:[#allocation3 + $0x40] sm:$0xff] %vm2136, %v2057
        %2146 = vst.msk [vmem:[#allocation3 + $0x48] sm:$0xff] %vm2136, %v2059
        %2147 = vst.msk [vmem:[#allocation3 + $0x50] sm:$0xff] %vm2136, %v2061
        %2148 = vst.msk [vmem:[#allocation3 + $0x58] sm:$0xff] %vm2136, %v2063
        %2149 = vst.msk [vmem:[#allocation3 + $0x60] sm:$0xff] %vm2136, %v2065
        %2150 = vst.msk [vmem:[#allocation3 + $0x68] sm:$0xff] %vm2136, %v2067
        %2151 = vst.msk [vmem:[#allocation3 + $0x70] sm:$0xff] %vm2136, %v2069
        %2152 = vst.msk [vmem:[#allocation3 + $0x78] sm:$0xff] %vm2136, %v2071
        %2153 = vst.msk [vmem:[#allocation3 + $0x80] sm:$0xff] %vm2136, %v2073
        %2154 = vst.msk [vmem:[#allocation3 + $0x88] sm:$0xff] %vm2136, %v2075
        %2155 = vst.msk [vmem:[#allocation3 + $0x90] sm:$0xff] %vm2136, %v2077
        %2156 = vst.msk [vmem:[#allocation3 + $0x98] sm:$0xff] %vm2136, %v2079
        %2157 = vst.msk [vmem:[#allocation3 + $0xa0] sm:$0xff] %vm2136, %v2081
        %2158 = vst.msk [vmem:[#allocation3 + $0xa8] sm:$0xff] %vm2136, %v2083
        %2159 = vst.msk [vmem:[#allocation3 + $0xb0] sm:$0xff] %vm2136, %v2085
        %2160 = vst.msk [vmem:[#allocation3 + $0xb8] sm:$0xff] %vm2136, %v2087
        %2161 = vst.msk [vmem:[#allocation3 + $0xc0] sm:$0xff] %vm2136, %v2089
        %2162 = vst.msk [vmem:[#allocation3 + $0xc8] sm:$0xff] %vm2136, %v2091
        %2163 = vst.msk [vmem:[#allocation3 + $0xd0] sm:$0xff] %vm2136, %v2093
        %2164 = vst.msk [vmem:[#allocation3 + $0xd8] sm:$0xff] %vm2136, %v2095
        %2165 = vst.msk [vmem:[#allocation3 + $0xe0] sm:$0xff] %vm2136, %v2097
        %2166 = vst.msk [vmem:[#allocation3 + $0xe8] sm:$0xff] %vm2136, %v2099
        %2167 = vst.msk [vmem:[#allocation3 + $0xf0] sm:$0xff] %vm2136, %v2101
        %2168 = vst.msk [vmem:[#allocation3 + $0xf8] sm:$0xff] %vm2136, %v2103
        %v2169 = vld [vmem:[%s1975 + $0x1] sm:$0xff]
        %v2170 = vld [vmem:[%s1975 + $0x9] sm:$0xff]
        %v2171 = vld [vmem:[%s1975 + $0x19] sm:$0xff]
        %v2172 = vld [vmem:[%s1975 + $0x21] sm:$0xff]
        %v2173 = vld [vmem:[%s1975 + $0x31] sm:$0xff]
        %v2174 = vld [vmem:[%s1975 + $0x39] sm:$0xff]
        %v2175 = vld [vmem:[%s1975 + $0x49] sm:$0xff]
        %v2176 = vld [vmem:[%s1975 + $0x51] sm:$0xff]
        %v2177 = vld [vmem:[%s1975 + $0x61] sm:$0xff]
        %v2178 = vld [vmem:[%s1975 + $0x69] sm:$0xff]
        %v2179 = vld [vmem:[%s1975 + $0x79] sm:$0xff]
        %v2180 = vld [vmem:[%s1975 + $0x81] sm:$0xff]
        %v2181 = vld [vmem:[%s1975 + $0x91] sm:$0xff]
        %v2182 = vld [vmem:[%s1975 + $0x99] sm:$0xff]
        %v2183 = vld [vmem:[%s1975 + $0xa9] sm:$0xff]
        %v2184 = vld [vmem:[%s1975 + $0xb1] sm:$0xff]
        %v2185 = vld [vmem:[%s1975 + $0xc1] sm:$0xff]
        %v2186 = vld [vmem:[%s1975 + $0xc9] sm:$0xff]
        %v2187 = vld [vmem:[%s1975 + $0xd9] sm:$0xff]
        %v2188 = vld [vmem:[%s1975 + $0xe1] sm:$0xff]
        %v2189 = vld [vmem:[%s1975 + $0xf1] sm:$0xff]
        %v2190 = vld [vmem:[%s1975 + $0xf9] sm:$0xff]
        %v2191 = vld [vmem:[%s1975 + $0x109] sm:$0xff]
        %v2192 = vld [vmem:[%s1975 + $0x111] sm:$0xff]
        %v2193 = vld [vmem:[%s1975 + $0x121] sm:$0xff]
        %v2194 = vld [vmem:[%s1975 + $0x129] sm:$0xff]
        %v2195 = vld [vmem:[%s1975 + $0x139] sm:$0xff]
        %v2196 = vld [vmem:[%s1975 + $0x141] sm:$0xff]
        %v2197 = vld [vmem:[%s1975 + $0x151] sm:$0xff]
        %v2198 = vld [vmem:[%s1975 + $0x159] sm:$0xff]
        %v2199 = vld [vmem:[%s1975 + $0x169] sm:$0xff]
        %v2200 = vld [vmem:[%s1975 + $0x171] sm:$0xff]
        %2233 = vrot.lane.b32.xlu0 %v2169, 56
        %v2234 = vpop.permute.xlu0 %2233
        %2235 = vrot.lane.b32.xlu0 %v2170, 56
        %v2236 = vpop.permute.xlu0 %2235
        %2237 = vrot.lane.b32.xlu0 %v2171, 56
        %v2238 = vpop.permute.xlu0 %2237
        %2239 = vrot.lane.b32.xlu0 %v2172, 56
        %v2240 = vpop.permute.xlu0 %2239
        %2241 = vrot.lane.b32.xlu0 %v2173, 56
        %v2242 = vpop.permute.xlu0 %2241
        %2243 = vrot.lane.b32.xlu0 %v2174, 56
        %v2244 = vpop.permute.xlu0 %2243
        %2245 = vrot.lane.b32.xlu0 %v2175, 56
        %v2246 = vpop.permute.xlu0 %2245
        %2247 = vrot.lane.b32.xlu0 %v2176, 56
        %v2248 = vpop.permute.xlu0 %2247
        %2249 = vrot.lane.b32.xlu0 %v2177, 56
        %v2250 = vpop.permute.xlu0 %2249
        %2251 = vrot.lane.b32.xlu0 %v2178, 56
        %v2252 = vpop.permute.xlu0 %2251
        %2253 = vrot.lane.b32.xlu0 %v2179, 56
        %v2254 = vpop.permute.xlu0 %2253
        %2255 = vrot.lane.b32.xlu0 %v2180, 56
        %v2256 = vpop.permute.xlu0 %2255
        %2257 = vrot.lane.b32.xlu0 %v2181, 56
        %v2258 = vpop.permute.xlu0 %2257
        %2259 = vrot.lane.b32.xlu0 %v2182, 56
        %v2260 = vpop.permute.xlu0 %2259
        %2261 = vrot.lane.b32.xlu0 %v2183, 56
        %v2262 = vpop.permute.xlu0 %2261
        %2263 = vrot.lane.b32.xlu0 %v2184, 56
        %v2264 = vpop.permute.xlu0 %2263
        %2265 = vrot.lane.b32.xlu0 %v2185, 56
        %v2266 = vpop.permute.xlu0 %2265
        %2267 = vrot.lane.b32.xlu0 %v2186, 56
        %v2268 = vpop.permute.xlu0 %2267
        %2269 = vrot.lane.b32.xlu0 %v2187, 56
        %v2270 = vpop.permute.xlu0 %2269
        %2271 = vrot.lane.b32.xlu0 %v2188, 56
        %v2272 = vpop.permute.xlu0 %2271
        %2273 = vrot.lane.b32.xlu0 %v2189, 56
        %v2274 = vpop.permute.xlu0 %2273
        %2275 = vrot.lane.b32.xlu0 %v2190, 56
        %v2276 = vpop.permute.xlu0 %2275
        %2277 = vrot.lane.b32.xlu0 %v2191, 56
        %v2278 = vpop.permute.xlu0 %2277
        %2279 = vrot.lane.b32.xlu0 %v2192, 56
        %v2280 = vpop.permute.xlu0 %2279
        %2281 = vrot.lane.b32.xlu0 %v2193, 56
        %v2282 = vpop.permute.xlu0 %2281
        %2283 = vrot.lane.b32.xlu0 %v2194, 56
        %v2284 = vpop.permute.xlu0 %2283
        %2285 = vrot.lane.b32.xlu0 %v2195, 56
        %v2286 = vpop.permute.xlu0 %2285
        %2287 = vrot.lane.b32.xlu0 %v2196, 56
        %v2288 = vpop.permute.xlu0 %2287
        %2289 = vrot.lane.b32.xlu0 %v2197, 56
        %v2290 = vpop.permute.xlu0 %2289
        %2291 = vrot.lane.b32.xlu0 %v2198, 56
        %v2292 = vpop.permute.xlu0 %2291
        %2293 = vrot.lane.b32.xlu0 %v2199, 56
        %v2294 = vpop.permute.xlu0 %2293
        %2295 = vrot.lane.b32.xlu0 %v2200, 56
        %v2296 = vpop.permute.xlu0 %2295
        %vm2329 = vcmask 523712
        %2330 = vst.msk [vmem:[#allocation3] sm:$0xff] %vm2329, %v2234
        %2331 = vst.msk [vmem:[#allocation3 + $0x8] sm:$0xff] %vm2329, %v2236
        %2332 = vst.msk [vmem:[#allocation3 + $0x10] sm:$0xff] %vm2329, %v2238
        %2333 = vst.msk [vmem:[#allocation3 + $0x18] sm:$0xff] %vm2329, %v2240
        %2334 = vst.msk [vmem:[#allocation3 + $0x20] sm:$0xff] %vm2329, %v2242
        %2335 = vst.msk [vmem:[#allocation3 + $0x28] sm:$0xff] %vm2329, %v2244
        %2336 = vst.msk [vmem:[#allocation3 + $0x30] sm:$0xff] %vm2329, %v2246
        %2337 = vst.msk [vmem:[#allocation3 + $0x38] sm:$0xff] %vm2329, %v2248
        %2338 = vst.msk [vmem:[#allocation3 + $0x40] sm:$0xff] %vm2329, %v2250
        %2339 = vst.msk [vmem:[#allocation3 + $0x48] sm:$0xff] %vm2329, %v2252
        %2340 = vst.msk [vmem:[#allocation3 + $0x50] sm:$0xff] %vm2329, %v2254
        %2341 = vst.msk [vmem:[#allocation3 + $0x58] sm:$0xff] %vm2329, %v2256
        %2342 = vst.msk [vmem:[#allocation3 + $0x60] sm:$0xff] %vm2329, %v2258
        %2343 = vst.msk [vmem:[#allocation3 + $0x68] sm:$0xff] %vm2329, %v2260
        %2344 = vst.msk [vmem:[#allocation3 + $0x70] sm:$0xff] %vm2329, %v2262
        %2345 = vst.msk [vmem:[#allocation3 + $0x78] sm:$0xff] %vm2329, %v2264
        %2346 = vst.msk [vmem:[#allocation3 + $0x80] sm:$0xff] %vm2329, %v2266
        %2347 = vst.msk [vmem:[#allocation3 + $0x88] sm:$0xff] %vm2329, %v2268
        %2348 = vst.msk [vmem:[#allocation3 + $0x90] sm:$0xff] %vm2329, %v2270
        %2349 = vst.msk [vmem:[#allocation3 + $0x98] sm:$0xff] %vm2329, %v2272
        %2350 = vst.msk [vmem:[#allocation3 + $0xa0] sm:$0xff] %vm2329, %v2274
        %2351 = vst.msk [vmem:[#allocation3 + $0xa8] sm:$0xff] %vm2329, %v2276
        %2352 = vst.msk [vmem:[#allocation3 + $0xb0] sm:$0xff] %vm2329, %v2278
        %2353 = vst.msk [vmem:[#allocation3 + $0xb8] sm:$0xff] %vm2329, %v2280
        %2354 = vst.msk [vmem:[#allocation3 + $0xc0] sm:$0xff] %vm2329, %v2282
        %2355 = vst.msk [vmem:[#allocation3 + $0xc8] sm:$0xff] %vm2329, %v2284
        %2356 = vst.msk [vmem:[#allocation3 + $0xd0] sm:$0xff] %vm2329, %v2286
        %2357 = vst.msk [vmem:[#allocation3 + $0xd8] sm:$0xff] %vm2329, %v2288
        %2358 = vst.msk [vmem:[#allocation3 + $0xe0] sm:$0xff] %vm2329, %v2290
        %2359 = vst.msk [vmem:[#allocation3 + $0xe8] sm:$0xff] %vm2329, %v2292
        %2360 = vst.msk [vmem:[#allocation3 + $0xf0] sm:$0xff] %vm2329, %v2294
        %2361 = vst.msk [vmem:[#allocation3 + $0xf8] sm:$0xff] %vm2329, %v2296
        %v2362 = vld [vmem:[%s1975 + $0x2] sm:$0xff]
        %v2363 = vld [vmem:[%s1975 + $0xa] sm:$0xff]
        %v2364 = vld [vmem:[%s1975 + $0x1a] sm:$0xff]
        %v2365 = vld [vmem:[%s1975 + $0x22] sm:$0xff]
        %v2366 = vld [vmem:[%s1975 + $0x32] sm:$0xff]
        %v2367 = vld [vmem:[%s1975 + $0x3a] sm:$0xff]
        %v2368 = vld [vmem:[%s1975 + $0x4a] sm:$0xff]
        %v2369 = vld [vmem:[%s1975 + $0x52] sm:$0xff]
        %v2370 = vld [vmem:[%s1975 + $0x62] sm:$0xff]
        %v2371 = vld [vmem:[%s1975 + $0x6a] sm:$0xff]
        %v2372 = vld [vmem:[%s1975 + $0x7a] sm:$0xff]
        %v2373 = vld [vmem:[%s1975 + $0x82] sm:$0xff]
        %v2374 = vld [vmem:[%s1975 + $0x92] sm:$0xff]
        %v2375 = vld [vmem:[%s1975 + $0x9a] sm:$0xff]
        %v2376 = vld [vmem:[%s1975 + $0xaa] sm:$0xff]
        %v2377 = vld [vmem:[%s1975 + $0xb2] sm:$0xff]
        %v2378 = vld [vmem:[%s1975 + $0xc2] sm:$0xff]
        %v2379 = vld [vmem:[%s1975 + $0xca] sm:$0xff]
        %v2380 = vld [vmem:[%s1975 + $0xda] sm:$0xff]
        %v2381 = vld [vmem:[%s1975 + $0xe2] sm:$0xff]
        %v2382 = vld [vmem:[%s1975 + $0xf2] sm:$0xff]
        %v2383 = vld [vmem:[%s1975 + $0xfa] sm:$0xff]
        %v2384 = vld [vmem:[%s1975 + $0x10a] sm:$0xff]
        %v2385 = vld [vmem:[%s1975 + $0x112] sm:$0xff]
        %v2386 = vld [vmem:[%s1975 + $0x122] sm:$0xff]
        %v2387 = vld [vmem:[%s1975 + $0x12a] sm:$0xff]
        %v2388 = vld [vmem:[%s1975 + $0x13a] sm:$0xff]
        %v2389 = vld [vmem:[%s1975 + $0x142] sm:$0xff]
        %v2390 = vld [vmem:[%s1975 + $0x152] sm:$0xff]
        %v2391 = vld [vmem:[%s1975 + $0x15a] sm:$0xff]
        %v2392 = vld [vmem:[%s1975 + $0x16a] sm:$0xff]
        %v2393 = vld [vmem:[%s1975 + $0x172] sm:$0xff]
        %2426 = vrot.lane.b32.xlu0 %v2362, 64
        %v2427 = vpop.permute.xlu0 %2426
        %2428 = vrot.lane.b32.xlu0 %v2363, 64
        %v2429 = vpop.permute.xlu0 %2428
        %2430 = vrot.lane.b32.xlu0 %v2364, 64
        %v2431 = vpop.permute.xlu0 %2430
        %2432 = vrot.lane.b32.xlu0 %v2365, 64
        %v2433 = vpop.permute.xlu0 %2432
        %2434 = vrot.lane.b32.xlu0 %v2366, 64
        %v2435 = vpop.permute.xlu0 %2434
        %2436 = vrot.lane.b32.xlu0 %v2367, 64
        %v2437 = vpop.permute.xlu0 %2436
        %2438 = vrot.lane.b32.xlu0 %v2368, 64
        %v2439 = vpop.permute.xlu0 %2438
        %2440 = vrot.lane.b32.xlu0 %v2369, 64
        %v2441 = vpop.permute.xlu0 %2440
        %2442 = vrot.lane.b32.xlu0 %v2370, 64
        %v2443 = vpop.permute.xlu0 %2442
        %2444 = vrot.lane.b32.xlu0 %v2371, 64
        %v2445 = vpop.permute.xlu0 %2444
        %2446 = vrot.lane.b32.xlu0 %v2372, 64
        %v2447 = vpop.permute.xlu0 %2446
        %2448 = vrot.lane.b32.xlu0 %v2373, 64
        %v2449 = vpop.permute.xlu0 %2448
        %2450 = vrot.lane.b32.xlu0 %v2374, 64
        %v2451 = vpop.permute.xlu0 %2450
        %2452 = vrot.lane.b32.xlu0 %v2375, 64
        %v2453 = vpop.permute.xlu0 %2452
        %2454 = vrot.lane.b32.xlu0 %v2376, 64
        %v2455 = vpop.permute.xlu0 %2454
        %2456 = vrot.lane.b32.xlu0 %v2377, 64
        %v2457 = vpop.permute.xlu0 %2456
        %2458 = vrot.lane.b32.xlu0 %v2378, 64
        %v2459 = vpop.permute.xlu0 %2458
        %2460 = vrot.lane.b32.xlu0 %v2379, 64
        %v2461 = vpop.permute.xlu0 %2460
        %2462 = vrot.lane.b32.xlu0 %v2380, 64
        %v2463 = vpop.permute.xlu0 %2462
        %2464 = vrot.lane.b32.xlu0 %v2381, 64
        %v2465 = vpop.permute.xlu0 %2464
        %2466 = vrot.lane.b32.xlu0 %v2382, 64
        %v2467 = vpop.permute.xlu0 %2466
        %2468 = vrot.lane.b32.xlu0 %v2383, 64
        %v2469 = vpop.permute.xlu0 %2468
        %2470 = vrot.lane.b32.xlu0 %v2384, 64
        %v2471 = vpop.permute.xlu0 %2470
        %2472 = vrot.lane.b32.xlu0 %v2385, 64
        %v2473 = vpop.permute.xlu0 %2472
        %2474 = vrot.lane.b32.xlu0 %v2386, 64
        %v2475 = vpop.permute.xlu0 %2474
        %2476 = vrot.lane.b32.xlu0 %v2387, 64
        %v2477 = vpop.permute.xlu0 %2476
        %2478 = vrot.lane.b32.xlu0 %v2388, 64
        %v2479 = vpop.permute.xlu0 %2478
        %2480 = vrot.lane.b32.xlu0 %v2389, 64
        %v2481 = vpop.permute.xlu0 %2480
        %2482 = vrot.lane.b32.xlu0 %v2390, 64
        %v2483 = vpop.permute.xlu0 %2482
        %2484 = vrot.lane.b32.xlu0 %v2391, 64
        %v2485 = vpop.permute.xlu0 %2484
        %2486 = vrot.lane.b32.xlu0 %v2392, 64
        %v2487 = vpop.permute.xlu0 %2486
        %2488 = vrot.lane.b32.xlu0 %v2393, 64
        %v2489 = vpop.permute.xlu0 %2488
        %vm2522 = vcmask 589312
        %2523 = vst.msk [vmem:[#allocation3] sm:$0xff] %vm2522, %v2427
        %2524 = vst.msk [vmem:[#allocation3 + $0x8] sm:$0xff] %vm2522, %v2429
        %2525 = vst.msk [vmem:[#allocation3 + $0x10] sm:$0xff] %vm2522, %v2431
        %2526 = vst.msk [vmem:[#allocation3 + $0x18] sm:$0xff] %vm2522, %v2433
        %2527 = vst.msk [vmem:[#allocation3 + $0x20] sm:$0xff] %vm2522, %v2435
        %2528 = vst.msk [vmem:[#allocation3 + $0x28] sm:$0xff] %vm2522, %v2437
        %2529 = vst.msk [vmem:[#allocation3 + $0x30] sm:$0xff] %vm2522, %v2439
        %2530 = vst.msk [vmem:[#allocation3 + $0x38] sm:$0xff] %vm2522, %v2441
        %2531 = vst.msk [vmem:[#allocation3 + $0x40] sm:$0xff] %vm2522, %v2443
        %2532 = vst.msk [vmem:[#allocation3 + $0x48] sm:$0xff] %vm2522, %v2445
        %2533 = vst.msk [vmem:[#allocation3 + $0x50] sm:$0xff] %vm2522, %v2447
        %2534 = vst.msk [vmem:[#allocation3 + $0x58] sm:$0xff] %vm2522, %v2449
        %2535 = vst.msk [vmem:[#allocation3 + $0x60] sm:$0xff] %vm2522, %v2451
        %2536 = vst.msk [vmem:[#allocation3 + $0x68] sm:$0xff] %vm2522, %v2453
        %2537 = vst.msk [vmem:[#allocation3 + $0x70] sm:$0xff] %vm2522, %v2455
        %2538 = vst.msk [vmem:[#allocation3 + $0x78] sm:$0xff] %vm2522, %v2457
        %2539 = vst.msk [vmem:[#allocation3 + $0x80] sm:$0xff] %vm2522, %v2459
        %2540 = vst.msk [vmem:[#allocation3 + $0x88] sm:$0xff] %vm2522, %v2461
        %2541 = vst.msk [vmem:[#allocation3 + $0x90] sm:$0xff] %vm2522, %v2463
        %2542 = vst.msk [vmem:[#allocation3 + $0x98] sm:$0xff] %vm2522, %v2465
        %2543 = vst.msk [vmem:[#allocation3 + $0xa0] sm:$0xff] %vm2522, %v2467
        %2544 = vst.msk [vmem:[#allocation3 + $0xa8] sm:$0xff] %vm2522, %v2469
        %2545 = vst.msk [vmem:[#allocation3 + $0xb0] sm:$0xff] %vm2522, %v2471
        %2546 = vst.msk [vmem:[#allocation3 + $0xb8] sm:$0xff] %vm2522, %v2473
        %2547 = vst.msk [vmem:[#allocation3 + $0xc0] sm:$0xff] %vm2522, %v2475
        %2548 = vst.msk [vmem:[#allocation3 + $0xc8] sm:$0xff] %vm2522, %v2477
        %2549 = vst.msk [vmem:[#allocation3 + $0xd0] sm:$0xff] %vm2522, %v2479
        %2550 = vst.msk [vmem:[#allocation3 + $0xd8] sm:$0xff] %vm2522, %v2481
        %2551 = vst.msk [vmem:[#allocation3 + $0xe0] sm:$0xff] %vm2522, %v2483
        %2552 = vst.msk [vmem:[#allocation3 + $0xe8] sm:$0xff] %vm2522, %v2485
        %2553 = vst.msk [vmem:[#allocation3 + $0xf0] sm:$0xff] %vm2522, %v2487
        %2554 = vst.msk [vmem:[#allocation3 + $0xf8] sm:$0xff] %vm2522, %v2489
        %v2555 = vld [vmem:[#allocation3] sm:$0xff]
        %v2556 = vld [vmem:[#allocation3 + $0x8] sm:$0xff]
        %v2557 = vld [vmem:[#allocation3 + $0x10] sm:$0xff]
        %v2558 = vld [vmem:[#allocation3 + $0x18] sm:$0xff]
        %v2559 = vld [vmem:[#allocation3 + $0x20] sm:$0xff]
        %v2560 = vld [vmem:[#allocation3 + $0x28] sm:$0xff]
        %v2561 = vld [vmem:[#allocation3 + $0x30] sm:$0xff]
        %v2562 = vld [vmem:[#allocation3 + $0x38] sm:$0xff]
        %v2563 = vld [vmem:[#allocation3 + $0x40] sm:$0xff]
        %v2564 = vld [vmem:[#allocation3 + $0x48] sm:$0xff]
        %v2565 = vld [vmem:[#allocation3 + $0x50] sm:$0xff]
        %v2566 = vld [vmem:[#allocation3 + $0x58] sm:$0xff]
        %v2567 = vld [vmem:[#allocation3 + $0x60] sm:$0xff]
        %v2568 = vld [vmem:[#allocation3 + $0x68] sm:$0xff]
        %v2569 = vld [vmem:[#allocation3 + $0x70] sm:$0xff]
        %v2570 = vld [vmem:[#allocation3 + $0x78] sm:$0xff]
        %v2571 = vld [vmem:[#allocation3 + $0x80] sm:$0xff]
        %v2572 = vld [vmem:[#allocation3 + $0x88] sm:$0xff]
        %v2573 = vld [vmem:[#allocation3 + $0x90] sm:$0xff]
        %v2574 = vld [vmem:[#allocation3 + $0x98] sm:$0xff]
        %v2575 = vld [vmem:[#allocation3 + $0xa0] sm:$0xff]
        %v2576 = vld [vmem:[#allocation3 + $0xa8] sm:$0xff]
        %v2577 = vld [vmem:[#allocation3 + $0xb0] sm:$0xff]
        %v2578 = vld [vmem:[#allocation3 + $0xb8] sm:$0xff]
        %v2579 = vld [vmem:[#allocation3 + $0xc0] sm:$0xff]
        %v2580 = vld [vmem:[#allocation3 + $0xc8] sm:$0xff]
        %v2581 = vld [vmem:[#allocation3 + $0xd0] sm:$0xff]
        %v2582 = vld [vmem:[#allocation3 + $0xd8] sm:$0xff]
        %v2583 = vld [vmem:[#allocation3 + $0xe0] sm:$0xff]
        %v2584 = vld [vmem:[#allocation3 + $0xe8] sm:$0xff]
        %v2585 = vld [vmem:[#allocation3 + $0xf0] sm:$0xff]
        %v2586 = vld [vmem:[#allocation3 + $0xf8] sm:$0xff]
        %v2587 = vld [vmem:[%s4] sm:$0xff]
        %v2588 = vld [vmem:[%s4 + $0x8] sm:$0xff]
        %v2589 = vld [vmem:[%s4 + $0x10] sm:$0xff]
        %v2590 = vld [vmem:[%s4 + $0x18] sm:$0xff]
        %v2591 = vld [vmem:[%s4 + $0x20] sm:$0xff]
        %v2592 = vld [vmem:[%s4 + $0x28] sm:$0xff]
        %v2593 = vld [vmem:[%s4 + $0x30] sm:$0xff]
        %v2594 = vld [vmem:[%s4 + $0x38] sm:$0xff]
        %v2595 = vld [vmem:[%s4 + $0x40] sm:$0xff]
        %v2596 = vld [vmem:[%s5] sm:$0x1]
        %v2598 = vlaneseq
        %v2599 = vshrl.u32 %v2598, 7
        %v2600 = vsub.s32 0, %v2599
        %v2601 = vrot.slane %v2596, %v2600
        %vm2603 = vcmask 588800
        %v2605 = vsel %vm2603, %v2555, 0
        %v2608 = vsel %vm2603, %v2556, 0
        %v2611 = vsel %vm2603, %v2557, 0
        %v2614 = vsel %vm2603, %v2558, 0
        %v2617 = vsel %vm2603, %v2559, 0
        %v2620 = vsel %vm2603, %v2560, 0
        %v2623 = vsel %vm2603, %v2561, 0
        %v2626 = vsel %vm2603, %v2562, 0
        %v2629 = vsel %vm2603, %v2563, 0
        %v2632 = vsel %vm2603, %v2564, 0
        %v2635 = vsel %vm2603, %v2565, 0
        %v2638 = vsel %vm2603, %v2566, 0
        %v2641 = vsel %vm2603, %v2567, 0
        %v2644 = vsel %vm2603, %v2568, 0
        %v2647 = vsel %vm2603, %v2569, 0
        %v2650 = vsel %vm2603, %v2570, 0
        %v2653 = vsel %vm2603, %v2571, 0
        %v2656 = vsel %vm2603, %v2572, 0
        %v2659 = vsel %vm2603, %v2573, 0
        %v2662 = vsel %vm2603, %v2574, 0
        %v2665 = vsel %vm2603, %v2575, 0
        %v2668 = vsel %vm2603, %v2576, 0
        %v2671 = vsel %vm2603, %v2577, 0
        %v2674 = vsel %vm2603, %v2578, 0
        %v2677 = vsel %vm2603, %v2579, 0
        %v2680 = vsel %vm2603, %v2580, 0
        %v2683 = vsel %vm2603, %v2581, 0
        %v2686 = vsel %vm2603, %v2582, 0
        %v2689 = vsel %vm2603, %v2583, 0
        %v2692 = vsel %vm2603, %v2584, 0
        %v2695 = vsel %vm2603, %v2585, 0
        %v2698 = vsel %vm2603, %v2586, 0
        %2700 = vmatprep.subr.mxu0 0.0
        %2701 = vmatpush1.msra.mxu0 %v2587
        %2702 = vmatprep.subr.mxu0 0.0
        %2703 = vmatpush1.msra.mxu0 %v2588
        %2704 = vmatprep.subr.mxu0 0.0
        %2705 = vmatpush1.msra.mxu0 %v2589
        %2706 = vmatprep.subr.mxu0 0.0
        %2707 = vmatpush1.msra.mxu0 %v2590
        %2708 = vmatprep.subr.mxu0 0.0
        %2709 = vmatpush1.msra.mxu0 %v2591
        %2710 = vmatprep.subr.mxu0 0.0
        %2711 = vmatpush1.msra.mxu0 %v2592
        %2712 = vmatprep.subr.mxu0 0.0
        %2713 = vmatpush1.msra.mxu0 %v2593
        %2714 = vmatprep.subr.mxu0 0.0
        %2715 = vmatpush1.msra.mxu0 %v2594
        %2716 = vmatprep.subr.mxu0 0.0
        %2717 = vmatpush1.msra.mxu0 %v2595
        %2718 = vmatprep.subr.mxu0 0.0
        %2719 = vmatpush1.msra.mxu0 0.0
        %2720 = vmatprep.subr.mxu0 0.0
        %2721 = vmatpush1.msra.mxu0 0.0
        %2722 = vmatprep.subr.mxu0 0.0
        %2723 = vmatpush1.msra.mxu0 0.0
        %2724 = vmatprep.subr.mxu0 0.0
        %2725 = vmatpush1.msra.mxu0 0.0
        %2726 = vmatprep.subr.mxu0 0.0
        %2727 = vmatpush1.msra.mxu0 0.0
        %2728 = vmatprep.subr.mxu0 0.0
        %2729 = vmatpush1.msra.mxu0 0.0
        %2730 = vmatprep.subr.mxu0 0.0
        %2731 = vmatpush1.msra.mxu0 0.0
        %2732 = vmatprep.subr.mxu0 0.0
        %2733 = vmatpush1.msra.mxu0 0.0
        %2734 = vmatprep.subr.mxu0 0.0
        %2735 = vmatpush1.msra.mxu0 0.0
        %2736 = vmatprep.subr.mxu0 0.0
        %2737 = vmatpush1.msra.mxu0 0.0
        %2738 = vmatprep.subr.mxu0 0.0
        %2739 = vmatpush1.msra.mxu0 0.0
        %2740 = vmatprep.subr.mxu0 0.0
        %2741 = vmatpush1.msra.mxu0 0.0
        %2742 = vmatprep.subr.mxu0 0.0
        %2743 = vmatpush1.msra.mxu0 0.0
        %2744 = vmatprep.subr.mxu0 0.0
        %2745 = vmatpush1.msra.mxu0 0.0
        %2746 = vmatprep.subr.mxu0 0.0
        %2747 = vmatpush1.msra.mxu0 0.0
        %2748 = vmatprep.subr.mxu0 0.0
        %2749 = vmatpush1.msra.mxu0 0.0
        %2750 = vmatprep.subr.mxu0 0.0
        %2751 = vmatpush1.msra.mxu0 0.0
        %2752 = vmatprep.subr.mxu0 0.0
        %2753 = vmatpush1.msra.mxu0 0.0
        %2754 = vmatprep.subr.mxu0 0.0
        %2755 = vmatpush1.msra.mxu0 0.0
        %2756 = vmatprep.subr.mxu0 0.0
        %2757 = vmatpush1.msra.mxu0 0.0
        %2758 = vmatprep.subr.mxu0 0.0
        %2759 = vmatpush1.msra.mxu0 0.0
        %2760 = vmatprep.subr.mxu0 0.0
        %2761 = vmatpush1.msra.mxu0 0.0
        %2762 = vmatprep.subr.mxu0 0.0
        %2763 = vmatpush1.msra.mxu0 0.0
        %2764 = vmatprep.mubr.f32.mxu0 0.0
        %2765 = vmatmul.mubr.f32.gmra.mrb[0].mxu0 %v2605
        %v2766 = vpop.f32.mrb[0].mxu0
        %v2767 = vadd.f32 %v2601, %v2766
        %v2768 = vpop.f32.mrb[0].mxu0
        %2769 = vmatprep.mubr.f32.mxu0 0.0
        %2770 = vmatmul.mubr.f32.gmra.mrb[0].mxu0 %v2608
        %v2771 = vpop.f32.mrb[0].mxu0
        %v2772 = vadd.f32 %v2601, %v2771
        %v2773 = vpop.f32.mrb[0].mxu0
        %2774 = vmatprep.mubr.f32.mxu0 0.0
        %2775 = vmatmul.mubr.f32.gmra.mrb[0].mxu0 %v2611
        %v2776 = vpop.f32.mrb[0].mxu0
        %v2777 = vadd.f32 %v2601, %v2776
        %v2778 = vpop.f32.mrb[0].mxu0
        %2779 = vmatprep.mubr.f32.mxu0 0.0
        %2780 = vmatmul.mubr.f32.gmra.mrb[0].mxu0 %v2614
        %v2781 = vpop.f32.mrb[0].mxu0
        %v2782 = vadd.f32 %v2601, %v2781
        %v2783 = vpop.f32.mrb[0].mxu0
        %2784 = vmatprep.mubr.f32.mxu0 0.0
        %2785 = vmatmul.mubr.f32.gmra.mrb[0].mxu0 %v2617
        %v2786 = vpop.f32.mrb[0].mxu0
        %v2787 = vadd.f32 %v2601, %v2786
        %v2788 = vpop.f32.mrb[0].mxu0
        %2789 = vmatprep.mubr.f32.mxu0 0.0
        %2790 = vmatmul.mubr.f32.gmra.mrb[0].mxu0 %v2620
        %v2791 = vpop.f32.mrb[0].mxu0
        %v2792 = vadd.f32 %v2601, %v2791
        %v2793 = vpop.f32.mrb[0].mxu0
        %2794 = vmatprep.mubr.f32.mxu0 0.0
        %2795 = vmatmul.mubr.f32.gmra.mrb[0].mxu0 %v2623
        %v2796 = vpop.f32.mrb[0].mxu0
        %v2797 = vadd.f32 %v2601, %v2796
        %v2798 = vpop.f32.mrb[0].mxu0
        %2799 = vmatprep.mubr.f32.mxu0 0.0
        %2800 = vmatmul.mubr.f32.gmra.mrb[0].mxu0 %v2626
        %v2801 = vpop.f32.mrb[0].mxu0
        %v2802 = vadd.f32 %v2601, %v2801
        %v2803 = vpop.f32.mrb[0].mxu0
        %2804 = vmatprep.mubr.f32.mxu0 0.0
        %2805 = vmatmul.mubr.f32.gmra.mrb[0].mxu0 %v2629
        %v2806 = vpop.f32.mrb[0].mxu0
        %v2807 = vadd.f32 %v2601, %v2806
        %v2808 = vpop.f32.mrb[0].mxu0
        %2809 = vmatprep.mubr.f32.mxu0 0.0
        %2810 = vmatmul.mubr.f32.gmra.mrb[0].mxu0 %v2632
        %v2811 = vpop.f32.mrb[0].mxu0
        %v2812 = vadd.f32 %v2601, %v2811
        %v2813 = vpop.f32.mrb[0].mxu0
        %2814 = vmatprep.mubr.f32.mxu0 0.0
        %2815 = vmatmul.mubr.f32.gmra.mrb[0].mxu0 %v2635
        %v2816 = vpop.f32.mrb[0].mxu0
        %v2817 = vadd.f32 %v2601, %v2816
        %v2818 = vpop.f32.mrb[0].mxu0
        %2819 = vmatprep.mubr.f32.mxu0 0.0
        %2820 = vmatmul.mubr.f32.gmra.mrb[0].mxu0 %v2638
        %v2821 = vpop.f32.mrb[0].mxu0
        %v2822 = vadd.f32 %v2601, %v2821
        %v2823 = vpop.f32.mrb[0].mxu0
        %2824 = vmatprep.mubr.f32.mxu0 0.0
        %2825 = vmatmul.mubr.f32.gmra.mrb[0].mxu0 %v2641
        %v2826 = vpop.f32.mrb[0].mxu0
        %v2827 = vadd.f32 %v2601, %v2826
        %v2828 = vpop.f32.mrb[0].mxu0
        %2829 = vmatprep.mubr.f32.mxu0 0.0
        %2830 = vmatmul.mubr.f32.gmra.mrb[0].mxu0 %v2644
        %v2831 = vpop.f32.mrb[0].mxu0
        %v2832 = vadd.f32 %v2601, %v2831
        %v2833 = vpop.f32.mrb[0].mxu0
        %2834 = vmatprep.mubr.f32.mxu0 0.0
        %2835 = vmatmul.mubr.f32.gmra.mrb[0].mxu0 %v2647
        %v2836 = vpop.f32.mrb[0].mxu0
        %v2837 = vadd.f32 %v2601, %v2836
        %v2838 = vpop.f32.mrb[0].mxu0
        %2839 = vmatprep.mubr.f32.mxu0 0.0
        %2840 = vmatmul.mubr.f32.gmra.mrb[0].mxu0 %v2650
        %v2841 = vpop.f32.mrb[0].mxu0
        %v2842 = vadd.f32 %v2601, %v2841
        %v2843 = vpop.f32.mrb[0].mxu0
        %2844 = vmatprep.mubr.f32.mxu0 0.0
        %2845 = vmatmul.mubr.f32.gmra.mrb[0].mxu0 %v2653
        %v2846 = vpop.f32.mrb[0].mxu0
        %v2847 = vadd.f32 %v2601, %v2846
        %v2848 = vpop.f32.mrb[0].mxu0
        %2849 = vmatprep.mubr.f32.mxu0 0.0
        %2850 = vmatmul.mubr.f32.gmra.mrb[0].mxu0 %v2656
        %v2851 = vpop.f32.mrb[0].mxu0
        %v2852 = vadd.f32 %v2601, %v2851
        %v2853 = vpop.f32.mrb[0].mxu0
        %2854 = vmatprep.mubr.f32.mxu0 0.0
        %2855 = vmatmul.mubr.f32.gmra.mrb[0].mxu0 %v2659
        %v2856 = vpop.f32.mrb[0].mxu0
        %v2857 = vadd.f32 %v2601, %v2856
        %v2858 = vpop.f32.mrb[0].mxu0
        %2859 = vmatprep.mubr.f32.mxu0 0.0
        %2860 = vmatmul.mubr.f32.gmra.mrb[0].mxu0 %v2662
        %v2861 = vpop.f32.mrb[0].mxu0
        %v2862 = vadd.f32 %v2601, %v2861
        %v2863 = vpop.f32.mrb[0].mxu0
        %2864 = vmatprep.mubr.f32.mxu0 0.0
        %2865 = vmatmul.mubr.f32.gmra.mrb[0].mxu0 %v2665
        %v2866 = vpop.f32.mrb[0].mxu0
        %v2867 = vadd.f32 %v2601, %v2866
        %v2868 = vpop.f32.mrb[0].mxu0
        %2869 = vmatprep.mubr.f32.mxu0 0.0
        %2870 = vmatmul.mubr.f32.gmra.mrb[0].mxu0 %v2668
        %v2871 = vpop.f32.mrb[0].mxu0
        %v2872 = vadd.f32 %v2601, %v2871
        %v2873 = vpop.f32.mrb[0].mxu0
        %2874 = vmatprep.mubr.f32.mxu0 0.0
        %2875 = vmatmul.mubr.f32.gmra.mrb[0].mxu0 %v2671
        %v2876 = vpop.f32.mrb[0].mxu0
        %v2877 = vadd.f32 %v2601, %v2876
        %v2878 = vpop.f32.mrb[0].mxu0
        %2879 = vmatprep.mubr.f32.mxu0 0.0
        %2880 = vmatmul.mubr.f32.gmra.mrb[0].mxu0 %v2674
        %v2881 = vpop.f32.mrb[0].mxu0
        %v2882 = vadd.f32 %v2601, %v2881
        %v2883 = vpop.f32.mrb[0].mxu0
        %2884 = vmatprep.mubr.f32.mxu0 0.0
        %2885 = vmatmul.mubr.f32.gmra.mrb[0].mxu0 %v2677
        %v2886 = vpop.f32.mrb[0].mxu0
        %v2887 = vadd.f32 %v2601, %v2886
        %v2888 = vpop.f32.mrb[0].mxu0
        %2889 = vmatprep.mubr.f32.mxu0 0.0
        %2890 = vmatmul.mubr.f32.gmra.mrb[0].mxu0 %v2680
        %v2891 = vpop.f32.mrb[0].mxu0
        %v2892 = vadd.f32 %v2601, %v2891
        %v2893 = vpop.f32.mrb[0].mxu0
        %2894 = vmatprep.mubr.f32.mxu0 0.0
        %2895 = vmatmul.mubr.f32.gmra.mrb[0].mxu0 %v2683
        %v2896 = vpop.f32.mrb[0].mxu0
        %v2897 = vadd.f32 %v2601, %v2896
        %v2898 = vpop.f32.mrb[0].mxu0
        %2899 = vmatprep.mubr.f32.mxu0 0.0
        %2900 = vmatmul.mubr.f32.gmra.mrb[0].mxu0 %v2686
        %v2901 = vpop.f32.mrb[0].mxu0
        %v2902 = vadd.f32 %v2601, %v2901
        %v2903 = vpop.f32.mrb[0].mxu0
        %2904 = vmatprep.mubr.f32.mxu0 0.0
        %2905 = vmatmul.mubr.f32.gmra.mrb[0].mxu0 %v2689
        %v2906 = vpop.f32.mrb[0].mxu0
        %v2907 = vadd.f32 %v2601, %v2906
        %v2908 = vpop.f32.mrb[0].mxu0
        %2909 = vmatprep.mubr.f32.mxu0 0.0
        %2910 = vmatmul.mubr.f32.gmra.mrb[0].mxu0 %v2692
        %v2911 = vpop.f32.mrb[0].mxu0
        %v2912 = vadd.f32 %v2601, %v2911
        %v2913 = vpop.f32.mrb[0].mxu0
        %2914 = vmatprep.mubr.f32.mxu0 0.0
        %2915 = vmatmul.mubr.f32.gmra.mrb[0].mxu0 %v2695
        %v2916 = vpop.f32.mrb[0].mxu0
        %v2917 = vadd.f32 %v2601, %v2916
        %v2918 = vpop.f32.mrb[0].mxu0
        %2919 = vmatprep.mubr.f32.mxu0 0.0
        %2920 = vmatmul.mubr.f32.gmra.mrb[0].mxu0 %v2698
        %v2921 = vpop.f32.mrb[0].mxu0
        %v2922 = vadd.f32 %v2601, %v2921
        %v2923 = vpop.f32.mrb[0].mxu0
        %2924 = vdwg.mxu0
        %v2925 = vmax.f32 %v2767, 0.0
        %v2926 = vmax.f32 %v2772, 0.0
        %v2927 = vmax.f32 %v2777, 0.0
        %v2928 = vmax.f32 %v2782, 0.0
        %v2929 = vmax.f32 %v2787, 0.0
        %v2930 = vmax.f32 %v2792, 0.0
        %v2931 = vmax.f32 %v2797, 0.0
        %v2932 = vmax.f32 %v2802, 0.0
        %v2933 = vmax.f32 %v2807, 0.0
        %v2934 = vmax.f32 %v2812, 0.0
        %v2935 = vmax.f32 %v2817, 0.0
        %v2936 = vmax.f32 %v2822, 0.0
        %v2937 = vmax.f32 %v2827, 0.0
        %v2938 = vmax.f32 %v2832, 0.0
        %v2939 = vmax.f32 %v2837, 0.0
        %v2940 = vmax.f32 %v2842, 0.0
        %v2941 = vmax.f32 %v2847, 0.0
        %v2942 = vmax.f32 %v2852, 0.0
        %v2943 = vmax.f32 %v2857, 0.0
        %v2944 = vmax.f32 %v2862, 0.0
        %v2945 = vmax.f32 %v2867, 0.0
        %v2946 = vmax.f32 %v2872, 0.0
        %v2947 = vmax.f32 %v2877, 0.0
        %v2948 = vmax.f32 %v2882, 0.0
        %v2949 = vmax.f32 %v2887, 0.0
        %v2950 = vmax.f32 %v2892, 0.0
        %v2951 = vmax.f32 %v2897, 0.0
        %v2952 = vmax.f32 %v2902, 0.0
        %v2953 = vmax.f32 %v2907, 0.0
        %v2954 = vmax.f32 %v2912, 0.0
        %v2955 = vmax.f32 %v2917, 0.0
        %v2956 = vmax.f32 %v2922, 0.0
        %v2957 = vld [vmem:[%s6] sm:$0xff]
        %v2958 = vld [vmem:[%s7] sm:$0x1]
        %v2960 = vlaneseq
        %v2961 = vshrl.u32 %v2960, 7
        %v2962 = vsub.s32 0, %v2961
        %v2963 = vrot.slane %v2958, %v2962
        %v2966 = vsel %vm857, %v2925, 0
        %v2969 = vsel %vm857, %v2926, 0
        %v2972 = vsel %vm857, %v2927, 0
        %v2975 = vsel %vm857, %v2928, 0
        %v2978 = vsel %vm857, %v2929, 0
        %v2981 = vsel %vm857, %v2930, 0
        %v2984 = vsel %vm857, %v2931, 0
        %v2987 = vsel %vm857, %v2932, 0
        %v2990 = vsel %vm857, %v2933, 0
        %v2993 = vsel %vm857, %v2934, 0
        %v2996 = vsel %vm857, %v2935, 0
        %v2999 = vsel %vm857, %v2936, 0
        %v3002 = vsel %vm857, %v2937, 0
        %v3005 = vsel %vm857, %v2938, 0
        %v3008 = vsel %vm857, %v2939, 0
        %v3011 = vsel %vm857, %v2940, 0
        %v3014 = vsel %vm857, %v2941, 0
        %v3017 = vsel %vm857, %v2942, 0
        %v3020 = vsel %vm857, %v2943, 0
        %v3023 = vsel %vm857, %v2944, 0
        %v3026 = vsel %vm857, %v2945, 0
        %v3029 = vsel %vm857, %v2946, 0
        %v3032 = vsel %vm857, %v2947, 0
        %v3035 = vsel %vm857, %v2948, 0
        %v3038 = vsel %vm857, %v2949, 0
        %v3041 = vsel %vm857, %v2950, 0
        %v3044 = vsel %vm857, %v2951, 0
        %v3047 = vsel %vm857, %v2952, 0
        %v3050 = vsel %vm857, %v2953, 0
        %v3053 = vsel %vm857, %v2954, 0
        %v3056 = vsel %vm857, %v2955, 0
        %v3059 = vsel %vm857, %v2956, 0
        %3061 = vmatprep.subr.mxu0 0.0
        %3062 = vmatpush1.msra.mxu0 %v2957
        %3063 = vmatprep.subr.mxu0 0.0
        %3064 = vmatpush1.msra.mxu0 0.0
        %3065 = vmatprep.subr.mxu0 0.0
        %3066 = vmatpush1.msra.mxu0 0.0
        %3067 = vmatprep.subr.mxu0 0.0
        %3068 = vmatpush1.msra.mxu0 0.0
        %3069 = vmatprep.subr.mxu0 0.0
        %3070 = vmatpush1.msra.mxu0 0.0
        %3071 = vmatprep.subr.mxu0 0.0
        %3072 = vmatpush1.msra.mxu0 0.0
        %3073 = vmatprep.subr.mxu0 0.0
        %3074 = vmatpush1.msra.mxu0 0.0
        %3075 = vmatprep.subr.mxu0 0.0
        %3076 = vmatpush1.msra.mxu0 0.0
        %3077 = vmatprep.subr.mxu0 0.0
        %3078 = vmatpush1.msra.mxu0 0.0
        %3079 = vmatprep.subr.mxu0 0.0
        %3080 = vmatpush1.msra.mxu0 0.0
        %3081 = vmatprep.subr.mxu0 0.0
        %3082 = vmatpush1.msra.mxu0 0.0
        %3083 = vmatprep.subr.mxu0 0.0
        %3084 = vmatpush1.msra.mxu0 0.0
        %3085 = vmatprep.subr.mxu0 0.0
        %3086 = vmatpush1.msra.mxu0 0.0
        %3087 = vmatprep.subr.mxu0 0.0
        %3088 = vmatpush1.msra.mxu0 0.0
        %3089 = vmatprep.subr.mxu0 0.0
        %3090 = vmatpush1.msra.mxu0 0.0
        %3091 = vmatprep.subr.mxu0 0.0
        %3092 = vmatpush1.msra.mxu0 0.0
        %3093 = vmatprep.subr.mxu0 0.0
        %3094 = vmatpush1.msra.mxu0 0.0
        %3095 = vmatprep.subr.mxu0 0.0
        %3096 = vmatpush1.msra.mxu0 0.0
        %3097 = vmatprep.subr.mxu0 0.0
        %3098 = vmatpush1.msra.mxu0 0.0
        %3099 = vmatprep.subr.mxu0 0.0
        %3100 = vmatpush1.msra.mxu0 0.0
        %3101 = vmatprep.subr.mxu0 0.0
        %3102 = vmatpush1.msra.mxu0 0.0
        %3103 = vmatprep.subr.mxu0 0.0
        %3104 = vmatpush1.msra.mxu0 0.0
        %3105 = vmatprep.subr.mxu0 0.0
        %3106 = vmatpush1.msra.mxu0 0.0
        %3107 = vmatprep.subr.mxu0 0.0
        %3108 = vmatpush1.msra.mxu0 0.0
        %3109 = vmatprep.subr.mxu0 0.0
        %3110 = vmatpush1.msra.mxu0 0.0
        %3111 = vmatprep.subr.mxu0 0.0
        %3112 = vmatpush1.msra.mxu0 0.0
        %3113 = vmatprep.subr.mxu0 0.0
        %3114 = vmatpush1.msra.mxu0 0.0
        %3115 = vmatprep.subr.mxu0 0.0
        %3116 = vmatpush1.msra.mxu0 0.0
        %3117 = vmatprep.subr.mxu0 0.0
        %3118 = vmatpush1.msra.mxu0 0.0
        %3119 = vmatprep.subr.mxu0 0.0
        %3120 = vmatpush1.msra.mxu0 0.0
        %3121 = vmatprep.subr.mxu0 0.0
        %3122 = vmatpush1.msra.mxu0 0.0
        %3123 = vmatprep.subr.mxu0 0.0
        %3124 = vmatpush1.msra.mxu0 0.0
        %3125 = vmatprep.mubr.f32.mxu0 0.0
        %3126 = vmatmul.mubr.f32.gmra.mrb[0].mxu0 %v2966
        %v3127 = vpop.f32.mrb[0].mxu0
        %v3128 = vadd.f32 %v2963, %v3127
        %v3129 = vpop.f32.mrb[0].mxu0
        %3130 = vmatprep.mubr.f32.mxu0 0.0
        %3131 = vmatmul.mubr.f32.gmra.mrb[0].mxu0 %v2969
        %v3132 = vpop.f32.mrb[0].mxu0
        %v3133 = vadd.f32 %v2963, %v3132
        %v3134 = vpop.f32.mrb[0].mxu0
        %3135 = vmatprep.mubr.f32.mxu0 0.0
        %3136 = vmatmul.mubr.f32.gmra.mrb[0].mxu0 %v2972
        %v3137 = vpop.f32.mrb[0].mxu0
        %v3138 = vadd.f32 %v2963, %v3137
        %v3139 = vpop.f32.mrb[0].mxu0
        %3140 = vmatprep.mubr.f32.mxu0 0.0
        %3141 = vmatmul.mubr.f32.gmra.mrb[0].mxu0 %v2975
        %v3142 = vpop.f32.mrb[0].mxu0
        %v3143 = vadd.f32 %v2963, %v3142
        %v3144 = vpop.f32.mrb[0].mxu0
        %3145 = vmatprep.mubr.f32.mxu0 0.0
        %3146 = vmatmul.mubr.f32.gmra.mrb[0].mxu0 %v2978
        %v3147 = vpop.f32.mrb[0].mxu0
        %v3148 = vadd.f32 %v2963, %v3147
        %v3149 = vpop.f32.mrb[0].mxu0
        %3150 = vmatprep.mubr.f32.mxu0 0.0
        %3151 = vmatmul.mubr.f32.gmra.mrb[0].mxu0 %v2981
        %v3152 = vpop.f32.mrb[0].mxu0
        %v3153 = vadd.f32 %v2963, %v3152
        %v3154 = vpop.f32.mrb[0].mxu0
        %3155 = vmatprep.mubr.f32.mxu0 0.0
        %3156 = vmatmul.mubr.f32.gmra.mrb[0].mxu0 %v2984
        %v3157 = vpop.f32.mrb[0].mxu0
        %v3158 = vadd.f32 %v2963, %v3157
        %v3159 = vpop.f32.mrb[0].mxu0
        %3160 = vmatprep.mubr.f32.mxu0 0.0
        %3161 = vmatmul.mubr.f32.gmra.mrb[0].mxu0 %v2987
        %v3162 = vpop.f32.mrb[0].mxu0
        %v3163 = vadd.f32 %v2963, %v3162
        %v3164 = vpop.f32.mrb[0].mxu0
        %3165 = vmatprep.mubr.f32.mxu0 0.0
        %3166 = vmatmul.mubr.f32.gmra.mrb[0].mxu0 %v2990
        %v3167 = vpop.f32.mrb[0].mxu0
        %v3168 = vadd.f32 %v2963, %v3167
        %v3169 = vpop.f32.mrb[0].mxu0
        %3170 = vmatprep.mubr.f32.mxu0 0.0
        %3171 = vmatmul.mubr.f32.gmra.mrb[0].mxu0 %v2993
        %v3172 = vpop.f32.mrb[0].mxu0
        %v3173 = vadd.f32 %v2963, %v3172
        %v3174 = vpop.f32.mrb[0].mxu0
        %3175 = vmatprep.mubr.f32.mxu0 0.0
        %3176 = vmatmul.mubr.f32.gmra.mrb[0].mxu0 %v2996
        %v3177 = vpop.f32.mrb[0].mxu0
        %v3178 = vadd.f32 %v2963, %v3177
        %v3179 = vpop.f32.mrb[0].mxu0
        %3180 = vmatprep.mubr.f32.mxu0 0.0
        %3181 = vmatmul.mubr.f32.gmra.mrb[0].mxu0 %v2999
        %v3182 = vpop.f32.mrb[0].mxu0
        %v3183 = vadd.f32 %v2963, %v3182
        %v3184 = vpop.f32.mrb[0].mxu0
        %3185 = vmatprep.mubr.f32.mxu0 0.0
        %3186 = vmatmul.mubr.f32.gmra.mrb[0].mxu0 %v3002
        %v3187 = vpop.f32.mrb[0].mxu0
        %v3188 = vadd.f32 %v2963, %v3187
        %v3189 = vpop.f32.mrb[0].mxu0
        %3190 = vmatprep.mubr.f32.mxu0 0.0
        %3191 = vmatmul.mubr.f32.gmra.mrb[0].mxu0 %v3005
        %v3192 = vpop.f32.mrb[0].mxu0
        %v3193 = vadd.f32 %v2963, %v3192
        %v3194 = vpop.f32.mrb[0].mxu0
        %3195 = vmatprep.mubr.f32.mxu0 0.0
        %3196 = vmatmul.mubr.f32.gmra.mrb[0].mxu0 %v3008
        %v3197 = vpop.f32.mrb[0].mxu0
        %v3198 = vadd.f32 %v2963, %v3197
        %v3199 = vpop.f32.mrb[0].mxu0
        %3200 = vmatprep.mubr.f32.mxu0 0.0
        %3201 = vmatmul.mubr.f32.gmra.mrb[0].mxu0 %v3011
        %v3202 = vpop.f32.mrb[0].mxu0
        %v3203 = vadd.f32 %v2963, %v3202
        %v3204 = vpop.f32.mrb[0].mxu0
        %3205 = vmatprep.mubr.f32.mxu0 0.0
        %3206 = vmatmul.mubr.f32.gmra.mrb[0].mxu0 %v3014
        %v3207 = vpop.f32.mrb[0].mxu0
        %v3208 = vadd.f32 %v2963, %v3207
        %v3209 = vpop.f32.mrb[0].mxu0
        %3210 = vmatprep.mubr.f32.mxu0 0.0
        %3211 = vmatmul.mubr.f32.gmra.mrb[0].mxu0 %v3017
        %v3212 = vpop.f32.mrb[0].mxu0
        %v3213 = vadd.f32 %v2963, %v3212
        %v3214 = vpop.f32.mrb[0].mxu0
        %3215 = vmatprep.mubr.f32.mxu0 0.0
        %3216 = vmatmul.mubr.f32.gmra.mrb[0].mxu0 %v3020
        %v3217 = vpop.f32.mrb[0].mxu0
        %v3218 = vadd.f32 %v2963, %v3217
        %v3219 = vpop.f32.mrb[0].mxu0
        %3220 = vmatprep.mubr.f32.mxu0 0.0
        %3221 = vmatmul.mubr.f32.gmra.mrb[0].mxu0 %v3023
        %v3222 = vpop.f32.mrb[0].mxu0
        %v3223 = vadd.f32 %v2963, %v3222
        %v3224 = vpop.f32.mrb[0].mxu0
        %3225 = vmatprep.mubr.f32.mxu0 0.0
        %3226 = vmatmul.mubr.f32.gmra.mrb[0].mxu0 %v3026
        %v3227 = vpop.f32.mrb[0].mxu0
        %v3228 = vadd.f32 %v2963, %v3227
        %v3229 = vpop.f32.mrb[0].mxu0
        %3230 = vmatprep.mubr.f32.mxu0 0.0
        %3231 = vmatmul.mubr.f32.gmra.mrb[0].mxu0 %v3029
        %v3232 = vpop.f32.mrb[0].mxu0
        %v3233 = vadd.f32 %v2963, %v3232
        %v3234 = vpop.f32.mrb[0].mxu0
        %3235 = vmatprep.mubr.f32.mxu0 0.0
        %3236 = vmatmul.mubr.f32.gmra.mrb[0].mxu0 %v3032
        %v3237 = vpop.f32.mrb[0].mxu0
        %v3238 = vadd.f32 %v2963, %v3237
        %v3239 = vpop.f32.mrb[0].mxu0
        %3240 = vmatprep.mubr.f32.mxu0 0.0
        %3241 = vmatmul.mubr.f32.gmra.mrb[0].mxu0 %v3035
        %v3242 = vpop.f32.mrb[0].mxu0
        %v3243 = vadd.f32 %v2963, %v3242
        %v3244 = vpop.f32.mrb[0].mxu0
        %3245 = vmatprep.mubr.f32.mxu0 0.0
        %3246 = vmatmul.mubr.f32.gmra.mrb[0].mxu0 %v3038
        %v3247 = vpop.f32.mrb[0].mxu0
        %v3248 = vadd.f32 %v2963, %v3247
        %v3249 = vpop.f32.mrb[0].mxu0
        %3250 = vmatprep.mubr.f32.mxu0 0.0
        %3251 = vmatmul.mubr.f32.gmra.mrb[0].mxu0 %v3041
        %v3252 = vpop.f32.mrb[0].mxu0
        %v3253 = vadd.f32 %v2963, %v3252
        %v3254 = vpop.f32.mrb[0].mxu0
        %3255 = vmatprep.mubr.f32.mxu0 0.0
        %3256 = vmatmul.mubr.f32.gmra.mrb[0].mxu0 %v3044
        %v3257 = vpop.f32.mrb[0].mxu0
        %v3258 = vadd.f32 %v2963, %v3257
        %v3259 = vpop.f32.mrb[0].mxu0
        %3260 = vmatprep.mubr.f32.mxu0 0.0
        %3261 = vmatmul.mubr.f32.gmra.mrb[0].mxu0 %v3047
        %v3262 = vpop.f32.mrb[0].mxu0
        %v3263 = vadd.f32 %v2963, %v3262
        %v3264 = vpop.f32.mrb[0].mxu0
        %3265 = vmatprep.mubr.f32.mxu0 0.0
        %3266 = vmatmul.mubr.f32.gmra.mrb[0].mxu0 %v3050
        %v3267 = vpop.f32.mrb[0].mxu0
        %v3268 = vadd.f32 %v2963, %v3267
        %v3269 = vpop.f32.mrb[0].mxu0
        %3270 = vmatprep.mubr.f32.mxu0 0.0
        %3271 = vmatmul.mubr.f32.gmra.mrb[0].mxu0 %v3053
        %v3272 = vpop.f32.mrb[0].mxu0
        %v3273 = vadd.f32 %v2963, %v3272
        %v3274 = vpop.f32.mrb[0].mxu0
        %3275 = vmatprep.mubr.f32.mxu0 0.0
        %3276 = vmatmul.mubr.f32.gmra.mrb[0].mxu0 %v3056
        %v3277 = vpop.f32.mrb[0].mxu0
        %v3278 = vadd.f32 %v2963, %v3277
        %v3279 = vpop.f32.mrb[0].mxu0
        %3280 = vmatprep.mubr.f32.mxu0 0.0
        %3281 = vmatmul.mubr.f32.gmra.mrb[0].mxu0 %v3059
        %v3282 = vpop.f32.mrb[0].mxu0
        %v3283 = vadd.f32 %v2963, %v3282
        %v3284 = vpop.f32.mrb[0].mxu0
        %3285 = vdwg.mxu0
        %v3286 = vadd.f32 %v3128, %v364
        %v3287 = vadd.f32 %v3133, %v365
        %v3288 = vadd.f32 %v3138, %v366
        %v3289 = vadd.f32 %v3143, %v367
        %v3290 = vadd.f32 %v3148, %v368
        %v3291 = vadd.f32 %v3153, %v369
        %v3292 = vadd.f32 %v3158, %v370
        %v3293 = vadd.f32 %v3163, %v371
        %v3294 = vadd.f32 %v3168, %v372
        %v3295 = vadd.f32 %v3173, %v373
        %v3296 = vadd.f32 %v3178, %v374
        %v3297 = vadd.f32 %v3183, %v375
        %v3298 = vadd.f32 %v3188, %v376
        %v3299 = vadd.f32 %v3193, %v377
        %v3300 = vadd.f32 %v3198, %v378
        %v3301 = vadd.f32 %v3203, %v379
        %v3302 = vadd.f32 %v3208, %v380
        %v3303 = vadd.f32 %v3213, %v381
        %v3304 = vadd.f32 %v3218, %v382
        %v3305 = vadd.f32 %v3223, %v383
        %v3306 = vadd.f32 %v3228, %v384
        %v3307 = vadd.f32 %v3233, %v385
        %v3308 = vadd.f32 %v3238, %v386
        %v3309 = vadd.f32 %v3243, %v387
        %v3310 = vadd.f32 %v3248, %v388
        %v3311 = vadd.f32 %v3253, %v389
        %v3312 = vadd.f32 %v3258, %v390
        %v3313 = vadd.f32 %v3263, %v391
        %v3314 = vadd.f32 %v3268, %v392
        %v3315 = vadd.f32 %v3273, %v393
        %v3316 = vadd.f32 %v3278, %v394
        %v3317 = vadd.f32 %v3283, %v395
        %v3318 = vmax.f32 %v3286, 0.0
        %v3319 = vmax.f32 %v3287, 0.0
        %v3320 = vmax.f32 %v3288, 0.0
        %v3321 = vmax.f32 %v3289, 0.0
        %v3322 = vmax.f32 %v3290, 0.0
        %v3323 = vmax.f32 %v3291, 0.0
        %v3324 = vmax.f32 %v3292, 0.0
        %v3325 = vmax.f32 %v3293, 0.0
        %v3326 = vmax.f32 %v3294, 0.0
        %v3327 = vmax.f32 %v3295, 0.0
        %v3328 = vmax.f32 %v3296, 0.0
        %v3329 = vmax.f32 %v3297, 0.0
        %v3330 = vmax.f32 %v3298, 0.0
        %v3331 = vmax.f32 %v3299, 0.0
        %v3332 = vmax.f32 %v3300, 0.0
        %v3333 = vmax.f32 %v3301, 0.0
        %v3334 = vmax.f32 %v3302, 0.0
        %v3335 = vmax.f32 %v3303, 0.0
        %v3336 = vmax.f32 %v3304, 0.0
        %v3337 = vmax.f32 %v3305, 0.0
        %v3338 = vmax.f32 %v3306, 0.0
        %v3339 = vmax.f32 %v3307, 0.0
        %v3340 = vmax.f32 %v3308, 0.0
        %v3341 = vmax.f32 %v3309, 0.0
        %v3342 = vmax.f32 %v3310, 0.0
        %v3343 = vmax.f32 %v3311, 0.0
        %v3344 = vmax.f32 %v3312, 0.0
        %v3345 = vmax.f32 %v3313, 0.0
        %v3346 = vmax.f32 %v3314, 0.0
        %v3347 = vmax.f32 %v3315, 0.0
        %v3348 = vmax.f32 %v3316, 0.0
        %v3349 = vmax.f32 %v3317, 0.0
        %3350 = vst.msk [vmem:[%s363] sm:$0xff] %vm503, %v3318
        %3351 = vst.msk [vmem:[%s363 + $0x8] sm:$0xff] %vm503, %v3319
        %3352 = vst.msk [vmem:[%s363 + $0x10] sm:$0xff] %vm503, %v3320
        %3353 = vst.msk [vmem:[%s363 + $0x18] sm:$0xff] %vm503, %v3321
        %3354 = vst.msk [vmem:[%s363 + $0x20] sm:$0xff] %vm503, %v3322
        %3355 = vst.msk [vmem:[%s363 + $0x28] sm:$0xff] %vm503, %v3323
        %3356 = vst.msk [vmem:[%s363 + $0x30] sm:$0xff] %vm503, %v3324
        %3357 = vst.msk [vmem:[%s363 + $0x38] sm:$0xff] %vm503, %v3325
        %3358 = vst.msk [vmem:[%s363 + $0x40] sm:$0xff] %vm503, %v3326
        %3359 = vst.msk [vmem:[%s363 + $0x48] sm:$0xff] %vm503, %v3327
        %3360 = vst.msk [vmem:[%s363 + $0x50] sm:$0xff] %vm503, %v3328
        %3361 = vst.msk [vmem:[%s363 + $0x58] sm:$0xff] %vm503, %v3329
        %3362 = vst.msk [vmem:[%s363 + $0x60] sm:$0xff] %vm503, %v3330
        %3363 = vst.msk [vmem:[%s363 + $0x68] sm:$0xff] %vm503, %v3331
        %3364 = vst.msk [vmem:[%s363 + $0x70] sm:$0xff] %vm503, %v3332
        %3365 = vst.msk [vmem:[%s363 + $0x78] sm:$0xff] %vm503, %v3333
        %3366 = vst.msk [vmem:[%s363 + $0x80] sm:$0xff] %vm503, %v3334
        %3367 = vst.msk [vmem:[%s363 + $0x88] sm:$0xff] %vm503, %v3335
        %3368 = vst.msk [vmem:[%s363 + $0x90] sm:$0xff] %vm503, %v3336
        %3369 = vst.msk [vmem:[%s363 + $0x98] sm:$0xff] %vm503, %v3337
        %3370 = vst.msk [vmem:[%s363 + $0xa0] sm:$0xff] %vm503, %v3338
        %3371 = vst.msk [vmem:[%s363 + $0xa8] sm:$0xff] %vm503, %v3339
        %3372 = vst.msk [vmem:[%s363 + $0xb0] sm:$0xff] %vm503, %v3340
        %3373 = vst.msk [vmem:[%s363 + $0xb8] sm:$0xff] %vm503, %v3341
        %3374 = vst.msk [vmem:[%s363 + $0xc0] sm:$0xff] %vm503, %v3342
        %3375 = vst.msk [vmem:[%s363 + $0xc8] sm:$0xff] %vm503, %v3343
        %3376 = vst.msk [vmem:[%s363 + $0xd0] sm:$0xff] %vm503, %v3344
        %3377 = vst.msk [vmem:[%s363 + $0xd8] sm:$0xff] %vm503, %v3345
        %3378 = vst.msk [vmem:[%s363 + $0xe0] sm:$0xff] %vm503, %v3346
        %3379 = vst.msk [vmem:[%s363 + $0xe8] sm:$0xff] %vm503, %v3347
        %3380 = vst.msk [vmem:[%s363 + $0xf0] sm:$0xff] %vm503, %v3348
        %3381 = vst.msk [vmem:[%s363 + $0xf8] sm:$0xff] %vm503, %v3349
        %s3382 = sand.u32 %s214, 1
        %s3383 = scalar_lea.sflag [#allocation6], %s3382
        %s3384 = sand.u32 %s214, 1
        %s3385 = smul.addr %s3384, 256
        %s3386 = scalar_lea.vmem [#allocation9], %s3385
        // Predicated region
        $region61: #{bottleneck_forward.1} parent=51 // pred_check
          %p3387 = pneg %p224
        $region62: #{bottleneck_forward.1} parent=51 // pred_check_branch
          %3389 = sbr.rel (%p3387) target = $region64
        $region63: #{bottleneck_forward.1} parent=51 // pred_region
          %s3391 = ssub.s32 4096, 4096
          %3392 = vsyncadd %s3383, %s3391
          %s3393 = smul.addr %s28, 32
          %s3394 = smul.addr %s3393, 128
          %s3395 = scalar_lea.hbm %s8, %s3394
          %s3396 = sshll.u32 %s3386, 4
          %s3397 = int_to_ptr.vmem [resolvable:$true] %s3396
          %3402 = dma.vmem_to_hbm [thread:$0]  %s3397, 4096, %s3395, %s3383, 128, 128, 8
        $region64: #{bottleneck_forward.1} parent=51 // pred_fallthru
          _
      $region52: #{bottleneck_forward.1} parent=5 // pred_fallthru
        _
      %p3403 = scmp.le.s32.totalorder 2, %s23
      // Predicated region
      $region65: #{bottleneck_forward.1} parent=5 // pred_check
        %p3404 = pneg %p3403
      $region66: #{bottleneck_forward.1} parent=5 // pred_check_branch
        %3406 = sbr.rel (%p3404) target = $region68
      $region67: #{bottleneck_forward.1} parent=5 // pred_region
        %s3407 = ssub.s32 %s23, 2
        // Predicated region
        $region69: #{bottleneck_forward.1} parent=67 // pred_check
          %p3408 = pneg %p230
        $region70: #{bottleneck_forward.1} parent=67 // pred_check_branch
          %3410 = sbr.rel (%p3408) target = $region72
        $region71: #{bottleneck_forward.1} parent=67 // pred_region
          %s3411 = sand.u32 %s215, 1
          %s3412 = scalar_lea.sflag [#allocation6], %s3411
          %s3413 = sand.u32 %s215, 1
          %s3414 = smul.addr %s3413, 256
          %s3415 = scalar_lea.vmem [#allocation9], %s3414
          %3416 = dma.done %s3412, 4096
        $region72: #{bottleneck_forward.1} parent=67 // pred_fallthru
          _
      $region68: #{bottleneck_forward.1} parent=5 // pred_fallthru
        _
    $region6: #{bottleneck_forward.1} parent=1 // loop_footer
      %s27 = sadd.s32 1, %s23
    $region7: #{bottleneck_forward.1} parent=1 // loop_footer_branch
      %22 = sbr.rel target = $region3
    $region8: #{bottleneck_forward.1} parent=1 // loop_exit
      _
    %3417 = vsyncpa [#allocation5], 1
    %s3418 = scalar_lea.sflag [#allocation5], 1
    %3419 = vsyncpa %s3418, 1
    %3420 = vsyncpa [#allocation8], 1
    %s3421 = scalar_lea.sflag [#allocation8], 1
    %3422 = vsyncpa %s3421, 1
    %3423 = vsyncpa [#allocation6], 1
    %s3424 = scalar_lea.sflag [#allocation6], 1
    %3425 = vsyncpa %s3424, 1

</llo_original>
